<compile_context>
chip_gen: v5e
topology: v5e:2x2
jax: 0.10.0
libtpu: 0.0.40
codegen_flags: <defaults>
</compile_context>

<pallas_src>
import numpy as np
import jax
import jax.numpy as jnp
from jax import lax
from jax.experimental import pallas as pl
from jax.experimental.pallas import tpu as pltpu

JITTER = 1e-3  # gpytorch LazyTensor.add_jitter() default


# ----------------------------------------------------------------------------
# Glue: gpytorch Interpolation().interpolate(grid, x)  (cubic convolution interp)
# ----------------------------------------------------------------------------
def _cubic_interpolation_kernel(scaled_dist):
    U = jnp.abs(scaled_dist)
    U_lt_1 = 1.0 - jnp.clip(jnp.floor(U), 0.0, 1.0)          # 1 if U < 1 else 0
    res = (((1.5 * U - 2.5) * U) * U + 1.0) * U_lt_1
    U_ge_1 = 1.0 - U_lt_1
    res = res + (((-0.5 * U + 2.5) * U - 4.0) * U + 2.0) * U_ge_1
    return res


def interpolate(grid, x, interp_points=(-2, -1, 0, 1)):
    """grid: (G, D), x: (N, D) -> (indices (N, 4**D) int32, values (N, 4**D) f32)."""
    G, D = grid.shape
    N = x.shape[0]
    C = len(interp_points)
    ip = jnp.asarray(interp_points, dtype=x.dtype)
    ip_flip = ip[::-1]

    dim_idx, dim_val = [], []
    for i in range(D):
        grid_delta = grid[1, i] - grid[0, i]
        t = (x[:, i] - grid[0, i]) / grid_delta
        lower = jnp.floor(t)
        rel = t - lower
        lower = lower - jnp.max(ip)                            # shift by +1 interp point

        scaled_dist = rel[:, None] + ip_flip[None, :]          # (N, 4)
        vals = _cubic_interpolation_kernel(scaled_dist)

        # left boundary fix: closest of first C grid points -> one-hot
        left = lower < 1
        d_first = jnp.abs(grid[:C, i][None, :] - x[:, i][:, None])
        oh_first = jax.nn.one_hot(jnp.argmin(d_first, axis=1), C, dtype=vals.dtype)
        vals = jnp.where(left[:, None], oh_first, vals)
        lower = jnp.where(left, 0.0, lower)

        # right boundary fix: closest of last C grid points -> one-hot
        right = lower > (G - C)
        d_last = jnp.abs(grid[G - C :, i][None, :] - x[:, i][:, None])
        oh_last = jax.nn.one_hot(jnp.argmin(d_last, axis=1), C, dtype=vals.dtype)
        vals = jnp.where(right[:, None], oh_last, vals)
        lower = jnp.where(right, float(G - C), lower)

        offset = (ip - jnp.min(ip)).astype(jnp.int32)          # [0,1,2,3]
        idxs = lower.astype(jnp.int32)[:, None] + offset[None, :]
        dim_idx.append(idxs)
        dim_val.append(vals)

    # tensor product across dims (dim 0 slowest), flat index coeff G**(D-i-1)
    interp_indices = jnp.zeros((N, 1), dtype=jnp.int32)
    interp_values = jnp.ones((N, 1), dtype=x.dtype)
    for i in range(D):
        coeff = G ** (D - i - 1)
        interp_indices = (interp_indices[:, :, None]
                          + coeff * dim_idx[i][:, None, :]).reshape(N, -1)
        interp_values = (interp_values[:, :, None]
                         * dim_val[i][:, None, :]).reshape(N, -1)
    return interp_indices, interp_values


def densify_interp(interp_indices, interp_values, M):
    """Scatter the sparse interpolation into a dense W of shape (N, M).

    Used only by the pure-JAX reference check (the hot path never scatters)."""
    N = interp_values.shape[0]
    W = jnp.zeros((N, M), dtype=interp_values.dtype)
    rows = jnp.arange(N, dtype=jnp.int32)[:, None]
    return W.at[rows, interp_indices].add(interp_values)


# ----------------------------------------------------------------------------
# Fused Pallas kernel: build W, A = W @ L, cov = A @ A^T + jitter * I
# ----------------------------------------------------------------------------
def _fused_cov_kernel(idx_ref, val_ref, l_ref, cov_ref, a_scr):
    idx = idx_ref[...]                       # (Np, K) int32
    val = val_ref[...]                       # (Np, K) f32
    Np, K = idx.shape
    M = l_ref.shape[1]

    # Dense interpolation matrix without scatter:
    #   W[n, m] = sum_k val[n, k] * (idx[n, k] == m)
    # K (=4^D=16) cheap VPU select+add passes over a (Np, M) tile.
    col_ids = lax.broadcasted_iota(jnp.int32, (Np, M), 1)
    w = jnp.zeros((Np, M), jnp.float32)
    for k in range(K):                                     # static unroll, K small
        w = w + jnp.where(idx[:, k:k + 1] == col_ids,
                          val[:, k:k + 1].astype(jnp.float32),
                          jnp.float32(0.0))

    # A = W @ L on the MXU; Cholesky folded (S = L L^T never formed). A stays in VMEM.
    a_scr[...] = jnp.dot(w, l_ref[...], preferred_element_type=jnp.float32)
    a = a_scr[...]

    # cov = A @ A^T: contract axis 1 of both operands (NT matmul), no host transpose,
    # no HBM round-trip of A.
    cov = lax.dot_general(a, a,
                          dimension_numbers=(((1,), (1,)), ((), ())),
                          preferred_element_type=jnp.float32)

    # add_jitter(): + 1e-3 * I (one-time diagonal add, single grid step).
    r = lax.broadcasted_iota(jnp.int32, (Np, Np), 0)
    c = lax.broadcasted_iota(jnp.int32, (Np, Np), 1)
    cov = cov + jnp.where(r == c, jnp.float32(JITTER), jnp.float32(0.0))
    cov_ref[...] = cov.astype(cov_ref.dtype)


def grid_interp_variational_forward(x, grid, variational_mean, chol_covar):
    """Returns (predictive_mean (N,), predictive_covar (N, N))."""
    G, D = grid.shape
    M = G ** D
    N = x.shape[0]

    interp_indices, interp_values = interpolate(grid, x)          # (N, 16) each

    # predictive_mean = W @ mu via gather (no dense W, no scatter, O(N * 4^D)).
    predictive_mean = jnp.sum(
        interp_values * variational_mean[interp_indices], axis=-1)

    L = jnp.tril(chol_covar)                                      # (M, M)

    # Pad N up to a lane-dense multiple of 128: padded rows have val=0 -> zero rows of
    # W/A -> zero rows/cols of cov (plus jitter on the diag), sliced off at the end.
    K = interp_values.shape[1]
    Np = 128 * pl.cdiv(N, 128)
    if Np != N:
        interp_indices = jnp.pad(interp_indices, ((0, Np - N), (0, 0)))
        interp_values = jnp.pad(interp_values, ((0, Np - N), (0, 0)))

    cov_padded = pl.pallas_call(
        _fused_cov_kernel,
        out_shape=jax.ShapeDtypeStruct((Np, Np), jnp.float32),
        grid_spec=pltpu.PrefetchScalarGridSpec(
            num_scalar_prefetch=0,
            grid=(1,),                                            # single fused step
            in_specs=[
                pl.BlockSpec((Np, K), lambda i: (0, 0)),          # interp indices
                pl.BlockSpec((Np, K), lambda i: (0, 0)),          # interp values
                pl.BlockSpec((M, M), lambda i: (0, 0)),           # L resident
            ],
            out_specs=pl.BlockSpec((Np, Np), lambda i: (0, 0)),
            scratch_shapes=[pltpu.VMEM((Np, M), jnp.float32)],    # A = W @ L
        ),
        compiler_params=pltpu.CompilerParams(
            dimension_semantics=("arbitrary",),
            vmem_limit_bytes=32 * 1024 * 1024,   # explicit (v5e scoped default is 16 MiB)
        ),
    )(interp_indices, interp_values, L)

    predictive_covar = cov_padded[:N, :N]
    return predictive_mean, predictive_covar


# ----------------------------------------------------------------------------
# Main
# ----------------------------------------------------------------------------
if __name__ == "__main__":
    grid_size = 16
    grid_bounds = [(-1.0, 1.0), (-1.0, 1.0)]
    D = len(grid_bounds)
    M = grid_size ** D                                  # 256 inducing points
    N = 128                                             # data points

    # grid exactly as in __init__
    grid_np = np.zeros((grid_size, D), dtype=np.float32)
    for i in range(D):
        lb, ub = grid_bounds[i]
        gd = float(ub - lb) / (grid_size - 2)
        grid_np[:, i] = np.linspace(lb - gd, ub + gd, grid_size, dtype=np.float32)
    grid = jnp.asarray(grid_np)

    # deterministic synthetic parameters (variational distribution) + inputs
    key = jax.random.PRNGKey(0)
    kx, km, kc = jax.random.split(key, 3)
    x = jax.random.uniform(kx, (N, D), dtype=jnp.float32, minval=-1.0, maxval=1.0)
    variational_mean = 0.1 * jax.random.normal(km, (M,), dtype=jnp.float32)
    chol_covar = jnp.eye(M, dtype=jnp.float32) + \
        0.01 * jnp.tril(jax.random.normal(kc, (M, M), dtype=jnp.float32))

    mean, cov = grid_interp_variational_forward(x, grid, variational_mean, chol_covar)
    mean = jax.block_until_ready(mean)
    cov = jax.block_until_ready(cov)

    # pure-JAX reference of the hot path (original gpytorch formulation)
    ii, iv = interpolate(grid, x)
    Wref = densify_interp(ii, iv, M)
    Lref = jnp.tril(chol_covar)
    Sref = Lref @ Lref.T
    mean_ref = Wref @ variational_mean
    cov_ref = Wref @ Sref @ Wref.T + JITTER * jnp.eye(N, dtype=jnp.float32)

    assert mean.shape == (N,) and cov.shape == (N, N)
    np.testing.assert_allclose(np.asarray(mean), np.asarray(mean_ref), rtol=1e-4, atol=1e-4)
    np.testing.assert_allclose(np.asarray(cov), np.asarray(cov_ref), rtol=1e-4, atol=1e-4)

    print("KERNEL_OK")
</pallas_src>

<mosaic_0001>
module attributes {stable_mosaic.version = 11 : i64} {
  func.func @_fused_cov_kernel(%arg0: i32, %arg1: memref<128x16xi32, #tpu.memory_space<vmem>>, %arg2: memref<128x16xf32, #tpu.memory_space<vmem>>, %arg3: memref<256x256xf32, #tpu.memory_space<vmem>>, %arg4: memref<128x128xf32, #tpu.memory_space<vmem>>, %arg5: memref<128x256xf32, #tpu.memory_space<vmem>>) attributes {dimension_semantics = [#tpu.dimension_semantics<arbitrary>], iteration_bounds = array<i64: 1>, scalar_prefetch = 0 : i64, scratch_operands = 1 : i64, tpu.core_type = #tpu.core_type<tc>, window_params = [{pipeline_mode = #tpu.pipeline_mode<synchronous>, transform_indices = @transform_0, window_bounds = array<i64: 128, 16>}, {pipeline_mode = #tpu.pipeline_mode<synchronous>, transform_indices = @transform_1, window_bounds = array<i64: 128, 16>}, {pipeline_mode = #tpu.pipeline_mode<synchronous>, transform_indices = @transform_2, window_bounds = array<i64: 256, 256>}, {pipeline_mode = #tpu.pipeline_mode<synchronous>, transform_indices = @transform_3, window_bounds = array<i64: 128, 128>}]} {
    %c0 = arith.constant 0 : index
    %c0_0 = arith.constant 0 : index
    %0 = vector.load %arg1[%c0, %c0_0] : memref<128x16xi32, #tpu.memory_space<vmem>>, vector<128x16xi32>
    %c0_1 = arith.constant 0 : index
    %c0_2 = arith.constant 0 : index
    %1 = vector.load %arg2[%c0_1, %c0_2] : memref<128x16xf32, #tpu.memory_space<vmem>>, vector<128x16xf32>
    %2 = tpu.iota {dimensions = array<i32: 1>} : vector<128x256xi32>
    %cst = arith.constant 0.000000e+00 : f32
    %3 = vector.broadcast %cst : f32 to vector<128x256xf32>
    %4 = vector.extract_strided_slice %0 {offsets = [0, 0], sizes = [128, 1], strides = [1, 1]} : vector<128x16xi32> to vector<128x1xi32>
    %5 = vector.broadcast %4 : vector<128x1xi32> to vector<128x256xi32>
    %6 = arith.cmpi eq, %5, %2 : vector<128x256xi32>
    %7 = vector.extract_strided_slice %1 {offsets = [0, 0], sizes = [128, 1], strides = [1, 1]} : vector<128x16xf32> to vector<128x1xf32>
    %cst_3 = arith.constant 0.000000e+00 : f32
    %8 = vector.shape_cast %7 : vector<128x1xf32> to vector<128x1xf32>
    %9 = vector.broadcast %8 : vector<128x1xf32> to vector<128x256xf32>
    %10 = vector.broadcast %cst_3 : f32 to vector<128x256xf32>
    %11 = arith.select %6, %9, %10 : vector<128x256xi1>, vector<128x256xf32>
    %12 = arith.addf %3, %11 : vector<128x256xf32>
    %13 = vector.extract_strided_slice %0 {offsets = [0, 1], sizes = [128, 1], strides = [1, 1]} : vector<128x16xi32> to vector<128x1xi32>
    %14 = vector.broadcast %13 : vector<128x1xi32> to vector<128x256xi32>
    %15 = arith.cmpi eq, %14, %2 : vector<128x256xi32>
    %16 = vector.extract_strided_slice %1 {offsets = [0, 1], sizes = [128, 1], strides = [1, 1]} : vector<128x16xf32> to vector<128x1xf32>
    %cst_4 = arith.constant 0.000000e+00 : f32
    %17 = vector.shape_cast %16 : vector<128x1xf32> to vector<128x1xf32>
    %18 = vector.broadcast %17 : vector<128x1xf32> to vector<128x256xf32>
    %19 = vector.broadcast %cst_4 : f32 to vector<128x256xf32>
    %20 = arith.select %15, %18, %19 : vector<128x256xi1>, vector<128x256xf32>
    %21 = arith.addf %12, %20 : vector<128x256xf32>
    %22 = vector.extract_strided_slice %0 {offsets = [0, 2], sizes = [128, 1], strides = [1, 1]} : vector<128x16xi32> to vector<128x1xi32>
    %23 = vector.broadcast %22 : vector<128x1xi32> to vector<128x256xi32>
    %24 = arith.cmpi eq, %23, %2 : vector<128x256xi32>
    %25 = vector.extract_strided_slice %1 {offsets = [0, 2], sizes = [128, 1], strides = [1, 1]} : vector<128x16xf32> to vector<128x1xf32>
    %cst_5 = arith.constant 0.000000e+00 : f32
    %26 = vector.shape_cast %25 : vector<128x1xf32> to vector<128x1xf32>
    %27 = vector.broadcast %26 : vector<128x1xf32> to vector<128x256xf32>
    %28 = vector.broadcast %cst_5 : f32 to vector<128x256xf32>
    %29 = arith.select %24, %27, %28 : vector<128x256xi1>, vector<128x256xf32>
    %30 = arith.addf %21, %29 : vector<128x256xf32>
    %31 = vector.extract_strided_slice %0 {offsets = [0, 3], sizes = [128, 1], strides = [1, 1]} : vector<128x16xi32> to vector<128x1xi32>
    %32 = vector.broadcast %31 : vector<128x1xi32> to vector<128x256xi32>
    %33 = arith.cmpi eq, %32, %2 : vector<128x256xi32>
    %34 = vector.extract_strided_slice %1 {offsets = [0, 3], sizes = [128, 1], strides = [1, 1]} : vector<128x16xf32> to vector<128x1xf32>
    %cst_6 = arith.constant 0.000000e+00 : f32
    %35 = vector.shape_cast %34 : vector<128x1xf32> to vector<128x1xf32>
    %36 = vector.broadcast %35 : vector<128x1xf32> to vector<128x256xf32>
    %37 = vector.broadcast %cst_6 : f32 to vector<128x256xf32>
    %38 = arith.select %33, %36, %37 : vector<128x256xi1>, vector<128x256xf32>
    %39 = arith.addf %30, %38 : vector<128x256xf32>
    %40 = vector.extract_strided_slice %0 {offsets = [0, 4], sizes = [128, 1], strides = [1, 1]} : vector<128x16xi32> to vector<128x1xi32>
    %41 = vector.broadcast %40 : vector<128x1xi32> to vector<128x256xi32>
    %42 = arith.cmpi eq, %41, %2 : vector<128x256xi32>
    %43 = vector.extract_strided_slice %1 {offsets = [0, 4], sizes = [128, 1], strides = [1, 1]} : vector<128x16xf32> to vector<128x1xf32>
    %cst_7 = arith.constant 0.000000e+00 : f32
    %44 = vector.shape_cast %43 : vector<128x1xf32> to vector<128x1xf32>
    %45 = vector.broadcast %44 : vector<128x1xf32> to vector<128x256xf32>
    %46 = vector.broadcast %cst_7 : f32 to vector<128x256xf32>
    %47 = arith.select %42, %45, %46 : vector<128x256xi1>, vector<128x256xf32>
    %48 = arith.addf %39, %47 : vector<128x256xf32>
    %49 = vector.extract_strided_slice %0 {offsets = [0, 5], sizes = [128, 1], strides = [1, 1]} : vector<128x16xi32> to vector<128x1xi32>
    %50 = vector.broadcast %49 : vector<128x1xi32> to vector<128x256xi32>
    %51 = arith.cmpi eq, %50, %2 : vector<128x256xi32>
    %52 = vector.extract_strided_slice %1 {offsets = [0, 5], sizes = [128, 1], strides = [1, 1]} : vector<128x16xf32> to vector<128x1xf32>
    %cst_8 = arith.constant 0.000000e+00 : f32
    %53 = vector.shape_cast %52 : vector<128x1xf32> to vector<128x1xf32>
    %54 = vector.broadcast %53 : vector<128x1xf32> to vector<128x256xf32>
    %55 = vector.broadcast %cst_8 : f32 to vector<128x256xf32>
    %56 = arith.select %51, %54, %55 : vector<128x256xi1>, vector<128x256xf32>
    %57 = arith.addf %48, %56 : vector<128x256xf32>
    %58 = vector.extract_strided_slice %0 {offsets = [0, 6], sizes = [128, 1], strides = [1, 1]} : vector<128x16xi32> to vector<128x1xi32>
    %59 = vector.broadcast %58 : vector<128x1xi32> to vector<128x256xi32>
    %60 = arith.cmpi eq, %59, %2 : vector<128x256xi32>
    %61 = vector.extract_strided_slice %1 {offsets = [0, 6], sizes = [128, 1], strides = [1, 1]} : vector<128x16xf32> to vector<128x1xf32>
    %cst_9 = arith.constant 0.000000e+00 : f32
    %62 = vector.shape_cast %61 : vector<128x1xf32> to vector<128x1xf32>
    %63 = vector.broadcast %62 : vector<128x1xf32> to vector<128x256xf32>
    %64 = vector.broadcast %cst_9 : f32 to vector<128x256xf32>
    %65 = arith.select %60, %63, %64 : vector<128x256xi1>, vector<128x256xf32>
    %66 = arith.addf %57, %65 : vector<128x256xf32>
    %67 = vector.extract_strided_slice %0 {offsets = [0, 7], sizes = [128, 1], strides = [1, 1]} : vector<128x16xi32> to vector<128x1xi32>
    %68 = vector.broadcast %67 : vector<128x1xi32> to vector<128x256xi32>
    %69 = arith.cmpi eq, %68, %2 : vector<128x256xi32>
    %70 = vector.extract_strided_slice %1 {offsets = [0, 7], sizes = [128, 1], strides = [1, 1]} : vector<128x16xf32> to vector<128x1xf32>
    %cst_10 = arith.constant 0.000000e+00 : f32
    %71 = vector.shape_cast %70 : vector<128x1xf32> to vector<128x1xf32>
    %72 = vector.broadcast %71 : vector<128x1xf32> to vector<128x256xf32>
    %73 = vector.broadcast %cst_10 : f32 to vector<128x256xf32>
    %74 = arith.select %69, %72, %73 : vector<128x256xi1>, vector<128x256xf32>
    %75 = arith.addf %66, %74 : vector<128x256xf32>
    %76 = vector.extract_strided_slice %0 {offsets = [0, 8], sizes = [128, 1], strides = [1, 1]} : vector<128x16xi32> to vector<128x1xi32>
    %77 = vector.broadcast %76 : vector<128x1xi32> to vector<128x256xi32>
    %78 = arith.cmpi eq, %77, %2 : vector<128x256xi32>
    %79 = vector.extract_strided_slice %1 {offsets = [0, 8], sizes = [128, 1], strides = [1, 1]} : vector<128x16xf32> to vector<128x1xf32>
    %cst_11 = arith.constant 0.000000e+00 : f32
    %80 = vector.shape_cast %79 : vector<128x1xf32> to vector<128x1xf32>
    %81 = vector.broadcast %80 : vector<128x1xf32> to vector<128x256xf32>
    %82 = vector.broadcast %cst_11 : f32 to vector<128x256xf32>
    %83 = arith.select %78, %81, %82 : vector<128x256xi1>, vector<128x256xf32>
    %84 = arith.addf %75, %83 : vector<128x256xf32>
    %85 = vector.extract_strided_slice %0 {offsets = [0, 9], sizes = [128, 1], strides = [1, 1]} : vector<128x16xi32> to vector<128x1xi32>
    %86 = vector.broadcast %85 : vector<128x1xi32> to vector<128x256xi32>
    %87 = arith.cmpi eq, %86, %2 : vector<128x256xi32>
    %88 = vector.extract_strided_slice %1 {offsets = [0, 9], sizes = [128, 1], strides = [1, 1]} : vector<128x16xf32> to vector<128x1xf32>
    %cst_12 = arith.constant 0.000000e+00 : f32
    %89 = vector.shape_cast %88 : vector<128x1xf32> to vector<128x1xf32>
    %90 = vector.broadcast %89 : vector<128x1xf32> to vector<128x256xf32>
    %91 = vector.broadcast %cst_12 : f32 to vector<128x256xf32>
    %92 = arith.select %87, %90, %91 : vector<128x256xi1>, vector<128x256xf32>
    %93 = arith.addf %84, %92 : vector<128x256xf32>
    %94 = vector.extract_strided_slice %0 {offsets = [0, 10], sizes = [128, 1], strides = [1, 1]} : vector<128x16xi32> to vector<128x1xi32>
    %95 = vector.broadcast %94 : vector<128x1xi32> to vector<128x256xi32>
    %96 = arith.cmpi eq, %95, %2 : vector<128x256xi32>
    %97 = vector.extract_strided_slice %1 {offsets = [0, 10], sizes = [128, 1], strides = [1, 1]} : vector<128x16xf32> to vector<128x1xf32>
    %cst_13 = arith.constant 0.000000e+00 : f32
    %98 = vector.shape_cast %97 : vector<128x1xf32> to vector<128x1xf32>
    %99 = vector.broadcast %98 : vector<128x1xf32> to vector<128x256xf32>
    %100 = vector.broadcast %cst_13 : f32 to vector<128x256xf32>
    %101 = arith.select %96, %99, %100 : vector<128x256xi1>, vector<128x256xf32>
    %102 = arith.addf %93, %101 : vector<128x256xf32>
    %103 = vector.extract_strided_slice %0 {offsets = [0, 11], sizes = [128, 1], strides = [1, 1]} : vector<128x16xi32> to vector<128x1xi32>
    %104 = vector.broadcast %103 : vector<128x1xi32> to vector<128x256xi32>
    %105 = arith.cmpi eq, %104, %2 : vector<128x256xi32>
    %106 = vector.extract_strided_slice %1 {offsets = [0, 11], sizes = [128, 1], strides = [1, 1]} : vector<128x16xf32> to vector<128x1xf32>
    %cst_14 = arith.constant 0.000000e+00 : f32
    %107 = vector.shape_cast %106 : vector<128x1xf32> to vector<128x1xf32>
    %108 = vector.broadcast %107 : vector<128x1xf32> to vector<128x256xf32>
    %109 = vector.broadcast %cst_14 : f32 to vector<128x256xf32>
    %110 = arith.select %105, %108, %109 : vector<128x256xi1>, vector<128x256xf32>
    %111 = arith.addf %102, %110 : vector<128x256xf32>
    %112 = vector.extract_strided_slice %0 {offsets = [0, 12], sizes = [128, 1], strides = [1, 1]} : vector<128x16xi32> to vector<128x1xi32>
    %113 = vector.broadcast %112 : vector<128x1xi32> to vector<128x256xi32>
    %114 = arith.cmpi eq, %113, %2 : vector<128x256xi32>
    %115 = vector.extract_strided_slice %1 {offsets = [0, 12], sizes = [128, 1], strides = [1, 1]} : vector<128x16xf32> to vector<128x1xf32>
    %cst_15 = arith.constant 0.000000e+00 : f32
    %116 = vector.shape_cast %115 : vector<128x1xf32> to vector<128x1xf32>
    %117 = vector.broadcast %116 : vector<128x1xf32> to vector<128x256xf32>
    %118 = vector.broadcast %cst_15 : f32 to vector<128x256xf32>
    %119 = arith.select %114, %117, %118 : vector<128x256xi1>, vector<128x256xf32>
    %120 = arith.addf %111, %119 : vector<128x256xf32>
    %121 = vector.extract_strided_slice %0 {offsets = [0, 13], sizes = [128, 1], strides = [1, 1]} : vector<128x16xi32> to vector<128x1xi32>
    %122 = vector.broadcast %121 : vector<128x1xi32> to vector<128x256xi32>
    %123 = arith.cmpi eq, %122, %2 : vector<128x256xi32>
    %124 = vector.extract_strided_slice %1 {offsets = [0, 13], sizes = [128, 1], strides = [1, 1]} : vector<128x16xf32> to vector<128x1xf32>
    %cst_16 = arith.constant 0.000000e+00 : f32
    %125 = vector.shape_cast %124 : vector<128x1xf32> to vector<128x1xf32>
    %126 = vector.broadcast %125 : vector<128x1xf32> to vector<128x256xf32>
    %127 = vector.broadcast %cst_16 : f32 to vector<128x256xf32>
    %128 = arith.select %123, %126, %127 : vector<128x256xi1>, vector<128x256xf32>
    %129 = arith.addf %120, %128 : vector<128x256xf32>
    %130 = vector.extract_strided_slice %0 {offsets = [0, 14], sizes = [128, 1], strides = [1, 1]} : vector<128x16xi32> to vector<128x1xi32>
    %131 = vector.broadcast %130 : vector<128x1xi32> to vector<128x256xi32>
    %132 = arith.cmpi eq, %131, %2 : vector<128x256xi32>
    %133 = vector.extract_strided_slice %1 {offsets = [0, 14], sizes = [128, 1], strides = [1, 1]} : vector<128x16xf32> to vector<128x1xf32>
    %cst_17 = arith.constant 0.000000e+00 : f32
    %134 = vector.shape_cast %133 : vector<128x1xf32> to vector<128x1xf32>
    %135 = vector.broadcast %134 : vector<128x1xf32> to vector<128x256xf32>
    %136 = vector.broadcast %cst_17 : f32 to vector<128x256xf32>
    %137 = arith.select %132, %135, %136 : vector<128x256xi1>, vector<128x256xf32>
    %138 = arith.addf %129, %137 : vector<128x256xf32>
    %139 = vector.extract_strided_slice %0 {offsets = [0, 15], sizes = [128, 1], strides = [1, 1]} : vector<128x16xi32> to vector<128x1xi32>
    %140 = vector.broadcast %139 : vector<128x1xi32> to vector<128x256xi32>
    %141 = arith.cmpi eq, %140, %2 : vector<128x256xi32>
    %142 = vector.extract_strided_slice %1 {offsets = [0, 15], sizes = [128, 1], strides = [1, 1]} : vector<128x16xf32> to vector<128x1xf32>
    %cst_18 = arith.constant 0.000000e+00 : f32
    %143 = vector.shape_cast %142 : vector<128x1xf32> to vector<128x1xf32>
    %144 = vector.broadcast %143 : vector<128x1xf32> to vector<128x256xf32>
    %145 = vector.broadcast %cst_18 : f32 to vector<128x256xf32>
    %146 = arith.select %141, %144, %145 : vector<128x256xi1>, vector<128x256xf32>
    %147 = arith.addf %138, %146 : vector<128x256xf32>
    %c0_19 = arith.constant 0 : index
    %c0_20 = arith.constant 0 : index
    %148 = vector.load %arg3[%c0_19, %c0_20] : memref<256x256xf32, #tpu.memory_space<vmem>>, vector<256x256xf32>
    %cst_21 = arith.constant dense<0.000000e+00> : vector<128x256xf32>
    %149 = tpu.matmul %147, %148, %cst_21 {dimension_numbers = #tpu.dot_dimension_numbers<[1], [0], [0], [1], [0, 0, 1, 1], [], []>} : vector<128x256xf32>, vector<256x256xf32>, vector<128x256xf32> -> vector<128x256xf32>
    %c0_22 = arith.constant 0 : index
    %c0_23 = arith.constant 0 : index
    %150 = vector.load %arg5[%c0_22, %c0_23] : memref<128x256xf32, #tpu.memory_space<vmem>>, vector<128x256xf32>
    tpu.vector_store %arg5[%c0_22, %c0_23], %149 {strides = array<i32>} : memref<128x256xf32, #tpu.memory_space<vmem>>, vector<128x256xf32>,
    %c0_24 = arith.constant 0 : index
    %c0_25 = arith.constant 0 : index
    %151 = vector.load %arg5[%c0_24, %c0_25] : memref<128x256xf32, #tpu.memory_space<vmem>>, vector<128x256xf32>
    %cst_26 = arith.constant dense<0.000000e+00> : vector<128x128xf32>
    %152 = tpu.matmul %151, %151, %cst_26 {dimension_numbers = #tpu.dot_dimension_numbers<[1], [1], [0], [0], [0, 0, 1, 0], [], []>} : vector<128x256xf32>, vector<128x256xf32>, vector<128x128xf32> -> vector<128x128xf32>
    %153 = tpu.iota {dimensions = array<i32: 0>} : vector<128x128xi32>
    %154 = tpu.iota {dimensions = array<i32: 1>} : vector<128x128xi32>
    %155 = arith.cmpi eq, %153, %154 : vector<128x128xi32>
    %cst_27 = arith.constant 1.000000e-03 : f32
    %cst_28 = arith.constant 0.000000e+00 : f32
    %156 = vector.broadcast %cst_27 : f32 to vector<128x128xf32>
    %157 = vector.broadcast %cst_28 : f32 to vector<128x128xf32>
    %158 = arith.select %155, %156, %157 : vector<128x128xi1>, vector<128x128xf32>
    %159 = arith.addf %152, %158 : vector<128x128xf32>
    %c0_29 = arith.constant 0 : index
    %c0_30 = arith.constant 0 : index
    %160 = vector.load %arg4[%c0_29, %c0_30] : memref<128x128xf32, #tpu.memory_space<vmem>>, vector<128x128xf32>
    tpu.vector_store %arg4[%c0_29, %c0_30], %159 {strides = array<i32>} : memref<128x128xf32, #tpu.memory_space<vmem>>, vector<128x128xf32>,
    return
  }
  func.func @transform_0(%arg0: i32) -> (i32, i32) {
    %c0_i32 = arith.constant 0 : i32
    %c0_i32_0 = arith.constant 0 : i32
    %c0_i32_1 = arith.constant 0 : i32
    return %c0_i32, %c0_i32_0 : i32, i32
  }
  func.func @transform_1(%arg0: i32) -> (i32, i32) {
    %c0_i32 = arith.constant 0 : i32
    %c0_i32_0 = arith.constant 0 : i32
    %c0_i32_1 = arith.constant 0 : i32
    return %c0_i32, %c0_i32_0 : i32, i32
  }
  func.func @transform_2(%arg0: i32) -> (i32, i32) {
    %c0_i32 = arith.constant 0 : i32
    %c0_i32_0 = arith.constant 0 : i32
    %c0_i32_1 = arith.constant 0 : i32
    return %c0_i32, %c0_i32_0 : i32, i32
  }
  func.func @transform_3(%arg0: i32) -> (i32, i32) {
    %c0_i32 = arith.constant 0 : i32
    %c0_i32_0 = arith.constant 0 : i32
    %c0_i32_1 = arith.constant 0 : i32
    return %c0_i32, %c0_i32_0 : i32, i32
  }
}

</mosaic_0001>

<llo_original>
// kernel: tpu_custom_call.1
$region0: #{tpu_custom_call.1}
  #allocation0 [shape = 'u32[]', space=smem, size = 0x4, offset = 0x4, fixed_abs, tag = 'smem constant byte address 0x4 - core index']
  #allocation1 [shape = 'u32[72,128]{1,0:T(1,128)}', space=vmem, size = 0x9000, scoped, tag = 'internal scratch']
  #allocation2 [shape = 'f32[128,256]{1,0:T(8,128)}', space=vmem, size = 0x20000, scoped, tag = 'scratch operand']
  %s0 = inlined_call_operand.vmem [shape: s32[128,16], index: 0, kind: input, shape index: {}]
  %s1 = inlined_call_operand.vmem [shape: f32[128,16], index: 1, kind: input, shape index: {}]
  %s2 = inlined_call_operand.hbm [shape: f32[256,256], index: 2, kind: input, shape index: {}]
  %s3 = inlined_call_operand.hbm [shape: f32[128,128], index: 3, kind: output, shape index: {}]
  %s4 = sld [smem:[#allocation0]]
  $region26: #{tpu_custom_call.1} parent=0
    _
  %s6 = ssub.s32 1, %s4
  %s7 = scalar_select 0, %s6, %s4
  $region1: #{tpu_custom_call.1} parent=0
    #allocation3 [shape = 'u8[262144]{0}', space=vmem, size = 0x40000, scoped, tag = 'input window, operand 2, single buffered']
    #allocation4 [shape = 's32[1]{0}', space=sflag, size = 0x4, scoped, tag = 'scoped memory for tpu_custom_call.1']
    #allocation5 [shape = 's32[1]{0}', space=sflag, size = 0x4, scoped, tag = 'scoped memory for tpu_custom_call.1']
    #allocation6 [shape = 'u8[65536]{0}', space=vmem, size = 0x10000, scoped, tag = 'output window, operand 0, single buffered']
    %8 = vsyncpa [#allocation4], 0
    %9 = vsyncpa [#allocation5], 0
    // Predicated region
    $region2: #{tpu_custom_call.1} parent=1 // pred_check
      _
    $region3: #{tpu_custom_call.1} parent=1 // pred_check_branch
      %11 = sbr.rel (0) target = $region5
    $region4: #{tpu_custom_call.1} parent=1 // pred_region
      _
    $region5: #{tpu_custom_call.1} parent=1 // pred_fallthru
      _
    // Predicated region
    $region6: #{tpu_custom_call.1} parent=1 // pred_check
      _
    $region7: #{tpu_custom_call.1} parent=1 // pred_check_branch
      %13 = sbr.rel (0) target = $region9
    $region8: #{tpu_custom_call.1} parent=1 // pred_region
      _
    $region9: #{tpu_custom_call.1} parent=1 // pred_fallthru
      _
    // Predicated region
    $region10: #{tpu_custom_call.1} parent=1 // pred_check
      _
    $region11: #{tpu_custom_call.1} parent=1 // pred_check_branch
      %15 = sbr.rel (0) target = $region13
    $region12: #{tpu_custom_call.1} parent=1 // pred_region
      %17 = vsyncadd [#allocation4], 0
      %s18 = sshll.u32 %s2, 4
      %s19 = int_to_ptr.hbm [resolvable:$true] %s18
      %s20 = sshll.u32 [#allocation3], 4
      %s21 = int_to_ptr.vmem [resolvable:$true] %s20
      %26 = dma.hbm_to_vmem [thread:$0]  %s19, 8192, %s21, [#allocation4], 256, 256, 16
    $region13: #{tpu_custom_call.1} parent=1 // pred_fallthru
      _
    // Predicated region
    $region14: #{tpu_custom_call.1} parent=1 // pred_check
      _
    $region15: #{tpu_custom_call.1} parent=1 // pred_check_branch
      %28 = sbr.rel (0) target = $region17
    $region16: #{tpu_custom_call.1} parent=1 // pred_region
      %30 = dma.done [#allocation4], 8192
    $region17: #{tpu_custom_call.1} parent=1 // pred_fallthru
      _
    %v31 = vld [vmem:[%s0] sm:$0xff]
    %v32 = vld [vmem:[%s0 + $0x8] sm:$0xff]
    %v33 = vld [vmem:[%s0 + $0x10] sm:$0xff]
    %v34 = vld [vmem:[%s0 + $0x18] sm:$0xff]
    %v35 = vld [vmem:[%s0 + $0x20] sm:$0xff]
    %v36 = vld [vmem:[%s0 + $0x28] sm:$0xff]
    %v37 = vld [vmem:[%s0 + $0x30] sm:$0xff]
    %v38 = vld [vmem:[%s0 + $0x38] sm:$0xff]
    %v39 = vld [vmem:[%s0 + $0x40] sm:$0xff]
    %v40 = vld [vmem:[%s0 + $0x48] sm:$0xff]
    %v41 = vld [vmem:[%s0 + $0x50] sm:$0xff]
    %v42 = vld [vmem:[%s0 + $0x58] sm:$0xff]
    %v43 = vld [vmem:[%s0 + $0x60] sm:$0xff]
    %v44 = vld [vmem:[%s0 + $0x68] sm:$0xff]
    %v45 = vld [vmem:[%s0 + $0x70] sm:$0xff]
    %v46 = vld [vmem:[%s0 + $0x78] sm:$0xff]
    %v47 = vld [vmem:[%s1] sm:$0xff]
    %v48 = vld [vmem:[%s1 + $0x8] sm:$0xff]
    %v49 = vld [vmem:[%s1 + $0x10] sm:$0xff]
    %v50 = vld [vmem:[%s1 + $0x18] sm:$0xff]
    %v51 = vld [vmem:[%s1 + $0x20] sm:$0xff]
    %v52 = vld [vmem:[%s1 + $0x28] sm:$0xff]
    %v53 = vld [vmem:[%s1 + $0x30] sm:$0xff]
    %v54 = vld [vmem:[%s1 + $0x38] sm:$0xff]
    %v55 = vld [vmem:[%s1 + $0x40] sm:$0xff]
    %v56 = vld [vmem:[%s1 + $0x48] sm:$0xff]
    %v57 = vld [vmem:[%s1 + $0x50] sm:$0xff]
    %v58 = vld [vmem:[%s1 + $0x58] sm:$0xff]
    %v59 = vld [vmem:[%s1 + $0x60] sm:$0xff]
    %v60 = vld [vmem:[%s1 + $0x68] sm:$0xff]
    %v61 = vld [vmem:[%s1 + $0x70] sm:$0xff]
    %v62 = vld [vmem:[%s1 + $0x78] sm:$0xff]
    %v63 = vlaneseq
    %v64 = vand.u32 %v63, 127
    %v65 = vadd.s32 %v64, 128
    %66 = vset.pattern.permute.xlu0 0
    %67 = vperm.xlu0 %66, %v31
    %v68 = vpop.permute.xlu0 %67
    %69 = vset.pattern.permute.xlu0 0
    %70 = vperm.xlu0 %69, %v32
    %v71 = vpop.permute.xlu0 %70
    %72 = vset.pattern.permute.xlu0 0
    %73 = vperm.xlu0 %72, %v33
    %v74 = vpop.permute.xlu0 %73
    %75 = vset.pattern.permute.xlu0 0
    %76 = vperm.xlu0 %75, %v34
    %v77 = vpop.permute.xlu0 %76
    %78 = vset.pattern.permute.xlu0 0
    %79 = vperm.xlu0 %78, %v35
    %v80 = vpop.permute.xlu0 %79
    %81 = vset.pattern.permute.xlu0 0
    %82 = vperm.xlu0 %81, %v36
    %v83 = vpop.permute.xlu0 %82
    %84 = vset.pattern.permute.xlu0 0
    %85 = vperm.xlu0 %84, %v37
    %v86 = vpop.permute.xlu0 %85
    %87 = vset.pattern.permute.xlu0 0
    %88 = vperm.xlu0 %87, %v38
    %v89 = vpop.permute.xlu0 %88
    %90 = vset.pattern.permute.xlu0 0
    %91 = vperm.xlu0 %90, %v39
    %v92 = vpop.permute.xlu0 %91
    %93 = vset.pattern.permute.xlu0 0
    %94 = vperm.xlu0 %93, %v40
    %v95 = vpop.permute.xlu0 %94
    %96 = vset.pattern.permute.xlu0 0
    %97 = vperm.xlu0 %96, %v41
    %v98 = vpop.permute.xlu0 %97
    %99 = vset.pattern.permute.xlu0 0
    %100 = vperm.xlu0 %99, %v42
    %v101 = vpop.permute.xlu0 %100
    %102 = vset.pattern.permute.xlu0 0
    %103 = vperm.xlu0 %102, %v43
    %v104 = vpop.permute.xlu0 %103
    %105 = vset.pattern.permute.xlu0 0
    %106 = vperm.xlu0 %105, %v44
    %v107 = vpop.permute.xlu0 %106
    %108 = vset.pattern.permute.xlu0 0
    %109 = vperm.xlu0 %108, %v45
    %v110 = vpop.permute.xlu0 %109
    %111 = vset.pattern.permute.xlu0 0
    %112 = vperm.xlu0 %111, %v46
    %v113 = vpop.permute.xlu0 %112
    %vm114 = vcmp.eq.s32.totalorder %v68, %v64
    %vm115 = vcmp.eq.s32.totalorder %v68, %v65
    %vm116 = vcmp.eq.s32.totalorder %v71, %v64
    %vm117 = vcmp.eq.s32.totalorder %v71, %v65
    %vm118 = vcmp.eq.s32.totalorder %v74, %v64
    %vm119 = vcmp.eq.s32.totalorder %v74, %v65
    %vm120 = vcmp.eq.s32.totalorder %v77, %v64
    %vm121 = vcmp.eq.s32.totalorder %v77, %v65
    %vm122 = vcmp.eq.s32.totalorder %v80, %v64
    %vm123 = vcmp.eq.s32.totalorder %v80, %v65
    %vm124 = vcmp.eq.s32.totalorder %v83, %v64
    %vm125 = vcmp.eq.s32.totalorder %v83, %v65
    %vm126 = vcmp.eq.s32.totalorder %v86, %v64
    %vm127 = vcmp.eq.s32.totalorder %v86, %v65
    %vm128 = vcmp.eq.s32.totalorder %v89, %v64
    %vm129 = vcmp.eq.s32.totalorder %v89, %v65
    %vm130 = vcmp.eq.s32.totalorder %v92, %v64
    %vm131 = vcmp.eq.s32.totalorder %v92, %v65
    %vm132 = vcmp.eq.s32.totalorder %v95, %v64
    %vm133 = vcmp.eq.s32.totalorder %v95, %v65
    %vm134 = vcmp.eq.s32.totalorder %v98, %v64
    %vm135 = vcmp.eq.s32.totalorder %v98, %v65
    %vm136 = vcmp.eq.s32.totalorder %v101, %v64
    %vm137 = vcmp.eq.s32.totalorder %v101, %v65
    %vm138 = vcmp.eq.s32.totalorder %v104, %v64
    %vm139 = vcmp.eq.s32.totalorder %v104, %v65
    %vm140 = vcmp.eq.s32.totalorder %v107, %v64
    %vm141 = vcmp.eq.s32.totalorder %v107, %v65
    %vm142 = vcmp.eq.s32.totalorder %v110, %v64
    %vm143 = vcmp.eq.s32.totalorder %v110, %v65
    %vm144 = vcmp.eq.s32.totalorder %v113, %v64
    %vm145 = vcmp.eq.s32.totalorder %v113, %v65
    %147 = vset.pattern.permute.xlu0 0
    %148 = vperm.xlu0 %147, %v47
    %v149 = vpop.permute.xlu0 %148
    %152 = vset.pattern.permute.xlu0 0
    %153 = vperm.xlu0 %152, %v48
    %v154 = vpop.permute.xlu0 %153
    %157 = vset.pattern.permute.xlu0 0
    %158 = vperm.xlu0 %157, %v49
    %v159 = vpop.permute.xlu0 %158
    %162 = vset.pattern.permute.xlu0 0
    %163 = vperm.xlu0 %162, %v50
    %v164 = vpop.permute.xlu0 %163
    %167 = vset.pattern.permute.xlu0 0
    %168 = vperm.xlu0 %167, %v51
    %v169 = vpop.permute.xlu0 %168
    %172 = vset.pattern.permute.xlu0 0
    %173 = vperm.xlu0 %172, %v52
    %v174 = vpop.permute.xlu0 %173
    %177 = vset.pattern.permute.xlu0 0
    %178 = vperm.xlu0 %177, %v53
    %v179 = vpop.permute.xlu0 %178
    %182 = vset.pattern.permute.xlu0 0
    %183 = vperm.xlu0 %182, %v54
    %v184 = vpop.permute.xlu0 %183
    %187 = vset.pattern.permute.xlu0 0
    %188 = vperm.xlu0 %187, %v55
    %v189 = vpop.permute.xlu0 %188
    %192 = vset.pattern.permute.xlu0 0
    %193 = vperm.xlu0 %192, %v56
    %v194 = vpop.permute.xlu0 %193
    %197 = vset.pattern.permute.xlu0 0
    %198 = vperm.xlu0 %197, %v57
    %v199 = vpop.permute.xlu0 %198
    %202 = vset.pattern.permute.xlu0 0
    %203 = vperm.xlu0 %202, %v58
    %v204 = vpop.permute.xlu0 %203
    %207 = vset.pattern.permute.xlu0 0
    %208 = vperm.xlu0 %207, %v59
    %v209 = vpop.permute.xlu0 %208
    %212 = vset.pattern.permute.xlu0 0
    %213 = vperm.xlu0 %212, %v60
    %v214 = vpop.permute.xlu0 %213
    %217 = vset.pattern.permute.xlu0 0
    %218 = vperm.xlu0 %217, %v61
    %v219 = vpop.permute.xlu0 %218
    %222 = vset.pattern.permute.xlu0 0
    %223 = vperm.xlu0 %222, %v62
    %v224 = vpop.permute.xlu0 %223
    %v226 = vsel %vm114, %v149, 0.0
    %v227 = vsel %vm115, %v149, 0.0
    %v228 = vsel %vm116, %v154, 0.0
    %v229 = vsel %vm117, %v154, 0.0
    %v230 = vsel %vm118, %v159, 0.0
    %v231 = vsel %vm119, %v159, 0.0
    %v232 = vsel %vm120, %v164, 0.0
    %v233 = vsel %vm121, %v164, 0.0
    %v234 = vsel %vm122, %v169, 0.0
    %v235 = vsel %vm123, %v169, 0.0
    %v236 = vsel %vm124, %v174, 0.0
    %v237 = vsel %vm125, %v174, 0.0
    %v238 = vsel %vm126, %v179, 0.0
    %v239 = vsel %vm127, %v179, 0.0
    %v240 = vsel %vm128, %v184, 0.0
    %v241 = vsel %vm129, %v184, 0.0
    %v242 = vsel %vm130, %v189, 0.0
    %v243 = vsel %vm131, %v189, 0.0
    %v244 = vsel %vm132, %v194, 0.0
    %v245 = vsel %vm133, %v194, 0.0
    %v246 = vsel %vm134, %v199, 0.0
    %v247 = vsel %vm135, %v199, 0.0
    %v248 = vsel %vm136, %v204, 0.0
    %v249 = vsel %vm137, %v204, 0.0
    %v250 = vsel %vm138, %v209, 0.0
    %v251 = vsel %vm139, %v209, 0.0
    %v252 = vsel %vm140, %v214, 0.0
    %v253 = vsel %vm141, %v214, 0.0
    %v254 = vsel %vm142, %v219, 0.0
    %v255 = vsel %vm143, %v219, 0.0
    %v256 = vsel %vm144, %v224, 0.0
    %v257 = vsel %vm145, %v224, 0.0
    %v258 = vadd.f32 %v226, 0.0
    %v259 = vadd.f32 %v227, 0.0
    %v260 = vadd.f32 %v228, 0.0
    %v261 = vadd.f32 %v229, 0.0
    %v262 = vadd.f32 %v230, 0.0
    %v263 = vadd.f32 %v231, 0.0
    %v264 = vadd.f32 %v232, 0.0
    %v265 = vadd.f32 %v233, 0.0
    %v266 = vadd.f32 %v234, 0.0
    %v267 = vadd.f32 %v235, 0.0
    %v268 = vadd.f32 %v236, 0.0
    %v269 = vadd.f32 %v237, 0.0
    %v270 = vadd.f32 %v238, 0.0
    %v271 = vadd.f32 %v239, 0.0
    %v272 = vadd.f32 %v240, 0.0
    %v273 = vadd.f32 %v241, 0.0
    %v274 = vadd.f32 %v242, 0.0
    %v275 = vadd.f32 %v243, 0.0
    %v276 = vadd.f32 %v244, 0.0
    %v277 = vadd.f32 %v245, 0.0
    %v278 = vadd.f32 %v246, 0.0
    %v279 = vadd.f32 %v247, 0.0
    %v280 = vadd.f32 %v248, 0.0
    %v281 = vadd.f32 %v249, 0.0
    %v282 = vadd.f32 %v250, 0.0
    %v283 = vadd.f32 %v251, 0.0
    %v284 = vadd.f32 %v252, 0.0
    %v285 = vadd.f32 %v253, 0.0
    %v286 = vadd.f32 %v254, 0.0
    %v287 = vadd.f32 %v255, 0.0
    %v288 = vadd.f32 %v256, 0.0
    %v289 = vadd.f32 %v257, 0.0
    %290 = vset.pattern.permute.xlu0 1
    %291 = vperm.xlu0 %290, %v31
    %v292 = vpop.permute.xlu0 %291
    %293 = vset.pattern.permute.xlu0 1
    %294 = vperm.xlu0 %293, %v32
    %v295 = vpop.permute.xlu0 %294
    %296 = vset.pattern.permute.xlu0 1
    %297 = vperm.xlu0 %296, %v33
    %v298 = vpop.permute.xlu0 %297
    %299 = vset.pattern.permute.xlu0 1
    %300 = vperm.xlu0 %299, %v34
    %v301 = vpop.permute.xlu0 %300
    %302 = vset.pattern.permute.xlu0 1
    %303 = vperm.xlu0 %302, %v35
    %v304 = vpop.permute.xlu0 %303
    %305 = vset.pattern.permute.xlu0 1
    %306 = vperm.xlu0 %305, %v36
    %v307 = vpop.permute.xlu0 %306
    %308 = vset.pattern.permute.xlu0 1
    %309 = vperm.xlu0 %308, %v37
    %v310 = vpop.permute.xlu0 %309
    %311 = vset.pattern.permute.xlu0 1
    %312 = vperm.xlu0 %311, %v38
    %v313 = vpop.permute.xlu0 %312
    %314 = vset.pattern.permute.xlu0 1
    %315 = vperm.xlu0 %314, %v39
    %v316 = vpop.permute.xlu0 %315
    %317 = vset.pattern.permute.xlu0 1
    %318 = vperm.xlu0 %317, %v40
    %v319 = vpop.permute.xlu0 %318
    %320 = vset.pattern.permute.xlu0 1
    %321 = vperm.xlu0 %320, %v41
    %v322 = vpop.permute.xlu0 %321
    %323 = vset.pattern.permute.xlu0 1
    %324 = vperm.xlu0 %323, %v42
    %v325 = vpop.permute.xlu0 %324
    %326 = vset.pattern.permute.xlu0 1
    %327 = vperm.xlu0 %326, %v43
    %v328 = vpop.permute.xlu0 %327
    %329 = vset.pattern.permute.xlu0 1
    %330 = vperm.xlu0 %329, %v44
    %v331 = vpop.permute.xlu0 %330
    %332 = vset.pattern.permute.xlu0 1
    %333 = vperm.xlu0 %332, %v45
    %v334 = vpop.permute.xlu0 %333
    %335 = vset.pattern.permute.xlu0 1
    %336 = vperm.xlu0 %335, %v46
    %v337 = vpop.permute.xlu0 %336
    %vm338 = vcmp.eq.s32.totalorder %v292, %v64
    %vm339 = vcmp.eq.s32.totalorder %v292, %v65
    %vm340 = vcmp.eq.s32.totalorder %v295, %v64
    %vm341 = vcmp.eq.s32.totalorder %v295, %v65
    %vm342 = vcmp.eq.s32.totalorder %v298, %v64
    %vm343 = vcmp.eq.s32.totalorder %v298, %v65
    %vm344 = vcmp.eq.s32.totalorder %v301, %v64
    %vm345 = vcmp.eq.s32.totalorder %v301, %v65
    %vm346 = vcmp.eq.s32.totalorder %v304, %v64
    %vm347 = vcmp.eq.s32.totalorder %v304, %v65
    %vm348 = vcmp.eq.s32.totalorder %v307, %v64
    %vm349 = vcmp.eq.s32.totalorder %v307, %v65
    %vm350 = vcmp.eq.s32.totalorder %v310, %v64
    %vm351 = vcmp.eq.s32.totalorder %v310, %v65
    %vm352 = vcmp.eq.s32.totalorder %v313, %v64
    %vm353 = vcmp.eq.s32.totalorder %v313, %v65
    %vm354 = vcmp.eq.s32.totalorder %v316, %v64
    %vm355 = vcmp.eq.s32.totalorder %v316, %v65
    %vm356 = vcmp.eq.s32.totalorder %v319, %v64
    %vm357 = vcmp.eq.s32.totalorder %v319, %v65
    %vm358 = vcmp.eq.s32.totalorder %v322, %v64
    %vm359 = vcmp.eq.s32.totalorder %v322, %v65
    %vm360 = vcmp.eq.s32.totalorder %v325, %v64
    %vm361 = vcmp.eq.s32.totalorder %v325, %v65
    %vm362 = vcmp.eq.s32.totalorder %v328, %v64
    %vm363 = vcmp.eq.s32.totalorder %v328, %v65
    %vm364 = vcmp.eq.s32.totalorder %v331, %v64
    %vm365 = vcmp.eq.s32.totalorder %v331, %v65
    %vm366 = vcmp.eq.s32.totalorder %v334, %v64
    %vm367 = vcmp.eq.s32.totalorder %v334, %v65
    %vm368 = vcmp.eq.s32.totalorder %v337, %v64
    %vm369 = vcmp.eq.s32.totalorder %v337, %v65
    %370 = vset.pattern.permute.xlu0 1
    %371 = vperm.xlu0 %370, %v47
    %v372 = vpop.permute.xlu0 %371
    %374 = vset.pattern.permute.xlu0 1
    %375 = vperm.xlu0 %374, %v48
    %v376 = vpop.permute.xlu0 %375
    %378 = vset.pattern.permute.xlu0 1
    %379 = vperm.xlu0 %378, %v49
    %v380 = vpop.permute.xlu0 %379
    %382 = vset.pattern.permute.xlu0 1
    %383 = vperm.xlu0 %382, %v50
    %v384 = vpop.permute.xlu0 %383
    %386 = vset.pattern.permute.xlu0 1
    %387 = vperm.xlu0 %386, %v51
    %v388 = vpop.permute.xlu0 %387
    %390 = vset.pattern.permute.xlu0 1
    %391 = vperm.xlu0 %390, %v52
    %v392 = vpop.permute.xlu0 %391
    %394 = vset.pattern.permute.xlu0 1
    %395 = vperm.xlu0 %394, %v53
    %v396 = vpop.permute.xlu0 %395
    %398 = vset.pattern.permute.xlu0 1
    %399 = vperm.xlu0 %398, %v54
    %v400 = vpop.permute.xlu0 %399
    %402 = vset.pattern.permute.xlu0 1
    %403 = vperm.xlu0 %402, %v55
    %v404 = vpop.permute.xlu0 %403
    %406 = vset.pattern.permute.xlu0 1
    %407 = vperm.xlu0 %406, %v56
    %v408 = vpop.permute.xlu0 %407
    %410 = vset.pattern.permute.xlu0 1
    %411 = vperm.xlu0 %410, %v57
    %v412 = vpop.permute.xlu0 %411
    %414 = vset.pattern.permute.xlu0 1
    %415 = vperm.xlu0 %414, %v58
    %v416 = vpop.permute.xlu0 %415
    %418 = vset.pattern.permute.xlu0 1
    %419 = vperm.xlu0 %418, %v59
    %v420 = vpop.permute.xlu0 %419
    %422 = vset.pattern.permute.xlu0 1
    %423 = vperm.xlu0 %422, %v60
    %v424 = vpop.permute.xlu0 %423
    %426 = vset.pattern.permute.xlu0 1
    %427 = vperm.xlu0 %426, %v61
    %v428 = vpop.permute.xlu0 %427
    %430 = vset.pattern.permute.xlu0 1
    %431 = vperm.xlu0 %430, %v62
    %v432 = vpop.permute.xlu0 %431
    %v434 = vsel %vm338, %v372, 0.0
    %v435 = vsel %vm339, %v372, 0.0
    %v436 = vsel %vm340, %v376, 0.0
    %v437 = vsel %vm341, %v376, 0.0
    %v438 = vsel %vm342, %v380, 0.0
    %v439 = vsel %vm343, %v380, 0.0
    %v440 = vsel %vm344, %v384, 0.0
    %v441 = vsel %vm345, %v384, 0.0
    %v442 = vsel %vm346, %v388, 0.0
    %v443 = vsel %vm347, %v388, 0.0
    %v444 = vsel %vm348, %v392, 0.0
    %v445 = vsel %vm349, %v392, 0.0
    %v446 = vsel %vm350, %v396, 0.0
    %v447 = vsel %vm351, %v396, 0.0
    %v448 = vsel %vm352, %v400, 0.0
    %v449 = vsel %vm353, %v400, 0.0
    %v450 = vsel %vm354, %v404, 0.0
    %v451 = vsel %vm355, %v404, 0.0
    %v452 = vsel %vm356, %v408, 0.0
    %v453 = vsel %vm357, %v408, 0.0
    %v454 = vsel %vm358, %v412, 0.0
    %v455 = vsel %vm359, %v412, 0.0
    %v456 = vsel %vm360, %v416, 0.0
    %v457 = vsel %vm361, %v416, 0.0
    %v458 = vsel %vm362, %v420, 0.0
    %v459 = vsel %vm363, %v420, 0.0
    %v460 = vsel %vm364, %v424, 0.0
    %v461 = vsel %vm365, %v424, 0.0
    %v462 = vsel %vm366, %v428, 0.0
    %v463 = vsel %vm367, %v428, 0.0
    %v464 = vsel %vm368, %v432, 0.0
    %v465 = vsel %vm369, %v432, 0.0
    %v466 = vadd.f32 %v258, %v434
    %v467 = vadd.f32 %v259, %v435
    %v468 = vadd.f32 %v260, %v436
    %v469 = vadd.f32 %v261, %v437
    %v470 = vadd.f32 %v262, %v438
    %v471 = vadd.f32 %v263, %v439
    %v472 = vadd.f32 %v264, %v440
    %v473 = vadd.f32 %v265, %v441
    %v474 = vadd.f32 %v266, %v442
    %v475 = vadd.f32 %v267, %v443
    %v476 = vadd.f32 %v268, %v444
    %v477 = vadd.f32 %v269, %v445
    %v478 = vadd.f32 %v270, %v446
    %v479 = vadd.f32 %v271, %v447
    %v480 = vadd.f32 %v272, %v448
    %v481 = vadd.f32 %v273, %v449
    %v482 = vadd.f32 %v274, %v450
    %v483 = vadd.f32 %v275, %v451
    %v484 = vadd.f32 %v276, %v452
    %v485 = vadd.f32 %v277, %v453
    %v486 = vadd.f32 %v278, %v454
    %v487 = vadd.f32 %v279, %v455
    %v488 = vadd.f32 %v280, %v456
    %v489 = vadd.f32 %v281, %v457
    %v490 = vadd.f32 %v282, %v458
    %v491 = vadd.f32 %v283, %v459
    %v492 = vadd.f32 %v284, %v460
    %v493 = vadd.f32 %v285, %v461
    %v494 = vadd.f32 %v286, %v462
    %v495 = vadd.f32 %v287, %v463
    %v496 = vadd.f32 %v288, %v464
    %v497 = vadd.f32 %v289, %v465
    %498 = vset.pattern.permute.xlu0 2
    %499 = vperm.xlu0 %498, %v31
    %v500 = vpop.permute.xlu0 %499
    %501 = vset.pattern.permute.xlu0 2
    %502 = vperm.xlu0 %501, %v32
    %v503 = vpop.permute.xlu0 %502
    %504 = vset.pattern.permute.xlu0 2
    %505 = vperm.xlu0 %504, %v33
    %v506 = vpop.permute.xlu0 %505
    %507 = vset.pattern.permute.xlu0 2
    %508 = vperm.xlu0 %507, %v34
    %v509 = vpop.permute.xlu0 %508
    %510 = vset.pattern.permute.xlu0 2
    %511 = vperm.xlu0 %510, %v35
    %v512 = vpop.permute.xlu0 %511
    %513 = vset.pattern.permute.xlu0 2
    %514 = vperm.xlu0 %513, %v36
    %v515 = vpop.permute.xlu0 %514
    %516 = vset.pattern.permute.xlu0 2
    %517 = vperm.xlu0 %516, %v37
    %v518 = vpop.permute.xlu0 %517
    %519 = vset.pattern.permute.xlu0 2
    %520 = vperm.xlu0 %519, %v38
    %v521 = vpop.permute.xlu0 %520
    %522 = vset.pattern.permute.xlu0 2
    %523 = vperm.xlu0 %522, %v39
    %v524 = vpop.permute.xlu0 %523
    %525 = vset.pattern.permute.xlu0 2
    %526 = vperm.xlu0 %525, %v40
    %v527 = vpop.permute.xlu0 %526
    %528 = vset.pattern.permute.xlu0 2
    %529 = vperm.xlu0 %528, %v41
    %v530 = vpop.permute.xlu0 %529
    %531 = vset.pattern.permute.xlu0 2
    %532 = vperm.xlu0 %531, %v42
    %v533 = vpop.permute.xlu0 %532
    %534 = vset.pattern.permute.xlu0 2
    %535 = vperm.xlu0 %534, %v43
    %v536 = vpop.permute.xlu0 %535
    %537 = vset.pattern.permute.xlu0 2
    %538 = vperm.xlu0 %537, %v44
    %v539 = vpop.permute.xlu0 %538
    %540 = vset.pattern.permute.xlu0 2
    %541 = vperm.xlu0 %540, %v45
    %v542 = vpop.permute.xlu0 %541
    %543 = vset.pattern.permute.xlu0 2
    %544 = vperm.xlu0 %543, %v46
    %v545 = vpop.permute.xlu0 %544
    %vm546 = vcmp.eq.s32.totalorder %v500, %v64
    %vm547 = vcmp.eq.s32.totalorder %v500, %v65
    %vm548 = vcmp.eq.s32.totalorder %v503, %v64
    %vm549 = vcmp.eq.s32.totalorder %v503, %v65
    %vm550 = vcmp.eq.s32.totalorder %v506, %v64
    %vm551 = vcmp.eq.s32.totalorder %v506, %v65
    %vm552 = vcmp.eq.s32.totalorder %v509, %v64
    %vm553 = vcmp.eq.s32.totalorder %v509, %v65
    %vm554 = vcmp.eq.s32.totalorder %v512, %v64
    %vm555 = vcmp.eq.s32.totalorder %v512, %v65
    %vm556 = vcmp.eq.s32.totalorder %v515, %v64
    %vm557 = vcmp.eq.s32.totalorder %v515, %v65
    %vm558 = vcmp.eq.s32.totalorder %v518, %v64
    %vm559 = vcmp.eq.s32.totalorder %v518, %v65
    %vm560 = vcmp.eq.s32.totalorder %v521, %v64
    %vm561 = vcmp.eq.s32.totalorder %v521, %v65
    %vm562 = vcmp.eq.s32.totalorder %v524, %v64
    %vm563 = vcmp.eq.s32.totalorder %v524, %v65
    %vm564 = vcmp.eq.s32.totalorder %v527, %v64
    %vm565 = vcmp.eq.s32.totalorder %v527, %v65
    %vm566 = vcmp.eq.s32.totalorder %v530, %v64
    %vm567 = vcmp.eq.s32.totalorder %v530, %v65
    %vm568 = vcmp.eq.s32.totalorder %v533, %v64
    %vm569 = vcmp.eq.s32.totalorder %v533, %v65
    %vm570 = vcmp.eq.s32.totalorder %v536, %v64
    %vm571 = vcmp.eq.s32.totalorder %v536, %v65
    %vm572 = vcmp.eq.s32.totalorder %v539, %v64
    %vm573 = vcmp.eq.s32.totalorder %v539, %v65
    %vm574 = vcmp.eq.s32.totalorder %v542, %v64
    %vm575 = vcmp.eq.s32.totalorder %v542, %v65
    %vm576 = vcmp.eq.s32.totalorder %v545, %v64
    %vm577 = vcmp.eq.s32.totalorder %v545, %v65
    %578 = vset.pattern.permute.xlu0 2
    %579 = vperm.xlu0 %578, %v47
    %v580 = vpop.permute.xlu0 %579
    %582 = vset.pattern.permute.xlu0 2
    %583 = vperm.xlu0 %582, %v48
    %v584 = vpop.permute.xlu0 %583
    %586 = vset.pattern.permute.xlu0 2
    %587 = vperm.xlu0 %586, %v49
    %v588 = vpop.permute.xlu0 %587
    %590 = vset.pattern.permute.xlu0 2
    %591 = vperm.xlu0 %590, %v50
    %v592 = vpop.permute.xlu0 %591
    %594 = vset.pattern.permute.xlu0 2
    %595 = vperm.xlu0 %594, %v51
    %v596 = vpop.permute.xlu0 %595
    %598 = vset.pattern.permute.xlu0 2
    %599 = vperm.xlu0 %598, %v52
    %v600 = vpop.permute.xlu0 %599
    %602 = vset.pattern.permute.xlu0 2
    %603 = vperm.xlu0 %602, %v53
    %v604 = vpop.permute.xlu0 %603
    %606 = vset.pattern.permute.xlu0 2
    %607 = vperm.xlu0 %606, %v54
    %v608 = vpop.permute.xlu0 %607
    %610 = vset.pattern.permute.xlu0 2
    %611 = vperm.xlu0 %610, %v55
    %v612 = vpop.permute.xlu0 %611
    %614 = vset.pattern.permute.xlu0 2
    %615 = vperm.xlu0 %614, %v56
    %v616 = vpop.permute.xlu0 %615
    %618 = vset.pattern.permute.xlu0 2
    %619 = vperm.xlu0 %618, %v57
    %v620 = vpop.permute.xlu0 %619
    %622 = vset.pattern.permute.xlu0 2
    %623 = vperm.xlu0 %622, %v58
    %v624 = vpop.permute.xlu0 %623
    %626 = vset.pattern.permute.xlu0 2
    %627 = vperm.xlu0 %626, %v59
    %v628 = vpop.permute.xlu0 %627
    %630 = vset.pattern.permute.xlu0 2
    %631 = vperm.xlu0 %630, %v60
    %v632 = vpop.permute.xlu0 %631
    %634 = vset.pattern.permute.xlu0 2
    %635 = vperm.xlu0 %634, %v61
    %v636 = vpop.permute.xlu0 %635
    %638 = vset.pattern.permute.xlu0 2
    %639 = vperm.xlu0 %638, %v62
    %v640 = vpop.permute.xlu0 %639
    %v642 = vsel %vm546, %v580, 0.0
    %v643 = vsel %vm547, %v580, 0.0
    %v644 = vsel %vm548, %v584, 0.0
    %v645 = vsel %vm549, %v584, 0.0
    %v646 = vsel %vm550, %v588, 0.0
    %v647 = vsel %vm551, %v588, 0.0
    %v648 = vsel %vm552, %v592, 0.0
    %v649 = vsel %vm553, %v592, 0.0
    %v650 = vsel %vm554, %v596, 0.0
    %v651 = vsel %vm555, %v596, 0.0
    %v652 = vsel %vm556, %v600, 0.0
    %v653 = vsel %vm557, %v600, 0.0
    %v654 = vsel %vm558, %v604, 0.0
    %v655 = vsel %vm559, %v604, 0.0
    %v656 = vsel %vm560, %v608, 0.0
    %v657 = vsel %vm561, %v608, 0.0
    %v658 = vsel %vm562, %v612, 0.0
    %v659 = vsel %vm563, %v612, 0.0
    %v660 = vsel %vm564, %v616, 0.0
    %v661 = vsel %vm565, %v616, 0.0
    %v662 = vsel %vm566, %v620, 0.0
    %v663 = vsel %vm567, %v620, 0.0
    %v664 = vsel %vm568, %v624, 0.0
    %v665 = vsel %vm569, %v624, 0.0
    %v666 = vsel %vm570, %v628, 0.0
    %v667 = vsel %vm571, %v628, 0.0
    %v668 = vsel %vm572, %v632, 0.0
    %v669 = vsel %vm573, %v632, 0.0
    %v670 = vsel %vm574, %v636, 0.0
    %v671 = vsel %vm575, %v636, 0.0
    %v672 = vsel %vm576, %v640, 0.0
    %v673 = vsel %vm577, %v640, 0.0
    %v674 = vadd.f32 %v466, %v642
    %v675 = vadd.f32 %v467, %v643
    %v676 = vadd.f32 %v468, %v644
    %v677 = vadd.f32 %v469, %v645
    %v678 = vadd.f32 %v470, %v646
    %v679 = vadd.f32 %v471, %v647
    %v680 = vadd.f32 %v472, %v648
    %v681 = vadd.f32 %v473, %v649
    %v682 = vadd.f32 %v474, %v650
    %v683 = vadd.f32 %v475, %v651
    %v684 = vadd.f32 %v476, %v652
    %v685 = vadd.f32 %v477, %v653
    %v686 = vadd.f32 %v478, %v654
    %v687 = vadd.f32 %v479, %v655
    %v688 = vadd.f32 %v480, %v656
    %v689 = vadd.f32 %v481, %v657
    %v690 = vadd.f32 %v482, %v658
    %v691 = vadd.f32 %v483, %v659
    %v692 = vadd.f32 %v484, %v660
    %v693 = vadd.f32 %v485, %v661
    %v694 = vadd.f32 %v486, %v662
    %v695 = vadd.f32 %v487, %v663
    %v696 = vadd.f32 %v488, %v664
    %v697 = vadd.f32 %v489, %v665
    %v698 = vadd.f32 %v490, %v666
    %v699 = vadd.f32 %v491, %v667
    %v700 = vadd.f32 %v492, %v668
    %v701 = vadd.f32 %v493, %v669
    %v702 = vadd.f32 %v494, %v670
    %v703 = vadd.f32 %v495, %v671
    %v704 = vadd.f32 %v496, %v672
    %v705 = vadd.f32 %v497, %v673
    %706 = vset.pattern.permute.xlu0 3
    %707 = vperm.xlu0 %706, %v31
    %v708 = vpop.permute.xlu0 %707
    %709 = vset.pattern.permute.xlu0 3
    %710 = vperm.xlu0 %709, %v32
    %v711 = vpop.permute.xlu0 %710
    %712 = vset.pattern.permute.xlu0 3
    %713 = vperm.xlu0 %712, %v33
    %v714 = vpop.permute.xlu0 %713
    %715 = vset.pattern.permute.xlu0 3
    %716 = vperm.xlu0 %715, %v34
    %v717 = vpop.permute.xlu0 %716
    %718 = vset.pattern.permute.xlu0 3
    %719 = vperm.xlu0 %718, %v35
    %v720 = vpop.permute.xlu0 %719
    %721 = vset.pattern.permute.xlu0 3
    %722 = vperm.xlu0 %721, %v36
    %v723 = vpop.permute.xlu0 %722
    %724 = vset.pattern.permute.xlu0 3
    %725 = vperm.xlu0 %724, %v37
    %v726 = vpop.permute.xlu0 %725
    %727 = vset.pattern.permute.xlu0 3
    %728 = vperm.xlu0 %727, %v38
    %v729 = vpop.permute.xlu0 %728
    %730 = vset.pattern.permute.xlu0 3
    %731 = vperm.xlu0 %730, %v39
    %v732 = vpop.permute.xlu0 %731
    %733 = vset.pattern.permute.xlu0 3
    %734 = vperm.xlu0 %733, %v40
    %v735 = vpop.permute.xlu0 %734
    %736 = vset.pattern.permute.xlu0 3
    %737 = vperm.xlu0 %736, %v41
    %v738 = vpop.permute.xlu0 %737
    %739 = vset.pattern.permute.xlu0 3
    %740 = vperm.xlu0 %739, %v42
    %v741 = vpop.permute.xlu0 %740
    %742 = vset.pattern.permute.xlu0 3
    %743 = vperm.xlu0 %742, %v43
    %v744 = vpop.permute.xlu0 %743
    %745 = vset.pattern.permute.xlu0 3
    %746 = vperm.xlu0 %745, %v44
    %v747 = vpop.permute.xlu0 %746
    %748 = vset.pattern.permute.xlu0 3
    %749 = vperm.xlu0 %748, %v45
    %v750 = vpop.permute.xlu0 %749
    %751 = vset.pattern.permute.xlu0 3
    %752 = vperm.xlu0 %751, %v46
    %v753 = vpop.permute.xlu0 %752
    %vm754 = vcmp.eq.s32.totalorder %v708, %v64
    %vm755 = vcmp.eq.s32.totalorder %v708, %v65
    %vm756 = vcmp.eq.s32.totalorder %v711, %v64
    %vm757 = vcmp.eq.s32.totalorder %v711, %v65
    %vm758 = vcmp.eq.s32.totalorder %v714, %v64
    %vm759 = vcmp.eq.s32.totalorder %v714, %v65
    %vm760 = vcmp.eq.s32.totalorder %v717, %v64
    %vm761 = vcmp.eq.s32.totalorder %v717, %v65
    %vm762 = vcmp.eq.s32.totalorder %v720, %v64
    %vm763 = vcmp.eq.s32.totalorder %v720, %v65
    %vm764 = vcmp.eq.s32.totalorder %v723, %v64
    %vm765 = vcmp.eq.s32.totalorder %v723, %v65
    %vm766 = vcmp.eq.s32.totalorder %v726, %v64
    %vm767 = vcmp.eq.s32.totalorder %v726, %v65
    %vm768 = vcmp.eq.s32.totalorder %v729, %v64
    %vm769 = vcmp.eq.s32.totalorder %v729, %v65
    %vm770 = vcmp.eq.s32.totalorder %v732, %v64
    %vm771 = vcmp.eq.s32.totalorder %v732, %v65
    %vm772 = vcmp.eq.s32.totalorder %v735, %v64
    %vm773 = vcmp.eq.s32.totalorder %v735, %v65
    %vm774 = vcmp.eq.s32.totalorder %v738, %v64
    %vm775 = vcmp.eq.s32.totalorder %v738, %v65
    %vm776 = vcmp.eq.s32.totalorder %v741, %v64
    %vm777 = vcmp.eq.s32.totalorder %v741, %v65
    %vm778 = vcmp.eq.s32.totalorder %v744, %v64
    %vm779 = vcmp.eq.s32.totalorder %v744, %v65
    %vm780 = vcmp.eq.s32.totalorder %v747, %v64
    %vm781 = vcmp.eq.s32.totalorder %v747, %v65
    %vm782 = vcmp.eq.s32.totalorder %v750, %v64
    %vm783 = vcmp.eq.s32.totalorder %v750, %v65
    %vm784 = vcmp.eq.s32.totalorder %v753, %v64
    %vm785 = vcmp.eq.s32.totalorder %v753, %v65
    %786 = vset.pattern.permute.xlu0 3
    %787 = vperm.xlu0 %786, %v47
    %v788 = vpop.permute.xlu0 %787
    %790 = vset.pattern.permute.xlu0 3
    %791 = vperm.xlu0 %790, %v48
    %v792 = vpop.permute.xlu0 %791
    %794 = vset.pattern.permute.xlu0 3
    %795 = vperm.xlu0 %794, %v49
    %v796 = vpop.permute.xlu0 %795
    %798 = vset.pattern.permute.xlu0 3
    %799 = vperm.xlu0 %798, %v50
    %v800 = vpop.permute.xlu0 %799
    %802 = vset.pattern.permute.xlu0 3
    %803 = vperm.xlu0 %802, %v51
    %v804 = vpop.permute.xlu0 %803
    %806 = vset.pattern.permute.xlu0 3
    %807 = vperm.xlu0 %806, %v52
    %v808 = vpop.permute.xlu0 %807
    %810 = vset.pattern.permute.xlu0 3
    %811 = vperm.xlu0 %810, %v53
    %v812 = vpop.permute.xlu0 %811
    %814 = vset.pattern.permute.xlu0 3
    %815 = vperm.xlu0 %814, %v54
    %v816 = vpop.permute.xlu0 %815
    %818 = vset.pattern.permute.xlu0 3
    %819 = vperm.xlu0 %818, %v55
    %v820 = vpop.permute.xlu0 %819
    %822 = vset.pattern.permute.xlu0 3
    %823 = vperm.xlu0 %822, %v56
    %v824 = vpop.permute.xlu0 %823
    %826 = vset.pattern.permute.xlu0 3
    %827 = vperm.xlu0 %826, %v57
    %v828 = vpop.permute.xlu0 %827
    %830 = vset.pattern.permute.xlu0 3
    %831 = vperm.xlu0 %830, %v58
    %v832 = vpop.permute.xlu0 %831
    %834 = vset.pattern.permute.xlu0 3
    %835 = vperm.xlu0 %834, %v59
    %v836 = vpop.permute.xlu0 %835
    %838 = vset.pattern.permute.xlu0 3
    %839 = vperm.xlu0 %838, %v60
    %v840 = vpop.permute.xlu0 %839
    %842 = vset.pattern.permute.xlu0 3
    %843 = vperm.xlu0 %842, %v61
    %v844 = vpop.permute.xlu0 %843
    %846 = vset.pattern.permute.xlu0 3
    %847 = vperm.xlu0 %846, %v62
    %v848 = vpop.permute.xlu0 %847
    %v850 = vsel %vm754, %v788, 0.0
    %v851 = vsel %vm755, %v788, 0.0
    %v852 = vsel %vm756, %v792, 0.0
    %v853 = vsel %vm757, %v792, 0.0
    %v854 = vsel %vm758, %v796, 0.0
    %v855 = vsel %vm759, %v796, 0.0
    %v856 = vsel %vm760, %v800, 0.0
    %v857 = vsel %vm761, %v800, 0.0
    %v858 = vsel %vm762, %v804, 0.0
    %v859 = vsel %vm763, %v804, 0.0
    %v860 = vsel %vm764, %v808, 0.0
    %v861 = vsel %vm765, %v808, 0.0
    %v862 = vsel %vm766, %v812, 0.0
    %v863 = vsel %vm767, %v812, 0.0
    %v864 = vsel %vm768, %v816, 0.0
    %v865 = vsel %vm769, %v816, 0.0
    %v866 = vsel %vm770, %v820, 0.0
    %v867 = vsel %vm771, %v820, 0.0
    %v868 = vsel %vm772, %v824, 0.0
    %v869 = vsel %vm773, %v824, 0.0
    %v870 = vsel %vm774, %v828, 0.0
    %v871 = vsel %vm775, %v828, 0.0
    %v872 = vsel %vm776, %v832, 0.0
    %v873 = vsel %vm777, %v832, 0.0
    %v874 = vsel %vm778, %v836, 0.0
    %v875 = vsel %vm779, %v836, 0.0
    %v876 = vsel %vm780, %v840, 0.0
    %v877 = vsel %vm781, %v840, 0.0
    %v878 = vsel %vm782, %v844, 0.0
    %v879 = vsel %vm783, %v844, 0.0
    %v880 = vsel %vm784, %v848, 0.0
    %v881 = vsel %vm785, %v848, 0.0
    %v882 = vadd.f32 %v674, %v850
    %v883 = vadd.f32 %v675, %v851
    %v884 = vadd.f32 %v676, %v852
    %v885 = vadd.f32 %v677, %v853
    %v886 = vadd.f32 %v678, %v854
    %v887 = vadd.f32 %v679, %v855
    %v888 = vadd.f32 %v680, %v856
    %v889 = vadd.f32 %v681, %v857
    %v890 = vadd.f32 %v682, %v858
    %v891 = vadd.f32 %v683, %v859
    %v892 = vadd.f32 %v684, %v860
    %v893 = vadd.f32 %v685, %v861
    %v894 = vadd.f32 %v686, %v862
    %v895 = vadd.f32 %v687, %v863
    %v896 = vadd.f32 %v688, %v864
    %v897 = vadd.f32 %v689, %v865
    %v898 = vadd.f32 %v690, %v866
    %v899 = vadd.f32 %v691, %v867
    %v900 = vadd.f32 %v692, %v868
    %v901 = vadd.f32 %v693, %v869
    %v902 = vadd.f32 %v694, %v870
    %v903 = vadd.f32 %v695, %v871
    %v904 = vadd.f32 %v696, %v872
    %v905 = vadd.f32 %v697, %v873
    %v906 = vadd.f32 %v698, %v874
    %v907 = vadd.f32 %v699, %v875
    %v908 = vadd.f32 %v700, %v876
    %v909 = vadd.f32 %v701, %v877
    %v910 = vadd.f32 %v702, %v878
    %v911 = vadd.f32 %v703, %v879
    %v912 = vadd.f32 %v704, %v880
    %v913 = vadd.f32 %v705, %v881
    %914 = vset.pattern.permute.xlu0 4
    %915 = vperm.xlu0 %914, %v31
    %v916 = vpop.permute.xlu0 %915
    %917 = vset.pattern.permute.xlu0 4
    %918 = vperm.xlu0 %917, %v32
    %v919 = vpop.permute.xlu0 %918
    %920 = vset.pattern.permute.xlu0 4
    %921 = vperm.xlu0 %920, %v33
    %v922 = vpop.permute.xlu0 %921
    %923 = vset.pattern.permute.xlu0 4
    %924 = vperm.xlu0 %923, %v34
    %v925 = vpop.permute.xlu0 %924
    %926 = vset.pattern.permute.xlu0 4
    %927 = vperm.xlu0 %926, %v35
    %v928 = vpop.permute.xlu0 %927
    %929 = vset.pattern.permute.xlu0 4
    %930 = vperm.xlu0 %929, %v36
    %v931 = vpop.permute.xlu0 %930
    %932 = vset.pattern.permute.xlu0 4
    %933 = vperm.xlu0 %932, %v37
    %v934 = vpop.permute.xlu0 %933
    %935 = vset.pattern.permute.xlu0 4
    %936 = vperm.xlu0 %935, %v38
    %v937 = vpop.permute.xlu0 %936
    %938 = vset.pattern.permute.xlu0 4
    %939 = vperm.xlu0 %938, %v39
    %v940 = vpop.permute.xlu0 %939
    %941 = vset.pattern.permute.xlu0 4
    %942 = vperm.xlu0 %941, %v40
    %v943 = vpop.permute.xlu0 %942
    %944 = vset.pattern.permute.xlu0 4
    %945 = vperm.xlu0 %944, %v41
    %v946 = vpop.permute.xlu0 %945
    %947 = vset.pattern.permute.xlu0 4
    %948 = vperm.xlu0 %947, %v42
    %v949 = vpop.permute.xlu0 %948
    %950 = vset.pattern.permute.xlu0 4
    %951 = vperm.xlu0 %950, %v43
    %v952 = vpop.permute.xlu0 %951
    %953 = vset.pattern.permute.xlu0 4
    %954 = vperm.xlu0 %953, %v44
    %v955 = vpop.permute.xlu0 %954
    %956 = vset.pattern.permute.xlu0 4
    %957 = vperm.xlu0 %956, %v45
    %v958 = vpop.permute.xlu0 %957
    %959 = vset.pattern.permute.xlu0 4
    %960 = vperm.xlu0 %959, %v46
    %v961 = vpop.permute.xlu0 %960
    %vm962 = vcmp.eq.s32.totalorder %v916, %v64
    %vm963 = vcmp.eq.s32.totalorder %v916, %v65
    %vm964 = vcmp.eq.s32.totalorder %v919, %v64
    %vm965 = vcmp.eq.s32.totalorder %v919, %v65
    %vm966 = vcmp.eq.s32.totalorder %v922, %v64
    %vm967 = vcmp.eq.s32.totalorder %v922, %v65
    %vm968 = vcmp.eq.s32.totalorder %v925, %v64
    %vm969 = vcmp.eq.s32.totalorder %v925, %v65
    %vm970 = vcmp.eq.s32.totalorder %v928, %v64
    %vm971 = vcmp.eq.s32.totalorder %v928, %v65
    %vm972 = vcmp.eq.s32.totalorder %v931, %v64
    %vm973 = vcmp.eq.s32.totalorder %v931, %v65
    %vm974 = vcmp.eq.s32.totalorder %v934, %v64
    %vm975 = vcmp.eq.s32.totalorder %v934, %v65
    %vm976 = vcmp.eq.s32.totalorder %v937, %v64
    %vm977 = vcmp.eq.s32.totalorder %v937, %v65
    %vm978 = vcmp.eq.s32.totalorder %v940, %v64
    %vm979 = vcmp.eq.s32.totalorder %v940, %v65
    %vm980 = vcmp.eq.s32.totalorder %v943, %v64
    %vm981 = vcmp.eq.s32.totalorder %v943, %v65
    %vm982 = vcmp.eq.s32.totalorder %v946, %v64
    %vm983 = vcmp.eq.s32.totalorder %v946, %v65
    %vm984 = vcmp.eq.s32.totalorder %v949, %v64
    %vm985 = vcmp.eq.s32.totalorder %v949, %v65
    %vm986 = vcmp.eq.s32.totalorder %v952, %v64
    %vm987 = vcmp.eq.s32.totalorder %v952, %v65
    %vm988 = vcmp.eq.s32.totalorder %v955, %v64
    %vm989 = vcmp.eq.s32.totalorder %v955, %v65
    %vm990 = vcmp.eq.s32.totalorder %v958, %v64
    %vm991 = vcmp.eq.s32.totalorder %v958, %v65
    %vm992 = vcmp.eq.s32.totalorder %v961, %v64
    %vm993 = vcmp.eq.s32.totalorder %v961, %v65
    %994 = vset.pattern.permute.xlu0 4
    %995 = vperm.xlu0 %994, %v47
    %v996 = vpop.permute.xlu0 %995
    %998 = vset.pattern.permute.xlu0 4
    %999 = vperm.xlu0 %998, %v48
    %v1000 = vpop.permute.xlu0 %999
    %1002 = vset.pattern.permute.xlu0 4
    %1003 = vperm.xlu0 %1002, %v49
    %v1004 = vpop.permute.xlu0 %1003
    %1006 = vset.pattern.permute.xlu0 4
    %1007 = vperm.xlu0 %1006, %v50
    %v1008 = vpop.permute.xlu0 %1007
    %1010 = vset.pattern.permute.xlu0 4
    %1011 = vperm.xlu0 %1010, %v51
    %v1012 = vpop.permute.xlu0 %1011
    %1014 = vset.pattern.permute.xlu0 4
    %1015 = vperm.xlu0 %1014, %v52
    %v1016 = vpop.permute.xlu0 %1015
    %1018 = vset.pattern.permute.xlu0 4
    %1019 = vperm.xlu0 %1018, %v53
    %v1020 = vpop.permute.xlu0 %1019
    %1022 = vset.pattern.permute.xlu0 4
    %1023 = vperm.xlu0 %1022, %v54
    %v1024 = vpop.permute.xlu0 %1023
    %1026 = vset.pattern.permute.xlu0 4
    %1027 = vperm.xlu0 %1026, %v55
    %v1028 = vpop.permute.xlu0 %1027
    %1030 = vset.pattern.permute.xlu0 4
    %1031 = vperm.xlu0 %1030, %v56
    %v1032 = vpop.permute.xlu0 %1031
    %1034 = vset.pattern.permute.xlu0 4
    %1035 = vperm.xlu0 %1034, %v57
    %v1036 = vpop.permute.xlu0 %1035
    %1038 = vset.pattern.permute.xlu0 4
    %1039 = vperm.xlu0 %1038, %v58
    %v1040 = vpop.permute.xlu0 %1039
    %1042 = vset.pattern.permute.xlu0 4
    %1043 = vperm.xlu0 %1042, %v59
    %v1044 = vpop.permute.xlu0 %1043
    %1046 = vset.pattern.permute.xlu0 4
    %1047 = vperm.xlu0 %1046, %v60
    %v1048 = vpop.permute.xlu0 %1047
    %1050 = vset.pattern.permute.xlu0 4
    %1051 = vperm.xlu0 %1050, %v61
    %v1052 = vpop.permute.xlu0 %1051
    %1054 = vset.pattern.permute.xlu0 4
    %1055 = vperm.xlu0 %1054, %v62
    %v1056 = vpop.permute.xlu0 %1055
    %v1058 = vsel %vm962, %v996, 0.0
    %v1059 = vsel %vm963, %v996, 0.0
    %v1060 = vsel %vm964, %v1000, 0.0
    %v1061 = vsel %vm965, %v1000, 0.0
    %v1062 = vsel %vm966, %v1004, 0.0
    %v1063 = vsel %vm967, %v1004, 0.0
    %v1064 = vsel %vm968, %v1008, 0.0
    %v1065 = vsel %vm969, %v1008, 0.0
    %v1066 = vsel %vm970, %v1012, 0.0
    %v1067 = vsel %vm971, %v1012, 0.0
    %v1068 = vsel %vm972, %v1016, 0.0
    %v1069 = vsel %vm973, %v1016, 0.0
    %v1070 = vsel %vm974, %v1020, 0.0
    %v1071 = vsel %vm975, %v1020, 0.0
    %v1072 = vsel %vm976, %v1024, 0.0
    %v1073 = vsel %vm977, %v1024, 0.0
    %v1074 = vsel %vm978, %v1028, 0.0
    %v1075 = vsel %vm979, %v1028, 0.0
    %v1076 = vsel %vm980, %v1032, 0.0
    %v1077 = vsel %vm981, %v1032, 0.0
    %v1078 = vsel %vm982, %v1036, 0.0
    %v1079 = vsel %vm983, %v1036, 0.0
    %v1080 = vsel %vm984, %v1040, 0.0
    %v1081 = vsel %vm985, %v1040, 0.0
    %v1082 = vsel %vm986, %v1044, 0.0
    %v1083 = vsel %vm987, %v1044, 0.0
    %v1084 = vsel %vm988, %v1048, 0.0
    %v1085 = vsel %vm989, %v1048, 0.0
    %v1086 = vsel %vm990, %v1052, 0.0
    %v1087 = vsel %vm991, %v1052, 0.0
    %v1088 = vsel %vm992, %v1056, 0.0
    %v1089 = vsel %vm993, %v1056, 0.0
    %v1090 = vadd.f32 %v882, %v1058
    %v1091 = vadd.f32 %v883, %v1059
    %v1092 = vadd.f32 %v884, %v1060
    %v1093 = vadd.f32 %v885, %v1061
    %v1094 = vadd.f32 %v886, %v1062
    %v1095 = vadd.f32 %v887, %v1063
    %v1096 = vadd.f32 %v888, %v1064
    %v1097 = vadd.f32 %v889, %v1065
    %v1098 = vadd.f32 %v890, %v1066
    %v1099 = vadd.f32 %v891, %v1067
    %v1100 = vadd.f32 %v892, %v1068
    %v1101 = vadd.f32 %v893, %v1069
    %v1102 = vadd.f32 %v894, %v1070
    %v1103 = vadd.f32 %v895, %v1071
    %v1104 = vadd.f32 %v896, %v1072
    %v1105 = vadd.f32 %v897, %v1073
    %v1106 = vadd.f32 %v898, %v1074
    %v1107 = vadd.f32 %v899, %v1075
    %v1108 = vadd.f32 %v900, %v1076
    %v1109 = vadd.f32 %v901, %v1077
    %v1110 = vadd.f32 %v902, %v1078
    %v1111 = vadd.f32 %v903, %v1079
    %v1112 = vadd.f32 %v904, %v1080
    %v1113 = vadd.f32 %v905, %v1081
    %v1114 = vadd.f32 %v906, %v1082
    %v1115 = vadd.f32 %v907, %v1083
    %v1116 = vadd.f32 %v908, %v1084
    %v1117 = vadd.f32 %v909, %v1085
    %v1118 = vadd.f32 %v910, %v1086
    %v1119 = vadd.f32 %v911, %v1087
    %v1120 = vadd.f32 %v912, %v1088
    %v1121 = vadd.f32 %v913, %v1089
    %1122 = vset.pattern.permute.xlu0 5
    %1123 = vperm.xlu0 %1122, %v31
    %v1124 = vpop.permute.xlu0 %1123
    %1125 = vset.pattern.permute.xlu0 5
    %1126 = vperm.xlu0 %1125, %v32
    %v1127 = vpop.permute.xlu0 %1126
    %1128 = vset.pattern.permute.xlu0 5
    %1129 = vperm.xlu0 %1128, %v33
    %v1130 = vpop.permute.xlu0 %1129
    %1131 = vset.pattern.permute.xlu0 5
    %1132 = vperm.xlu0 %1131, %v34
    %v1133 = vpop.permute.xlu0 %1132
    %1134 = vset.pattern.permute.xlu0 5
    %1135 = vperm.xlu0 %1134, %v35
    %v1136 = vpop.permute.xlu0 %1135
    %1137 = vset.pattern.permute.xlu0 5
    %1138 = vperm.xlu0 %1137, %v36
    %v1139 = vpop.permute.xlu0 %1138
    %1140 = vset.pattern.permute.xlu0 5
    %1141 = vperm.xlu0 %1140, %v37
    %v1142 = vpop.permute.xlu0 %1141
    %1143 = vset.pattern.permute.xlu0 5
    %1144 = vperm.xlu0 %1143, %v38
    %v1145 = vpop.permute.xlu0 %1144
    %1146 = vset.pattern.permute.xlu0 5
    %1147 = vperm.xlu0 %1146, %v39
    %v1148 = vpop.permute.xlu0 %1147
    %1149 = vset.pattern.permute.xlu0 5
    %1150 = vperm.xlu0 %1149, %v40
    %v1151 = vpop.permute.xlu0 %1150
    %1152 = vset.pattern.permute.xlu0 5
    %1153 = vperm.xlu0 %1152, %v41
    %v1154 = vpop.permute.xlu0 %1153
    %1155 = vset.pattern.permute.xlu0 5
    %1156 = vperm.xlu0 %1155, %v42
    %v1157 = vpop.permute.xlu0 %1156
    %1158 = vset.pattern.permute.xlu0 5
    %1159 = vperm.xlu0 %1158, %v43
    %v1160 = vpop.permute.xlu0 %1159
    %1161 = vset.pattern.permute.xlu0 5
    %1162 = vperm.xlu0 %1161, %v44
    %v1163 = vpop.permute.xlu0 %1162
    %1164 = vset.pattern.permute.xlu0 5
    %1165 = vperm.xlu0 %1164, %v45
    %v1166 = vpop.permute.xlu0 %1165
    %1167 = vset.pattern.permute.xlu0 5
    %1168 = vperm.xlu0 %1167, %v46
    %v1169 = vpop.permute.xlu0 %1168
    %vm1170 = vcmp.eq.s32.totalorder %v1124, %v64
    %vm1171 = vcmp.eq.s32.totalorder %v1124, %v65
    %vm1172 = vcmp.eq.s32.totalorder %v1127, %v64
    %vm1173 = vcmp.eq.s32.totalorder %v1127, %v65
    %vm1174 = vcmp.eq.s32.totalorder %v1130, %v64
    %vm1175 = vcmp.eq.s32.totalorder %v1130, %v65
    %vm1176 = vcmp.eq.s32.totalorder %v1133, %v64
    %vm1177 = vcmp.eq.s32.totalorder %v1133, %v65
    %vm1178 = vcmp.eq.s32.totalorder %v1136, %v64
    %vm1179 = vcmp.eq.s32.totalorder %v1136, %v65
    %vm1180 = vcmp.eq.s32.totalorder %v1139, %v64
    %vm1181 = vcmp.eq.s32.totalorder %v1139, %v65
    %vm1182 = vcmp.eq.s32.totalorder %v1142, %v64
    %vm1183 = vcmp.eq.s32.totalorder %v1142, %v65
    %vm1184 = vcmp.eq.s32.totalorder %v1145, %v64
    %vm1185 = vcmp.eq.s32.totalorder %v1145, %v65
    %vm1186 = vcmp.eq.s32.totalorder %v1148, %v64
    %vm1187 = vcmp.eq.s32.totalorder %v1148, %v65
    %vm1188 = vcmp.eq.s32.totalorder %v1151, %v64
    %vm1189 = vcmp.eq.s32.totalorder %v1151, %v65
    %vm1190 = vcmp.eq.s32.totalorder %v1154, %v64
    %vm1191 = vcmp.eq.s32.totalorder %v1154, %v65
    %vm1192 = vcmp.eq.s32.totalorder %v1157, %v64
    %vm1193 = vcmp.eq.s32.totalorder %v1157, %v65
    %vm1194 = vcmp.eq.s32.totalorder %v1160, %v64
    %vm1195 = vcmp.eq.s32.totalorder %v1160, %v65
    %vm1196 = vcmp.eq.s32.totalorder %v1163, %v64
    %vm1197 = vcmp.eq.s32.totalorder %v1163, %v65
    %vm1198 = vcmp.eq.s32.totalorder %v1166, %v64
    %vm1199 = vcmp.eq.s32.totalorder %v1166, %v65
    %vm1200 = vcmp.eq.s32.totalorder %v1169, %v64
    %vm1201 = vcmp.eq.s32.totalorder %v1169, %v65
    %1202 = vset.pattern.permute.xlu0 5
    %1203 = vperm.xlu0 %1202, %v47
    %v1204 = vpop.permute.xlu0 %1203
    %1206 = vset.pattern.permute.xlu0 5
    %1207 = vperm.xlu0 %1206, %v48
    %v1208 = vpop.permute.xlu0 %1207
    %1210 = vset.pattern.permute.xlu0 5
    %1211 = vperm.xlu0 %1210, %v49
    %v1212 = vpop.permute.xlu0 %1211
    %1214 = vset.pattern.permute.xlu0 5
    %1215 = vperm.xlu0 %1214, %v50
    %v1216 = vpop.permute.xlu0 %1215
    %1218 = vset.pattern.permute.xlu0 5
    %1219 = vperm.xlu0 %1218, %v51
    %v1220 = vpop.permute.xlu0 %1219
    %1222 = vset.pattern.permute.xlu0 5
    %1223 = vperm.xlu0 %1222, %v52
    %v1224 = vpop.permute.xlu0 %1223
    %1226 = vset.pattern.permute.xlu0 5
    %1227 = vperm.xlu0 %1226, %v53
    %v1228 = vpop.permute.xlu0 %1227
    %1230 = vset.pattern.permute.xlu0 5
    %1231 = vperm.xlu0 %1230, %v54
    %v1232 = vpop.permute.xlu0 %1231
    %1234 = vset.pattern.permute.xlu0 5
    %1235 = vperm.xlu0 %1234, %v55
    %v1236 = vpop.permute.xlu0 %1235
    %1238 = vset.pattern.permute.xlu0 5
    %1239 = vperm.xlu0 %1238, %v56
    %v1240 = vpop.permute.xlu0 %1239
    %1242 = vset.pattern.permute.xlu0 5
    %1243 = vperm.xlu0 %1242, %v57
    %v1244 = vpop.permute.xlu0 %1243
    %1246 = vset.pattern.permute.xlu0 5
    %1247 = vperm.xlu0 %1246, %v58
    %v1248 = vpop.permute.xlu0 %1247
    %1250 = vset.pattern.permute.xlu0 5
    %1251 = vperm.xlu0 %1250, %v59
    %v1252 = vpop.permute.xlu0 %1251
    %1254 = vset.pattern.permute.xlu0 5
    %1255 = vperm.xlu0 %1254, %v60
    %v1256 = vpop.permute.xlu0 %1255
    %1258 = vset.pattern.permute.xlu0 5
    %1259 = vperm.xlu0 %1258, %v61
    %v1260 = vpop.permute.xlu0 %1259
    %1262 = vset.pattern.permute.xlu0 5
    %1263 = vperm.xlu0 %1262, %v62
    %v1264 = vpop.permute.xlu0 %1263
    %v1266 = vsel %vm1170, %v1204, 0.0
    %v1267 = vsel %vm1171, %v1204, 0.0
    %v1268 = vsel %vm1172, %v1208, 0.0
    %v1269 = vsel %vm1173, %v1208, 0.0
    %v1270 = vsel %vm1174, %v1212, 0.0
    %v1271 = vsel %vm1175, %v1212, 0.0
    %v1272 = vsel %vm1176, %v1216, 0.0
    %v1273 = vsel %vm1177, %v1216, 0.0
    %v1274 = vsel %vm1178, %v1220, 0.0
    %v1275 = vsel %vm1179, %v1220, 0.0
    %v1276 = vsel %vm1180, %v1224, 0.0
    %v1277 = vsel %vm1181, %v1224, 0.0
    %v1278 = vsel %vm1182, %v1228, 0.0
    %v1279 = vsel %vm1183, %v1228, 0.0
    %v1280 = vsel %vm1184, %v1232, 0.0
    %v1281 = vsel %vm1185, %v1232, 0.0
    %v1282 = vsel %vm1186, %v1236, 0.0
    %v1283 = vsel %vm1187, %v1236, 0.0
    %v1284 = vsel %vm1188, %v1240, 0.0
    %v1285 = vsel %vm1189, %v1240, 0.0
    %v1286 = vsel %vm1190, %v1244, 0.0
    %v1287 = vsel %vm1191, %v1244, 0.0
    %v1288 = vsel %vm1192, %v1248, 0.0
    %v1289 = vsel %vm1193, %v1248, 0.0
    %v1290 = vsel %vm1194, %v1252, 0.0
    %v1291 = vsel %vm1195, %v1252, 0.0
    %v1292 = vsel %vm1196, %v1256, 0.0
    %v1293 = vsel %vm1197, %v1256, 0.0
    %v1294 = vsel %vm1198, %v1260, 0.0
    %v1295 = vsel %vm1199, %v1260, 0.0
    %v1296 = vsel %vm1200, %v1264, 0.0
    %v1297 = vsel %vm1201, %v1264, 0.0
    %v1298 = vadd.f32 %v1090, %v1266
    %v1299 = vadd.f32 %v1091, %v1267
    %v1300 = vadd.f32 %v1092, %v1268
    %v1301 = vadd.f32 %v1093, %v1269
    %v1302 = vadd.f32 %v1094, %v1270
    %v1303 = vadd.f32 %v1095, %v1271
    %v1304 = vadd.f32 %v1096, %v1272
    %v1305 = vadd.f32 %v1097, %v1273
    %v1306 = vadd.f32 %v1098, %v1274
    %v1307 = vadd.f32 %v1099, %v1275
    %v1308 = vadd.f32 %v1100, %v1276
    %v1309 = vadd.f32 %v1101, %v1277
    %v1310 = vadd.f32 %v1102, %v1278
    %v1311 = vadd.f32 %v1103, %v1279
    %v1312 = vadd.f32 %v1104, %v1280
    %v1313 = vadd.f32 %v1105, %v1281
    %v1314 = vadd.f32 %v1106, %v1282
    %v1315 = vadd.f32 %v1107, %v1283
    %v1316 = vadd.f32 %v1108, %v1284
    %v1317 = vadd.f32 %v1109, %v1285
    %v1318 = vadd.f32 %v1110, %v1286
    %v1319 = vadd.f32 %v1111, %v1287
    %v1320 = vadd.f32 %v1112, %v1288
    %v1321 = vadd.f32 %v1113, %v1289
    %v1322 = vadd.f32 %v1114, %v1290
    %v1323 = vadd.f32 %v1115, %v1291
    %v1324 = vadd.f32 %v1116, %v1292
    %v1325 = vadd.f32 %v1117, %v1293
    %v1326 = vadd.f32 %v1118, %v1294
    %v1327 = vadd.f32 %v1119, %v1295
    %v1328 = vadd.f32 %v1120, %v1296
    %v1329 = vadd.f32 %v1121, %v1297
    %1330 = vset.pattern.permute.xlu0 6
    %1331 = vperm.xlu0 %1330, %v31
    %v1332 = vpop.permute.xlu0 %1331
    %1333 = vset.pattern.permute.xlu0 6
    %1334 = vperm.xlu0 %1333, %v32
    %v1335 = vpop.permute.xlu0 %1334
    %1336 = vset.pattern.permute.xlu0 6
    %1337 = vperm.xlu0 %1336, %v33
    %v1338 = vpop.permute.xlu0 %1337
    %1339 = vset.pattern.permute.xlu0 6
    %1340 = vperm.xlu0 %1339, %v34
    %v1341 = vpop.permute.xlu0 %1340
    %1342 = vset.pattern.permute.xlu0 6
    %1343 = vperm.xlu0 %1342, %v35
    %v1344 = vpop.permute.xlu0 %1343
    %1345 = vset.pattern.permute.xlu0 6
    %1346 = vperm.xlu0 %1345, %v36
    %v1347 = vpop.permute.xlu0 %1346
    %1348 = vset.pattern.permute.xlu0 6
    %1349 = vperm.xlu0 %1348, %v37
    %v1350 = vpop.permute.xlu0 %1349
    %1351 = vset.pattern.permute.xlu0 6
    %1352 = vperm.xlu0 %1351, %v38
    %v1353 = vpop.permute.xlu0 %1352
    %1354 = vset.pattern.permute.xlu0 6
    %1355 = vperm.xlu0 %1354, %v39
    %v1356 = vpop.permute.xlu0 %1355
    %1357 = vset.pattern.permute.xlu0 6
    %1358 = vperm.xlu0 %1357, %v40
    %v1359 = vpop.permute.xlu0 %1358
    %1360 = vset.pattern.permute.xlu0 6
    %1361 = vperm.xlu0 %1360, %v41
    %v1362 = vpop.permute.xlu0 %1361
    %1363 = vset.pattern.permute.xlu0 6
    %1364 = vperm.xlu0 %1363, %v42
    %v1365 = vpop.permute.xlu0 %1364
    %1366 = vset.pattern.permute.xlu0 6
    %1367 = vperm.xlu0 %1366, %v43
    %v1368 = vpop.permute.xlu0 %1367
    %1369 = vset.pattern.permute.xlu0 6
    %1370 = vperm.xlu0 %1369, %v44
    %v1371 = vpop.permute.xlu0 %1370
    %1372 = vset.pattern.permute.xlu0 6
    %1373 = vperm.xlu0 %1372, %v45
    %v1374 = vpop.permute.xlu0 %1373
    %1375 = vset.pattern.permute.xlu0 6
    %1376 = vperm.xlu0 %1375, %v46
    %v1377 = vpop.permute.xlu0 %1376
    %vm1378 = vcmp.eq.s32.totalorder %v1332, %v64
    %vm1379 = vcmp.eq.s32.totalorder %v1332, %v65
    %vm1380 = vcmp.eq.s32.totalorder %v1335, %v64
    %vm1381 = vcmp.eq.s32.totalorder %v1335, %v65
    %vm1382 = vcmp.eq.s32.totalorder %v1338, %v64
    %vm1383 = vcmp.eq.s32.totalorder %v1338, %v65
    %vm1384 = vcmp.eq.s32.totalorder %v1341, %v64
    %vm1385 = vcmp.eq.s32.totalorder %v1341, %v65
    %vm1386 = vcmp.eq.s32.totalorder %v1344, %v64
    %vm1387 = vcmp.eq.s32.totalorder %v1344, %v65
    %vm1388 = vcmp.eq.s32.totalorder %v1347, %v64
    %vm1389 = vcmp.eq.s32.totalorder %v1347, %v65
    %vm1390 = vcmp.eq.s32.totalorder %v1350, %v64
    %vm1391 = vcmp.eq.s32.totalorder %v1350, %v65
    %vm1392 = vcmp.eq.s32.totalorder %v1353, %v64
    %vm1393 = vcmp.eq.s32.totalorder %v1353, %v65
    %vm1394 = vcmp.eq.s32.totalorder %v1356, %v64
    %vm1395 = vcmp.eq.s32.totalorder %v1356, %v65
    %vm1396 = vcmp.eq.s32.totalorder %v1359, %v64
    %vm1397 = vcmp.eq.s32.totalorder %v1359, %v65
    %vm1398 = vcmp.eq.s32.totalorder %v1362, %v64
    %vm1399 = vcmp.eq.s32.totalorder %v1362, %v65
    %vm1400 = vcmp.eq.s32.totalorder %v1365, %v64
    %vm1401 = vcmp.eq.s32.totalorder %v1365, %v65
    %vm1402 = vcmp.eq.s32.totalorder %v1368, %v64
    %vm1403 = vcmp.eq.s32.totalorder %v1368, %v65
    %vm1404 = vcmp.eq.s32.totalorder %v1371, %v64
    %vm1405 = vcmp.eq.s32.totalorder %v1371, %v65
    %vm1406 = vcmp.eq.s32.totalorder %v1374, %v64
    %vm1407 = vcmp.eq.s32.totalorder %v1374, %v65
    %vm1408 = vcmp.eq.s32.totalorder %v1377, %v64
    %vm1409 = vcmp.eq.s32.totalorder %v1377, %v65
    %1410 = vset.pattern.permute.xlu0 6
    %1411 = vperm.xlu0 %1410, %v47
    %v1412 = vpop.permute.xlu0 %1411
    %1414 = vset.pattern.permute.xlu0 6
    %1415 = vperm.xlu0 %1414, %v48
    %v1416 = vpop.permute.xlu0 %1415
    %1418 = vset.pattern.permute.xlu0 6
    %1419 = vperm.xlu0 %1418, %v49
    %v1420 = vpop.permute.xlu0 %1419
    %1422 = vset.pattern.permute.xlu0 6
    %1423 = vperm.xlu0 %1422, %v50
    %v1424 = vpop.permute.xlu0 %1423
    %1426 = vset.pattern.permute.xlu0 6
    %1427 = vperm.xlu0 %1426, %v51
    %v1428 = vpop.permute.xlu0 %1427
    %1430 = vset.pattern.permute.xlu0 6
    %1431 = vperm.xlu0 %1430, %v52
    %v1432 = vpop.permute.xlu0 %1431
    %1434 = vset.pattern.permute.xlu0 6
    %1435 = vperm.xlu0 %1434, %v53
    %v1436 = vpop.permute.xlu0 %1435
    %1438 = vset.pattern.permute.xlu0 6
    %1439 = vperm.xlu0 %1438, %v54
    %v1440 = vpop.permute.xlu0 %1439
    %1442 = vset.pattern.permute.xlu0 6
    %1443 = vperm.xlu0 %1442, %v55
    %v1444 = vpop.permute.xlu0 %1443
    %1446 = vset.pattern.permute.xlu0 6
    %1447 = vperm.xlu0 %1446, %v56
    %v1448 = vpop.permute.xlu0 %1447
    %1450 = vset.pattern.permute.xlu0 6
    %1451 = vperm.xlu0 %1450, %v57
    %v1452 = vpop.permute.xlu0 %1451
    %1454 = vset.pattern.permute.xlu0 6
    %1455 = vperm.xlu0 %1454, %v58
    %v1456 = vpop.permute.xlu0 %1455
    %1458 = vset.pattern.permute.xlu0 6
    %1459 = vperm.xlu0 %1458, %v59
    %v1460 = vpop.permute.xlu0 %1459
    %1462 = vset.pattern.permute.xlu0 6
    %1463 = vperm.xlu0 %1462, %v60
    %v1464 = vpop.permute.xlu0 %1463
    %1466 = vset.pattern.permute.xlu0 6
    %1467 = vperm.xlu0 %1466, %v61
    %v1468 = vpop.permute.xlu0 %1467
    %1470 = vset.pattern.permute.xlu0 6
    %1471 = vperm.xlu0 %1470, %v62
    %v1472 = vpop.permute.xlu0 %1471
    %v1474 = vsel %vm1378, %v1412, 0.0
    %v1475 = vsel %vm1379, %v1412, 0.0
    %v1476 = vsel %vm1380, %v1416, 0.0
    %v1477 = vsel %vm1381, %v1416, 0.0
    %v1478 = vsel %vm1382, %v1420, 0.0
    %v1479 = vsel %vm1383, %v1420, 0.0
    %v1480 = vsel %vm1384, %v1424, 0.0
    %v1481 = vsel %vm1385, %v1424, 0.0
    %v1482 = vsel %vm1386, %v1428, 0.0
    %v1483 = vsel %vm1387, %v1428, 0.0
    %v1484 = vsel %vm1388, %v1432, 0.0
    %v1485 = vsel %vm1389, %v1432, 0.0
    %v1486 = vsel %vm1390, %v1436, 0.0
    %v1487 = vsel %vm1391, %v1436, 0.0
    %v1488 = vsel %vm1392, %v1440, 0.0
    %v1489 = vsel %vm1393, %v1440, 0.0
    %v1490 = vsel %vm1394, %v1444, 0.0
    %v1491 = vsel %vm1395, %v1444, 0.0
    %v1492 = vsel %vm1396, %v1448, 0.0
    %v1493 = vsel %vm1397, %v1448, 0.0
    %v1494 = vsel %vm1398, %v1452, 0.0
    %v1495 = vsel %vm1399, %v1452, 0.0
    %v1496 = vsel %vm1400, %v1456, 0.0
    %v1497 = vsel %vm1401, %v1456, 0.0
    %v1498 = vsel %vm1402, %v1460, 0.0
    %v1499 = vsel %vm1403, %v1460, 0.0
    %v1500 = vsel %vm1404, %v1464, 0.0
    %v1501 = vsel %vm1405, %v1464, 0.0
    %v1502 = vsel %vm1406, %v1468, 0.0
    %v1503 = vsel %vm1407, %v1468, 0.0
    %v1504 = vsel %vm1408, %v1472, 0.0
    %v1505 = vsel %vm1409, %v1472, 0.0
    %v1506 = vadd.f32 %v1298, %v1474
    %v1507 = vadd.f32 %v1299, %v1475
    %v1508 = vadd.f32 %v1300, %v1476
    %v1509 = vadd.f32 %v1301, %v1477
    %v1510 = vadd.f32 %v1302, %v1478
    %v1511 = vadd.f32 %v1303, %v1479
    %v1512 = vadd.f32 %v1304, %v1480
    %v1513 = vadd.f32 %v1305, %v1481
    %v1514 = vadd.f32 %v1306, %v1482
    %v1515 = vadd.f32 %v1307, %v1483
    %v1516 = vadd.f32 %v1308, %v1484
    %v1517 = vadd.f32 %v1309, %v1485
    %v1518 = vadd.f32 %v1310, %v1486
    %v1519 = vadd.f32 %v1311, %v1487
    %v1520 = vadd.f32 %v1312, %v1488
    %v1521 = vadd.f32 %v1313, %v1489
    %v1522 = vadd.f32 %v1314, %v1490
    %v1523 = vadd.f32 %v1315, %v1491
    %v1524 = vadd.f32 %v1316, %v1492
    %v1525 = vadd.f32 %v1317, %v1493
    %v1526 = vadd.f32 %v1318, %v1494
    %v1527 = vadd.f32 %v1319, %v1495
    %v1528 = vadd.f32 %v1320, %v1496
    %v1529 = vadd.f32 %v1321, %v1497
    %v1530 = vadd.f32 %v1322, %v1498
    %v1531 = vadd.f32 %v1323, %v1499
    %v1532 = vadd.f32 %v1324, %v1500
    %v1533 = vadd.f32 %v1325, %v1501
    %v1534 = vadd.f32 %v1326, %v1502
    %v1535 = vadd.f32 %v1327, %v1503
    %v1536 = vadd.f32 %v1328, %v1504
    %v1537 = vadd.f32 %v1329, %v1505
    %1538 = vset.pattern.permute.xlu0 7
    %1539 = vperm.xlu0 %1538, %v31
    %v1540 = vpop.permute.xlu0 %1539
    %1541 = vset.pattern.permute.xlu0 7
    %1542 = vperm.xlu0 %1541, %v32
    %v1543 = vpop.permute.xlu0 %1542
    %1544 = vset.pattern.permute.xlu0 7
    %1545 = vperm.xlu0 %1544, %v33
    %v1546 = vpop.permute.xlu0 %1545
    %1547 = vset.pattern.permute.xlu0 7
    %1548 = vperm.xlu0 %1547, %v34
    %v1549 = vpop.permute.xlu0 %1548
    %1550 = vset.pattern.permute.xlu0 7
    %1551 = vperm.xlu0 %1550, %v35
    %v1552 = vpop.permute.xlu0 %1551
    %1553 = vset.pattern.permute.xlu0 7
    %1554 = vperm.xlu0 %1553, %v36
    %v1555 = vpop.permute.xlu0 %1554
    %1556 = vset.pattern.permute.xlu0 7
    %1557 = vperm.xlu0 %1556, %v37
    %v1558 = vpop.permute.xlu0 %1557
    %1559 = vset.pattern.permute.xlu0 7
    %1560 = vperm.xlu0 %1559, %v38
    %v1561 = vpop.permute.xlu0 %1560
    %1562 = vset.pattern.permute.xlu0 7
    %1563 = vperm.xlu0 %1562, %v39
    %v1564 = vpop.permute.xlu0 %1563
    %1565 = vset.pattern.permute.xlu0 7
    %1566 = vperm.xlu0 %1565, %v40
    %v1567 = vpop.permute.xlu0 %1566
    %1568 = vset.pattern.permute.xlu0 7
    %1569 = vperm.xlu0 %1568, %v41
    %v1570 = vpop.permute.xlu0 %1569
    %1571 = vset.pattern.permute.xlu0 7
    %1572 = vperm.xlu0 %1571, %v42
    %v1573 = vpop.permute.xlu0 %1572
    %1574 = vset.pattern.permute.xlu0 7
    %1575 = vperm.xlu0 %1574, %v43
    %v1576 = vpop.permute.xlu0 %1575
    %1577 = vset.pattern.permute.xlu0 7
    %1578 = vperm.xlu0 %1577, %v44
    %v1579 = vpop.permute.xlu0 %1578
    %1580 = vset.pattern.permute.xlu0 7
    %1581 = vperm.xlu0 %1580, %v45
    %v1582 = vpop.permute.xlu0 %1581
    %1583 = vset.pattern.permute.xlu0 7
    %1584 = vperm.xlu0 %1583, %v46
    %v1585 = vpop.permute.xlu0 %1584
    %vm1586 = vcmp.eq.s32.totalorder %v1540, %v64
    %vm1587 = vcmp.eq.s32.totalorder %v1540, %v65
    %vm1588 = vcmp.eq.s32.totalorder %v1543, %v64
    %vm1589 = vcmp.eq.s32.totalorder %v1543, %v65
    %vm1590 = vcmp.eq.s32.totalorder %v1546, %v64
    %vm1591 = vcmp.eq.s32.totalorder %v1546, %v65
    %vm1592 = vcmp.eq.s32.totalorder %v1549, %v64
    %vm1593 = vcmp.eq.s32.totalorder %v1549, %v65
    %vm1594 = vcmp.eq.s32.totalorder %v1552, %v64
    %vm1595 = vcmp.eq.s32.totalorder %v1552, %v65
    %vm1596 = vcmp.eq.s32.totalorder %v1555, %v64
    %vm1597 = vcmp.eq.s32.totalorder %v1555, %v65
    %vm1598 = vcmp.eq.s32.totalorder %v1558, %v64
    %vm1599 = vcmp.eq.s32.totalorder %v1558, %v65
    %vm1600 = vcmp.eq.s32.totalorder %v1561, %v64
    %vm1601 = vcmp.eq.s32.totalorder %v1561, %v65
    %vm1602 = vcmp.eq.s32.totalorder %v1564, %v64
    %vm1603 = vcmp.eq.s32.totalorder %v1564, %v65
    %vm1604 = vcmp.eq.s32.totalorder %v1567, %v64
    %vm1605 = vcmp.eq.s32.totalorder %v1567, %v65
    %vm1606 = vcmp.eq.s32.totalorder %v1570, %v64
    %vm1607 = vcmp.eq.s32.totalorder %v1570, %v65
    %vm1608 = vcmp.eq.s32.totalorder %v1573, %v64
    %vm1609 = vcmp.eq.s32.totalorder %v1573, %v65
    %vm1610 = vcmp.eq.s32.totalorder %v1576, %v64
    %vm1611 = vcmp.eq.s32.totalorder %v1576, %v65
    %vm1612 = vcmp.eq.s32.totalorder %v1579, %v64
    %vm1613 = vcmp.eq.s32.totalorder %v1579, %v65
    %vm1614 = vcmp.eq.s32.totalorder %v1582, %v64
    %vm1615 = vcmp.eq.s32.totalorder %v1582, %v65
    %vm1616 = vcmp.eq.s32.totalorder %v1585, %v64
    %vm1617 = vcmp.eq.s32.totalorder %v1585, %v65
    %1618 = vset.pattern.permute.xlu0 7
    %1619 = vperm.xlu0 %1618, %v47
    %v1620 = vpop.permute.xlu0 %1619
    %1622 = vset.pattern.permute.xlu0 7
    %1623 = vperm.xlu0 %1622, %v48
    %v1624 = vpop.permute.xlu0 %1623
    %1626 = vset.pattern.permute.xlu0 7
    %1627 = vperm.xlu0 %1626, %v49
    %v1628 = vpop.permute.xlu0 %1627
    %1630 = vset.pattern.permute.xlu0 7
    %1631 = vperm.xlu0 %1630, %v50
    %v1632 = vpop.permute.xlu0 %1631
    %1634 = vset.pattern.permute.xlu0 7
    %1635 = vperm.xlu0 %1634, %v51
    %v1636 = vpop.permute.xlu0 %1635
    %1638 = vset.pattern.permute.xlu0 7
    %1639 = vperm.xlu0 %1638, %v52
    %v1640 = vpop.permute.xlu0 %1639
    %1642 = vset.pattern.permute.xlu0 7
    %1643 = vperm.xlu0 %1642, %v53
    %v1644 = vpop.permute.xlu0 %1643
    %1646 = vset.pattern.permute.xlu0 7
    %1647 = vperm.xlu0 %1646, %v54
    %v1648 = vpop.permute.xlu0 %1647
    %1650 = vset.pattern.permute.xlu0 7
    %1651 = vperm.xlu0 %1650, %v55
    %v1652 = vpop.permute.xlu0 %1651
    %1654 = vset.pattern.permute.xlu0 7
    %1655 = vperm.xlu0 %1654, %v56
    %v1656 = vpop.permute.xlu0 %1655
    %1658 = vset.pattern.permute.xlu0 7
    %1659 = vperm.xlu0 %1658, %v57
    %v1660 = vpop.permute.xlu0 %1659
    %1662 = vset.pattern.permute.xlu0 7
    %1663 = vperm.xlu0 %1662, %v58
    %v1664 = vpop.permute.xlu0 %1663
    %1666 = vset.pattern.permute.xlu0 7
    %1667 = vperm.xlu0 %1666, %v59
    %v1668 = vpop.permute.xlu0 %1667
    %1670 = vset.pattern.permute.xlu0 7
    %1671 = vperm.xlu0 %1670, %v60
    %v1672 = vpop.permute.xlu0 %1671
    %1674 = vset.pattern.permute.xlu0 7
    %1675 = vperm.xlu0 %1674, %v61
    %v1676 = vpop.permute.xlu0 %1675
    %1678 = vset.pattern.permute.xlu0 7
    %1679 = vperm.xlu0 %1678, %v62
    %v1680 = vpop.permute.xlu0 %1679
    %v1682 = vsel %vm1586, %v1620, 0.0
    %v1683 = vsel %vm1587, %v1620, 0.0
    %v1684 = vsel %vm1588, %v1624, 0.0
    %v1685 = vsel %vm1589, %v1624, 0.0
    %v1686 = vsel %vm1590, %v1628, 0.0
    %v1687 = vsel %vm1591, %v1628, 0.0
    %v1688 = vsel %vm1592, %v1632, 0.0
    %v1689 = vsel %vm1593, %v1632, 0.0
    %v1690 = vsel %vm1594, %v1636, 0.0
    %v1691 = vsel %vm1595, %v1636, 0.0
    %v1692 = vsel %vm1596, %v1640, 0.0
    %v1693 = vsel %vm1597, %v1640, 0.0
    %v1694 = vsel %vm1598, %v1644, 0.0
    %v1695 = vsel %vm1599, %v1644, 0.0
    %v1696 = vsel %vm1600, %v1648, 0.0
    %v1697 = vsel %vm1601, %v1648, 0.0
    %v1698 = vsel %vm1602, %v1652, 0.0
    %v1699 = vsel %vm1603, %v1652, 0.0
    %v1700 = vsel %vm1604, %v1656, 0.0
    %v1701 = vsel %vm1605, %v1656, 0.0
    %v1702 = vsel %vm1606, %v1660, 0.0
    %v1703 = vsel %vm1607, %v1660, 0.0
    %v1704 = vsel %vm1608, %v1664, 0.0
    %v1705 = vsel %vm1609, %v1664, 0.0
    %v1706 = vsel %vm1610, %v1668, 0.0
    %v1707 = vsel %vm1611, %v1668, 0.0
    %v1708 = vsel %vm1612, %v1672, 0.0
    %v1709 = vsel %vm1613, %v1672, 0.0
    %v1710 = vsel %vm1614, %v1676, 0.0
    %v1711 = vsel %vm1615, %v1676, 0.0
    %v1712 = vsel %vm1616, %v1680, 0.0
    %v1713 = vsel %vm1617, %v1680, 0.0
    %v1714 = vadd.f32 %v1506, %v1682
    %v1715 = vadd.f32 %v1507, %v1683
    %v1716 = vadd.f32 %v1508, %v1684
    %v1717 = vadd.f32 %v1509, %v1685
    %v1718 = vadd.f32 %v1510, %v1686
    %v1719 = vadd.f32 %v1511, %v1687
    %v1720 = vadd.f32 %v1512, %v1688
    %v1721 = vadd.f32 %v1513, %v1689
    %v1722 = vadd.f32 %v1514, %v1690
    %v1723 = vadd.f32 %v1515, %v1691
    %v1724 = vadd.f32 %v1516, %v1692
    %v1725 = vadd.f32 %v1517, %v1693
    %v1726 = vadd.f32 %v1518, %v1694
    %v1727 = vadd.f32 %v1519, %v1695
    %v1728 = vadd.f32 %v1520, %v1696
    %v1729 = vadd.f32 %v1521, %v1697
    %v1730 = vadd.f32 %v1522, %v1698
    %v1731 = vadd.f32 %v1523, %v1699
    %v1732 = vadd.f32 %v1524, %v1700
    %v1733 = vadd.f32 %v1525, %v1701
    %v1734 = vadd.f32 %v1526, %v1702
    %v1735 = vadd.f32 %v1527, %v1703
    %v1736 = vadd.f32 %v1528, %v1704
    %v1737 = vadd.f32 %v1529, %v1705
    %v1738 = vadd.f32 %v1530, %v1706
    %v1739 = vadd.f32 %v1531, %v1707
    %v1740 = vadd.f32 %v1532, %v1708
    %v1741 = vadd.f32 %v1533, %v1709
    %v1742 = vadd.f32 %v1534, %v1710
    %v1743 = vadd.f32 %v1535, %v1711
    %v1744 = vadd.f32 %v1536, %v1712
    %v1745 = vadd.f32 %v1537, %v1713
    %1746 = vset.pattern.permute.xlu0 8
    %1747 = vperm.xlu0 %1746, %v31
    %v1748 = vpop.permute.xlu0 %1747
    %1749 = vset.pattern.permute.xlu0 8
    %1750 = vperm.xlu0 %1749, %v32
    %v1751 = vpop.permute.xlu0 %1750
    %1752 = vset.pattern.permute.xlu0 8
    %1753 = vperm.xlu0 %1752, %v33
    %v1754 = vpop.permute.xlu0 %1753
    %1755 = vset.pattern.permute.xlu0 8
    %1756 = vperm.xlu0 %1755, %v34
    %v1757 = vpop.permute.xlu0 %1756
    %1758 = vset.pattern.permute.xlu0 8
    %1759 = vperm.xlu0 %1758, %v35
    %v1760 = vpop.permute.xlu0 %1759
    %1761 = vset.pattern.permute.xlu0 8
    %1762 = vperm.xlu0 %1761, %v36
    %v1763 = vpop.permute.xlu0 %1762
    %1764 = vset.pattern.permute.xlu0 8
    %1765 = vperm.xlu0 %1764, %v37
    %v1766 = vpop.permute.xlu0 %1765
    %1767 = vset.pattern.permute.xlu0 8
    %1768 = vperm.xlu0 %1767, %v38
    %v1769 = vpop.permute.xlu0 %1768
    %1770 = vset.pattern.permute.xlu0 8
    %1771 = vperm.xlu0 %1770, %v39
    %v1772 = vpop.permute.xlu0 %1771
    %1773 = vset.pattern.permute.xlu0 8
    %1774 = vperm.xlu0 %1773, %v40
    %v1775 = vpop.permute.xlu0 %1774
    %1776 = vset.pattern.permute.xlu0 8
    %1777 = vperm.xlu0 %1776, %v41
    %v1778 = vpop.permute.xlu0 %1777
    %1779 = vset.pattern.permute.xlu0 8
    %1780 = vperm.xlu0 %1779, %v42
    %v1781 = vpop.permute.xlu0 %1780
    %1782 = vset.pattern.permute.xlu0 8
    %1783 = vperm.xlu0 %1782, %v43
    %v1784 = vpop.permute.xlu0 %1783
    %1785 = vset.pattern.permute.xlu0 8
    %1786 = vperm.xlu0 %1785, %v44
    %v1787 = vpop.permute.xlu0 %1786
    %1788 = vset.pattern.permute.xlu0 8
    %1789 = vperm.xlu0 %1788, %v45
    %v1790 = vpop.permute.xlu0 %1789
    %1791 = vset.pattern.permute.xlu0 8
    %1792 = vperm.xlu0 %1791, %v46
    %v1793 = vpop.permute.xlu0 %1792
    %vm1794 = vcmp.eq.s32.totalorder %v1748, %v64
    %vm1795 = vcmp.eq.s32.totalorder %v1748, %v65
    %vm1796 = vcmp.eq.s32.totalorder %v1751, %v64
    %vm1797 = vcmp.eq.s32.totalorder %v1751, %v65
    %vm1798 = vcmp.eq.s32.totalorder %v1754, %v64
    %vm1799 = vcmp.eq.s32.totalorder %v1754, %v65
    %vm1800 = vcmp.eq.s32.totalorder %v1757, %v64
    %vm1801 = vcmp.eq.s32.totalorder %v1757, %v65
    %vm1802 = vcmp.eq.s32.totalorder %v1760, %v64
    %vm1803 = vcmp.eq.s32.totalorder %v1760, %v65
    %vm1804 = vcmp.eq.s32.totalorder %v1763, %v64
    %vm1805 = vcmp.eq.s32.totalorder %v1763, %v65
    %vm1806 = vcmp.eq.s32.totalorder %v1766, %v64
    %vm1807 = vcmp.eq.s32.totalorder %v1766, %v65
    %vm1808 = vcmp.eq.s32.totalorder %v1769, %v64
    %vm1809 = vcmp.eq.s32.totalorder %v1769, %v65
    %vm1810 = vcmp.eq.s32.totalorder %v1772, %v64
    %vm1811 = vcmp.eq.s32.totalorder %v1772, %v65
    %vm1812 = vcmp.eq.s32.totalorder %v1775, %v64
    %vm1813 = vcmp.eq.s32.totalorder %v1775, %v65
    %vm1814 = vcmp.eq.s32.totalorder %v1778, %v64
    %vm1815 = vcmp.eq.s32.totalorder %v1778, %v65
    %vm1816 = vcmp.eq.s32.totalorder %v1781, %v64
    %vm1817 = vcmp.eq.s32.totalorder %v1781, %v65
    %vm1818 = vcmp.eq.s32.totalorder %v1784, %v64
    %vm1819 = vcmp.eq.s32.totalorder %v1784, %v65
    %vm1820 = vcmp.eq.s32.totalorder %v1787, %v64
    %vm1821 = vcmp.eq.s32.totalorder %v1787, %v65
    %vm1822 = vcmp.eq.s32.totalorder %v1790, %v64
    %vm1823 = vcmp.eq.s32.totalorder %v1790, %v65
    %vm1824 = vcmp.eq.s32.totalorder %v1793, %v64
    %vm1825 = vcmp.eq.s32.totalorder %v1793, %v65
    %1826 = vset.pattern.permute.xlu0 8
    %1827 = vperm.xlu0 %1826, %v47
    %v1828 = vpop.permute.xlu0 %1827
    %1830 = vset.pattern.permute.xlu0 8
    %1831 = vperm.xlu0 %1830, %v48
    %v1832 = vpop.permute.xlu0 %1831
    %1834 = vset.pattern.permute.xlu0 8
    %1835 = vperm.xlu0 %1834, %v49
    %v1836 = vpop.permute.xlu0 %1835
    %1838 = vset.pattern.permute.xlu0 8
    %1839 = vperm.xlu0 %1838, %v50
    %v1840 = vpop.permute.xlu0 %1839
    %1842 = vset.pattern.permute.xlu0 8
    %1843 = vperm.xlu0 %1842, %v51
    %v1844 = vpop.permute.xlu0 %1843
    %1846 = vset.pattern.permute.xlu0 8
    %1847 = vperm.xlu0 %1846, %v52
    %v1848 = vpop.permute.xlu0 %1847
    %1850 = vset.pattern.permute.xlu0 8
    %1851 = vperm.xlu0 %1850, %v53
    %v1852 = vpop.permute.xlu0 %1851
    %1854 = vset.pattern.permute.xlu0 8
    %1855 = vperm.xlu0 %1854, %v54
    %v1856 = vpop.permute.xlu0 %1855
    %1858 = vset.pattern.permute.xlu0 8
    %1859 = vperm.xlu0 %1858, %v55
    %v1860 = vpop.permute.xlu0 %1859
    %1862 = vset.pattern.permute.xlu0 8
    %1863 = vperm.xlu0 %1862, %v56
    %v1864 = vpop.permute.xlu0 %1863
    %1866 = vset.pattern.permute.xlu0 8
    %1867 = vperm.xlu0 %1866, %v57
    %v1868 = vpop.permute.xlu0 %1867
    %1870 = vset.pattern.permute.xlu0 8
    %1871 = vperm.xlu0 %1870, %v58
    %v1872 = vpop.permute.xlu0 %1871
    %1874 = vset.pattern.permute.xlu0 8
    %1875 = vperm.xlu0 %1874, %v59
    %v1876 = vpop.permute.xlu0 %1875
    %1878 = vset.pattern.permute.xlu0 8
    %1879 = vperm.xlu0 %1878, %v60
    %v1880 = vpop.permute.xlu0 %1879
    %1882 = vset.pattern.permute.xlu0 8
    %1883 = vperm.xlu0 %1882, %v61
    %v1884 = vpop.permute.xlu0 %1883
    %1886 = vset.pattern.permute.xlu0 8
    %1887 = vperm.xlu0 %1886, %v62
    %v1888 = vpop.permute.xlu0 %1887
    %v1890 = vsel %vm1794, %v1828, 0.0
    %v1891 = vsel %vm1795, %v1828, 0.0
    %v1892 = vsel %vm1796, %v1832, 0.0
    %v1893 = vsel %vm1797, %v1832, 0.0
    %v1894 = vsel %vm1798, %v1836, 0.0
    %v1895 = vsel %vm1799, %v1836, 0.0
    %v1896 = vsel %vm1800, %v1840, 0.0
    %v1897 = vsel %vm1801, %v1840, 0.0
    %v1898 = vsel %vm1802, %v1844, 0.0
    %v1899 = vsel %vm1803, %v1844, 0.0
    %v1900 = vsel %vm1804, %v1848, 0.0
    %v1901 = vsel %vm1805, %v1848, 0.0
    %v1902 = vsel %vm1806, %v1852, 0.0
    %v1903 = vsel %vm1807, %v1852, 0.0
    %v1904 = vsel %vm1808, %v1856, 0.0
    %v1905 = vsel %vm1809, %v1856, 0.0
    %v1906 = vsel %vm1810, %v1860, 0.0
    %v1907 = vsel %vm1811, %v1860, 0.0
    %v1908 = vsel %vm1812, %v1864, 0.0
    %v1909 = vsel %vm1813, %v1864, 0.0
    %v1910 = vsel %vm1814, %v1868, 0.0
    %v1911 = vsel %vm1815, %v1868, 0.0
    %v1912 = vsel %vm1816, %v1872, 0.0
    %v1913 = vsel %vm1817, %v1872, 0.0
    %v1914 = vsel %vm1818, %v1876, 0.0
    %v1915 = vsel %vm1819, %v1876, 0.0
    %v1916 = vsel %vm1820, %v1880, 0.0
    %v1917 = vsel %vm1821, %v1880, 0.0
    %v1918 = vsel %vm1822, %v1884, 0.0
    %v1919 = vsel %vm1823, %v1884, 0.0
    %v1920 = vsel %vm1824, %v1888, 0.0
    %v1921 = vsel %vm1825, %v1888, 0.0
    %v1922 = vadd.f32 %v1714, %v1890
    %v1923 = vadd.f32 %v1715, %v1891
    %v1924 = vadd.f32 %v1716, %v1892
    %v1925 = vadd.f32 %v1717, %v1893
    %v1926 = vadd.f32 %v1718, %v1894
    %v1927 = vadd.f32 %v1719, %v1895
    %v1928 = vadd.f32 %v1720, %v1896
    %v1929 = vadd.f32 %v1721, %v1897
    %v1930 = vadd.f32 %v1722, %v1898
    %v1931 = vadd.f32 %v1723, %v1899
    %v1932 = vadd.f32 %v1724, %v1900
    %v1933 = vadd.f32 %v1725, %v1901
    %v1934 = vadd.f32 %v1726, %v1902
    %v1935 = vadd.f32 %v1727, %v1903
    %v1936 = vadd.f32 %v1728, %v1904
    %v1937 = vadd.f32 %v1729, %v1905
    %v1938 = vadd.f32 %v1730, %v1906
    %v1939 = vadd.f32 %v1731, %v1907
    %v1940 = vadd.f32 %v1732, %v1908
    %v1941 = vadd.f32 %v1733, %v1909
    %v1942 = vadd.f32 %v1734, %v1910
    %v1943 = vadd.f32 %v1735, %v1911
    %v1944 = vadd.f32 %v1736, %v1912
    %v1945 = vadd.f32 %v1737, %v1913
    %v1946 = vadd.f32 %v1738, %v1914
    %v1947 = vadd.f32 %v1739, %v1915
    %v1948 = vadd.f32 %v1740, %v1916
    %v1949 = vadd.f32 %v1741, %v1917
    %v1950 = vadd.f32 %v1742, %v1918
    %v1951 = vadd.f32 %v1743, %v1919
    %v1952 = vadd.f32 %v1744, %v1920
    %v1953 = vadd.f32 %v1745, %v1921
    %1954 = vset.pattern.permute.xlu0 9
    %1955 = vperm.xlu0 %1954, %v31
    %v1956 = vpop.permute.xlu0 %1955
    %1957 = vset.pattern.permute.xlu0 9
    %1958 = vperm.xlu0 %1957, %v32
    %v1959 = vpop.permute.xlu0 %1958
    %1960 = vset.pattern.permute.xlu0 9
    %1961 = vperm.xlu0 %1960, %v33
    %v1962 = vpop.permute.xlu0 %1961
    %1963 = vset.pattern.permute.xlu0 9
    %1964 = vperm.xlu0 %1963, %v34
    %v1965 = vpop.permute.xlu0 %1964
    %1966 = vset.pattern.permute.xlu0 9
    %1967 = vperm.xlu0 %1966, %v35
    %v1968 = vpop.permute.xlu0 %1967
    %1969 = vset.pattern.permute.xlu0 9
    %1970 = vperm.xlu0 %1969, %v36
    %v1971 = vpop.permute.xlu0 %1970
    %1972 = vset.pattern.permute.xlu0 9
    %1973 = vperm.xlu0 %1972, %v37
    %v1974 = vpop.permute.xlu0 %1973
    %1975 = vset.pattern.permute.xlu0 9
    %1976 = vperm.xlu0 %1975, %v38
    %v1977 = vpop.permute.xlu0 %1976
    %1978 = vset.pattern.permute.xlu0 9
    %1979 = vperm.xlu0 %1978, %v39
    %v1980 = vpop.permute.xlu0 %1979
    %1981 = vset.pattern.permute.xlu0 9
    %1982 = vperm.xlu0 %1981, %v40
    %v1983 = vpop.permute.xlu0 %1982
    %1984 = vset.pattern.permute.xlu0 9
    %1985 = vperm.xlu0 %1984, %v41
    %v1986 = vpop.permute.xlu0 %1985
    %1987 = vset.pattern.permute.xlu0 9
    %1988 = vperm.xlu0 %1987, %v42
    %v1989 = vpop.permute.xlu0 %1988
    %1990 = vset.pattern.permute.xlu0 9
    %1991 = vperm.xlu0 %1990, %v43
    %v1992 = vpop.permute.xlu0 %1991
    %1993 = vset.pattern.permute.xlu0 9
    %1994 = vperm.xlu0 %1993, %v44
    %v1995 = vpop.permute.xlu0 %1994
    %1996 = vset.pattern.permute.xlu0 9
    %1997 = vperm.xlu0 %1996, %v45
    %v1998 = vpop.permute.xlu0 %1997
    %1999 = vset.pattern.permute.xlu0 9
    %2000 = vperm.xlu0 %1999, %v46
    %v2001 = vpop.permute.xlu0 %2000
    %vm2002 = vcmp.eq.s32.totalorder %v1956, %v64
    %vm2003 = vcmp.eq.s32.totalorder %v1956, %v65
    %vm2004 = vcmp.eq.s32.totalorder %v1959, %v64
    %vm2005 = vcmp.eq.s32.totalorder %v1959, %v65
    %vm2006 = vcmp.eq.s32.totalorder %v1962, %v64
    %vm2007 = vcmp.eq.s32.totalorder %v1962, %v65
    %vm2008 = vcmp.eq.s32.totalorder %v1965, %v64
    %vm2009 = vcmp.eq.s32.totalorder %v1965, %v65
    %vm2010 = vcmp.eq.s32.totalorder %v1968, %v64
    %vm2011 = vcmp.eq.s32.totalorder %v1968, %v65
    %vm2012 = vcmp.eq.s32.totalorder %v1971, %v64
    %vm2013 = vcmp.eq.s32.totalorder %v1971, %v65
    %vm2014 = vcmp.eq.s32.totalorder %v1974, %v64
    %vm2015 = vcmp.eq.s32.totalorder %v1974, %v65
    %vm2016 = vcmp.eq.s32.totalorder %v1977, %v64
    %vm2017 = vcmp.eq.s32.totalorder %v1977, %v65
    %vm2018 = vcmp.eq.s32.totalorder %v1980, %v64
    %vm2019 = vcmp.eq.s32.totalorder %v1980, %v65
    %vm2020 = vcmp.eq.s32.totalorder %v1983, %v64
    %vm2021 = vcmp.eq.s32.totalorder %v1983, %v65
    %vm2022 = vcmp.eq.s32.totalorder %v1986, %v64
    %vm2023 = vcmp.eq.s32.totalorder %v1986, %v65
    %vm2024 = vcmp.eq.s32.totalorder %v1989, %v64
    %vm2025 = vcmp.eq.s32.totalorder %v1989, %v65
    %vm2026 = vcmp.eq.s32.totalorder %v1992, %v64
    %vm2027 = vcmp.eq.s32.totalorder %v1992, %v65
    %vm2028 = vcmp.eq.s32.totalorder %v1995, %v64
    %vm2029 = vcmp.eq.s32.totalorder %v1995, %v65
    %vm2030 = vcmp.eq.s32.totalorder %v1998, %v64
    %vm2031 = vcmp.eq.s32.totalorder %v1998, %v65
    %vm2032 = vcmp.eq.s32.totalorder %v2001, %v64
    %vm2033 = vcmp.eq.s32.totalorder %v2001, %v65
    %2034 = vset.pattern.permute.xlu0 9
    %2035 = vperm.xlu0 %2034, %v47
    %v2036 = vpop.permute.xlu0 %2035
    %2038 = vset.pattern.permute.xlu0 9
    %2039 = vperm.xlu0 %2038, %v48
    %v2040 = vpop.permute.xlu0 %2039
    %2042 = vset.pattern.permute.xlu0 9
    %2043 = vperm.xlu0 %2042, %v49
    %v2044 = vpop.permute.xlu0 %2043
    %2046 = vset.pattern.permute.xlu0 9
    %2047 = vperm.xlu0 %2046, %v50
    %v2048 = vpop.permute.xlu0 %2047
    %2050 = vset.pattern.permute.xlu0 9
    %2051 = vperm.xlu0 %2050, %v51
    %v2052 = vpop.permute.xlu0 %2051
    %2054 = vset.pattern.permute.xlu0 9
    %2055 = vperm.xlu0 %2054, %v52
    %v2056 = vpop.permute.xlu0 %2055
    %2058 = vset.pattern.permute.xlu0 9
    %2059 = vperm.xlu0 %2058, %v53
    %v2060 = vpop.permute.xlu0 %2059
    %2062 = vset.pattern.permute.xlu0 9
    %2063 = vperm.xlu0 %2062, %v54
    %v2064 = vpop.permute.xlu0 %2063
    %2066 = vset.pattern.permute.xlu0 9
    %2067 = vperm.xlu0 %2066, %v55
    %v2068 = vpop.permute.xlu0 %2067
    %2070 = vset.pattern.permute.xlu0 9
    %2071 = vperm.xlu0 %2070, %v56
    %v2072 = vpop.permute.xlu0 %2071
    %2074 = vset.pattern.permute.xlu0 9
    %2075 = vperm.xlu0 %2074, %v57
    %v2076 = vpop.permute.xlu0 %2075
    %2078 = vset.pattern.permute.xlu0 9
    %2079 = vperm.xlu0 %2078, %v58
    %v2080 = vpop.permute.xlu0 %2079
    %2082 = vset.pattern.permute.xlu0 9
    %2083 = vperm.xlu0 %2082, %v59
    %v2084 = vpop.permute.xlu0 %2083
    %2086 = vset.pattern.permute.xlu0 9
    %2087 = vperm.xlu0 %2086, %v60
    %v2088 = vpop.permute.xlu0 %2087
    %2090 = vset.pattern.permute.xlu0 9
    %2091 = vperm.xlu0 %2090, %v61
    %v2092 = vpop.permute.xlu0 %2091
    %2094 = vset.pattern.permute.xlu0 9
    %2095 = vperm.xlu0 %2094, %v62
    %v2096 = vpop.permute.xlu0 %2095
    %v2098 = vsel %vm2002, %v2036, 0.0
    %v2099 = vsel %vm2003, %v2036, 0.0
    %v2100 = vsel %vm2004, %v2040, 0.0
    %v2101 = vsel %vm2005, %v2040, 0.0
    %v2102 = vsel %vm2006, %v2044, 0.0
    %v2103 = vsel %vm2007, %v2044, 0.0
    %v2104 = vsel %vm2008, %v2048, 0.0
    %v2105 = vsel %vm2009, %v2048, 0.0
    %v2106 = vsel %vm2010, %v2052, 0.0
    %v2107 = vsel %vm2011, %v2052, 0.0
    %v2108 = vsel %vm2012, %v2056, 0.0
    %v2109 = vsel %vm2013, %v2056, 0.0
    %v2110 = vsel %vm2014, %v2060, 0.0
    %v2111 = vsel %vm2015, %v2060, 0.0
    %v2112 = vsel %vm2016, %v2064, 0.0
    %v2113 = vsel %vm2017, %v2064, 0.0
    %v2114 = vsel %vm2018, %v2068, 0.0
    %v2115 = vsel %vm2019, %v2068, 0.0
    %v2116 = vsel %vm2020, %v2072, 0.0
    %v2117 = vsel %vm2021, %v2072, 0.0
    %v2118 = vsel %vm2022, %v2076, 0.0
    %v2119 = vsel %vm2023, %v2076, 0.0
    %v2120 = vsel %vm2024, %v2080, 0.0
    %v2121 = vsel %vm2025, %v2080, 0.0
    %v2122 = vsel %vm2026, %v2084, 0.0
    %v2123 = vsel %vm2027, %v2084, 0.0
    %v2124 = vsel %vm2028, %v2088, 0.0
    %v2125 = vsel %vm2029, %v2088, 0.0
    %v2126 = vsel %vm2030, %v2092, 0.0
    %v2127 = vsel %vm2031, %v2092, 0.0
    %v2128 = vsel %vm2032, %v2096, 0.0
    %v2129 = vsel %vm2033, %v2096, 0.0
    %v2130 = vadd.f32 %v1922, %v2098
    %v2131 = vadd.f32 %v1923, %v2099
    %v2132 = vadd.f32 %v1924, %v2100
    %v2133 = vadd.f32 %v1925, %v2101
    %v2134 = vadd.f32 %v1926, %v2102
    %v2135 = vadd.f32 %v1927, %v2103
    %v2136 = vadd.f32 %v1928, %v2104
    %v2137 = vadd.f32 %v1929, %v2105
    %v2138 = vadd.f32 %v1930, %v2106
    %v2139 = vadd.f32 %v1931, %v2107
    %v2140 = vadd.f32 %v1932, %v2108
    %v2141 = vadd.f32 %v1933, %v2109
    %v2142 = vadd.f32 %v1934, %v2110
    %v2143 = vadd.f32 %v1935, %v2111
    %v2144 = vadd.f32 %v1936, %v2112
    %v2145 = vadd.f32 %v1937, %v2113
    %v2146 = vadd.f32 %v1938, %v2114
    %v2147 = vadd.f32 %v1939, %v2115
    %v2148 = vadd.f32 %v1940, %v2116
    %v2149 = vadd.f32 %v1941, %v2117
    %v2150 = vadd.f32 %v1942, %v2118
    %v2151 = vadd.f32 %v1943, %v2119
    %v2152 = vadd.f32 %v1944, %v2120
    %v2153 = vadd.f32 %v1945, %v2121
    %v2154 = vadd.f32 %v1946, %v2122
    %v2155 = vadd.f32 %v1947, %v2123
    %v2156 = vadd.f32 %v1948, %v2124
    %v2157 = vadd.f32 %v1949, %v2125
    %v2158 = vadd.f32 %v1950, %v2126
    %v2159 = vadd.f32 %v1951, %v2127
    %v2160 = vadd.f32 %v1952, %v2128
    %v2161 = vadd.f32 %v1953, %v2129
    %2162 = vset.pattern.permute.xlu0 10
    %2163 = vperm.xlu0 %2162, %v31
    %v2164 = vpop.permute.xlu0 %2163
    %2165 = vset.pattern.permute.xlu0 10
    %2166 = vperm.xlu0 %2165, %v32
    %v2167 = vpop.permute.xlu0 %2166
    %2168 = vset.pattern.permute.xlu0 10
    %2169 = vperm.xlu0 %2168, %v33
    %v2170 = vpop.permute.xlu0 %2169
    %2171 = vset.pattern.permute.xlu0 10
    %2172 = vperm.xlu0 %2171, %v34
    %v2173 = vpop.permute.xlu0 %2172
    %2174 = vset.pattern.permute.xlu0 10
    %2175 = vperm.xlu0 %2174, %v35
    %v2176 = vpop.permute.xlu0 %2175
    %2177 = vset.pattern.permute.xlu0 10
    %2178 = vperm.xlu0 %2177, %v36
    %v2179 = vpop.permute.xlu0 %2178
    %2180 = vset.pattern.permute.xlu0 10
    %2181 = vperm.xlu0 %2180, %v37
    %v2182 = vpop.permute.xlu0 %2181
    %2183 = vset.pattern.permute.xlu0 10
    %2184 = vperm.xlu0 %2183, %v38
    %v2185 = vpop.permute.xlu0 %2184
    %2186 = vset.pattern.permute.xlu0 10
    %2187 = vperm.xlu0 %2186, %v39
    %v2188 = vpop.permute.xlu0 %2187
    %2189 = vset.pattern.permute.xlu0 10
    %2190 = vperm.xlu0 %2189, %v40
    %v2191 = vpop.permute.xlu0 %2190
    %2192 = vset.pattern.permute.xlu0 10
    %2193 = vperm.xlu0 %2192, %v41
    %v2194 = vpop.permute.xlu0 %2193
    %2195 = vset.pattern.permute.xlu0 10
    %2196 = vperm.xlu0 %2195, %v42
    %v2197 = vpop.permute.xlu0 %2196
    %2198 = vset.pattern.permute.xlu0 10
    %2199 = vperm.xlu0 %2198, %v43
    %v2200 = vpop.permute.xlu0 %2199
    %2201 = vset.pattern.permute.xlu0 10
    %2202 = vperm.xlu0 %2201, %v44
    %v2203 = vpop.permute.xlu0 %2202
    %2204 = vset.pattern.permute.xlu0 10
    %2205 = vperm.xlu0 %2204, %v45
    %v2206 = vpop.permute.xlu0 %2205
    %2207 = vset.pattern.permute.xlu0 10
    %2208 = vperm.xlu0 %2207, %v46
    %v2209 = vpop.permute.xlu0 %2208
    %vm2210 = vcmp.eq.s32.totalorder %v2164, %v64
    %vm2211 = vcmp.eq.s32.totalorder %v2164, %v65
    %vm2212 = vcmp.eq.s32.totalorder %v2167, %v64
    %vm2213 = vcmp.eq.s32.totalorder %v2167, %v65
    %vm2214 = vcmp.eq.s32.totalorder %v2170, %v64
    %vm2215 = vcmp.eq.s32.totalorder %v2170, %v65
    %vm2216 = vcmp.eq.s32.totalorder %v2173, %v64
    %vm2217 = vcmp.eq.s32.totalorder %v2173, %v65
    %vm2218 = vcmp.eq.s32.totalorder %v2176, %v64
    %vm2219 = vcmp.eq.s32.totalorder %v2176, %v65
    %vm2220 = vcmp.eq.s32.totalorder %v2179, %v64
    %vm2221 = vcmp.eq.s32.totalorder %v2179, %v65
    %vm2222 = vcmp.eq.s32.totalorder %v2182, %v64
    %vm2223 = vcmp.eq.s32.totalorder %v2182, %v65
    %vm2224 = vcmp.eq.s32.totalorder %v2185, %v64
    %vm2225 = vcmp.eq.s32.totalorder %v2185, %v65
    %vm2226 = vcmp.eq.s32.totalorder %v2188, %v64
    %vm2227 = vcmp.eq.s32.totalorder %v2188, %v65
    %vm2228 = vcmp.eq.s32.totalorder %v2191, %v64
    %vm2229 = vcmp.eq.s32.totalorder %v2191, %v65
    %vm2230 = vcmp.eq.s32.totalorder %v2194, %v64
    %vm2231 = vcmp.eq.s32.totalorder %v2194, %v65
    %vm2232 = vcmp.eq.s32.totalorder %v2197, %v64
    %vm2233 = vcmp.eq.s32.totalorder %v2197, %v65
    %vm2234 = vcmp.eq.s32.totalorder %v2200, %v64
    %vm2235 = vcmp.eq.s32.totalorder %v2200, %v65
    %vm2236 = vcmp.eq.s32.totalorder %v2203, %v64
    %vm2237 = vcmp.eq.s32.totalorder %v2203, %v65
    %vm2238 = vcmp.eq.s32.totalorder %v2206, %v64
    %vm2239 = vcmp.eq.s32.totalorder %v2206, %v65
    %vm2240 = vcmp.eq.s32.totalorder %v2209, %v64
    %vm2241 = vcmp.eq.s32.totalorder %v2209, %v65
    %2242 = vset.pattern.permute.xlu0 10
    %2243 = vperm.xlu0 %2242, %v47
    %v2244 = vpop.permute.xlu0 %2243
    %2246 = vset.pattern.permute.xlu0 10
    %2247 = vperm.xlu0 %2246, %v48
    %v2248 = vpop.permute.xlu0 %2247
    %2250 = vset.pattern.permute.xlu0 10
    %2251 = vperm.xlu0 %2250, %v49
    %v2252 = vpop.permute.xlu0 %2251
    %2254 = vset.pattern.permute.xlu0 10
    %2255 = vperm.xlu0 %2254, %v50
    %v2256 = vpop.permute.xlu0 %2255
    %2258 = vset.pattern.permute.xlu0 10
    %2259 = vperm.xlu0 %2258, %v51
    %v2260 = vpop.permute.xlu0 %2259
    %2262 = vset.pattern.permute.xlu0 10
    %2263 = vperm.xlu0 %2262, %v52
    %v2264 = vpop.permute.xlu0 %2263
    %2266 = vset.pattern.permute.xlu0 10
    %2267 = vperm.xlu0 %2266, %v53
    %v2268 = vpop.permute.xlu0 %2267
    %2270 = vset.pattern.permute.xlu0 10
    %2271 = vperm.xlu0 %2270, %v54
    %v2272 = vpop.permute.xlu0 %2271
    %2274 = vset.pattern.permute.xlu0 10
    %2275 = vperm.xlu0 %2274, %v55
    %v2276 = vpop.permute.xlu0 %2275
    %2278 = vset.pattern.permute.xlu0 10
    %2279 = vperm.xlu0 %2278, %v56
    %v2280 = vpop.permute.xlu0 %2279
    %2282 = vset.pattern.permute.xlu0 10
    %2283 = vperm.xlu0 %2282, %v57
    %v2284 = vpop.permute.xlu0 %2283
    %2286 = vset.pattern.permute.xlu0 10
    %2287 = vperm.xlu0 %2286, %v58
    %v2288 = vpop.permute.xlu0 %2287
    %2290 = vset.pattern.permute.xlu0 10
    %2291 = vperm.xlu0 %2290, %v59
    %v2292 = vpop.permute.xlu0 %2291
    %2294 = vset.pattern.permute.xlu0 10
    %2295 = vperm.xlu0 %2294, %v60
    %v2296 = vpop.permute.xlu0 %2295
    %2298 = vset.pattern.permute.xlu0 10
    %2299 = vperm.xlu0 %2298, %v61
    %v2300 = vpop.permute.xlu0 %2299
    %2302 = vset.pattern.permute.xlu0 10
    %2303 = vperm.xlu0 %2302, %v62
    %v2304 = vpop.permute.xlu0 %2303
    %v2306 = vsel %vm2210, %v2244, 0.0
    %v2307 = vsel %vm2211, %v2244, 0.0
    %v2308 = vsel %vm2212, %v2248, 0.0
    %v2309 = vsel %vm2213, %v2248, 0.0
    %v2310 = vsel %vm2214, %v2252, 0.0
    %v2311 = vsel %vm2215, %v2252, 0.0
    %v2312 = vsel %vm2216, %v2256, 0.0
    %v2313 = vsel %vm2217, %v2256, 0.0
    %v2314 = vsel %vm2218, %v2260, 0.0
    %v2315 = vsel %vm2219, %v2260, 0.0
    %v2316 = vsel %vm2220, %v2264, 0.0
    %v2317 = vsel %vm2221, %v2264, 0.0
    %v2318 = vsel %vm2222, %v2268, 0.0
    %v2319 = vsel %vm2223, %v2268, 0.0
    %v2320 = vsel %vm2224, %v2272, 0.0
    %v2321 = vsel %vm2225, %v2272, 0.0
    %v2322 = vsel %vm2226, %v2276, 0.0
    %v2323 = vsel %vm2227, %v2276, 0.0
    %v2324 = vsel %vm2228, %v2280, 0.0
    %v2325 = vsel %vm2229, %v2280, 0.0
    %v2326 = vsel %vm2230, %v2284, 0.0
    %v2327 = vsel %vm2231, %v2284, 0.0
    %v2328 = vsel %vm2232, %v2288, 0.0
    %v2329 = vsel %vm2233, %v2288, 0.0
    %v2330 = vsel %vm2234, %v2292, 0.0
    %v2331 = vsel %vm2235, %v2292, 0.0
    %v2332 = vsel %vm2236, %v2296, 0.0
    %v2333 = vsel %vm2237, %v2296, 0.0
    %v2334 = vsel %vm2238, %v2300, 0.0
    %v2335 = vsel %vm2239, %v2300, 0.0
    %v2336 = vsel %vm2240, %v2304, 0.0
    %v2337 = vsel %vm2241, %v2304, 0.0
    %v2338 = vadd.f32 %v2130, %v2306
    %v2339 = vadd.f32 %v2131, %v2307
    %v2340 = vadd.f32 %v2132, %v2308
    %v2341 = vadd.f32 %v2133, %v2309
    %v2342 = vadd.f32 %v2134, %v2310
    %v2343 = vadd.f32 %v2135, %v2311
    %v2344 = vadd.f32 %v2136, %v2312
    %v2345 = vadd.f32 %v2137, %v2313
    %v2346 = vadd.f32 %v2138, %v2314
    %v2347 = vadd.f32 %v2139, %v2315
    %v2348 = vadd.f32 %v2140, %v2316
    %v2349 = vadd.f32 %v2141, %v2317
    %v2350 = vadd.f32 %v2142, %v2318
    %v2351 = vadd.f32 %v2143, %v2319
    %v2352 = vadd.f32 %v2144, %v2320
    %v2353 = vadd.f32 %v2145, %v2321
    %v2354 = vadd.f32 %v2146, %v2322
    %v2355 = vadd.f32 %v2147, %v2323
    %v2356 = vadd.f32 %v2148, %v2324
    %v2357 = vadd.f32 %v2149, %v2325
    %v2358 = vadd.f32 %v2150, %v2326
    %v2359 = vadd.f32 %v2151, %v2327
    %v2360 = vadd.f32 %v2152, %v2328
    %v2361 = vadd.f32 %v2153, %v2329
    %v2362 = vadd.f32 %v2154, %v2330
    %v2363 = vadd.f32 %v2155, %v2331
    %v2364 = vadd.f32 %v2156, %v2332
    %v2365 = vadd.f32 %v2157, %v2333
    %v2366 = vadd.f32 %v2158, %v2334
    %v2367 = vadd.f32 %v2159, %v2335
    %v2368 = vadd.f32 %v2160, %v2336
    %v2369 = vadd.f32 %v2161, %v2337
    %2370 = vset.pattern.permute.xlu0 11
    %2371 = vperm.xlu0 %2370, %v31
    %v2372 = vpop.permute.xlu0 %2371
    %2373 = vset.pattern.permute.xlu0 11
    %2374 = vperm.xlu0 %2373, %v32
    %v2375 = vpop.permute.xlu0 %2374
    %2376 = vset.pattern.permute.xlu0 11
    %2377 = vperm.xlu0 %2376, %v33
    %v2378 = vpop.permute.xlu0 %2377
    %2379 = vset.pattern.permute.xlu0 11
    %2380 = vperm.xlu0 %2379, %v34
    %v2381 = vpop.permute.xlu0 %2380
    %2382 = vset.pattern.permute.xlu0 11
    %2383 = vperm.xlu0 %2382, %v35
    %v2384 = vpop.permute.xlu0 %2383
    %2385 = vset.pattern.permute.xlu0 11
    %2386 = vperm.xlu0 %2385, %v36
    %v2387 = vpop.permute.xlu0 %2386
    %2388 = vset.pattern.permute.xlu0 11
    %2389 = vperm.xlu0 %2388, %v37
    %v2390 = vpop.permute.xlu0 %2389
    %2391 = vset.pattern.permute.xlu0 11
    %2392 = vperm.xlu0 %2391, %v38
    %v2393 = vpop.permute.xlu0 %2392
    %2394 = vset.pattern.permute.xlu0 11
    %2395 = vperm.xlu0 %2394, %v39
    %v2396 = vpop.permute.xlu0 %2395
    %2397 = vset.pattern.permute.xlu0 11
    %2398 = vperm.xlu0 %2397, %v40
    %v2399 = vpop.permute.xlu0 %2398
    %2400 = vset.pattern.permute.xlu0 11
    %2401 = vperm.xlu0 %2400, %v41
    %v2402 = vpop.permute.xlu0 %2401
    %2403 = vset.pattern.permute.xlu0 11
    %2404 = vperm.xlu0 %2403, %v42
    %v2405 = vpop.permute.xlu0 %2404
    %2406 = vset.pattern.permute.xlu0 11
    %2407 = vperm.xlu0 %2406, %v43
    %v2408 = vpop.permute.xlu0 %2407
    %2409 = vset.pattern.permute.xlu0 11
    %2410 = vperm.xlu0 %2409, %v44
    %v2411 = vpop.permute.xlu0 %2410
    %2412 = vset.pattern.permute.xlu0 11
    %2413 = vperm.xlu0 %2412, %v45
    %v2414 = vpop.permute.xlu0 %2413
    %2415 = vset.pattern.permute.xlu0 11
    %2416 = vperm.xlu0 %2415, %v46
    %v2417 = vpop.permute.xlu0 %2416
    %vm2418 = vcmp.eq.s32.totalorder %v2372, %v64
    %vm2419 = vcmp.eq.s32.totalorder %v2372, %v65
    %vm2420 = vcmp.eq.s32.totalorder %v2375, %v64
    %vm2421 = vcmp.eq.s32.totalorder %v2375, %v65
    %vm2422 = vcmp.eq.s32.totalorder %v2378, %v64
    %vm2423 = vcmp.eq.s32.totalorder %v2378, %v65
    %vm2424 = vcmp.eq.s32.totalorder %v2381, %v64
    %vm2425 = vcmp.eq.s32.totalorder %v2381, %v65
    %vm2426 = vcmp.eq.s32.totalorder %v2384, %v64
    %vm2427 = vcmp.eq.s32.totalorder %v2384, %v65
    %vm2428 = vcmp.eq.s32.totalorder %v2387, %v64
    %vm2429 = vcmp.eq.s32.totalorder %v2387, %v65
    %vm2430 = vcmp.eq.s32.totalorder %v2390, %v64
    %vm2431 = vcmp.eq.s32.totalorder %v2390, %v65
    %vm2432 = vcmp.eq.s32.totalorder %v2393, %v64
    %vm2433 = vcmp.eq.s32.totalorder %v2393, %v65
    %vm2434 = vcmp.eq.s32.totalorder %v2396, %v64
    %vm2435 = vcmp.eq.s32.totalorder %v2396, %v65
    %vm2436 = vcmp.eq.s32.totalorder %v2399, %v64
    %vm2437 = vcmp.eq.s32.totalorder %v2399, %v65
    %vm2438 = vcmp.eq.s32.totalorder %v2402, %v64
    %vm2439 = vcmp.eq.s32.totalorder %v2402, %v65
    %vm2440 = vcmp.eq.s32.totalorder %v2405, %v64
    %vm2441 = vcmp.eq.s32.totalorder %v2405, %v65
    %vm2442 = vcmp.eq.s32.totalorder %v2408, %v64
    %vm2443 = vcmp.eq.s32.totalorder %v2408, %v65
    %vm2444 = vcmp.eq.s32.totalorder %v2411, %v64
    %vm2445 = vcmp.eq.s32.totalorder %v2411, %v65
    %vm2446 = vcmp.eq.s32.totalorder %v2414, %v64
    %vm2447 = vcmp.eq.s32.totalorder %v2414, %v65
    %vm2448 = vcmp.eq.s32.totalorder %v2417, %v64
    %vm2449 = vcmp.eq.s32.totalorder %v2417, %v65
    %2450 = vset.pattern.permute.xlu0 11
    %2451 = vperm.xlu0 %2450, %v47
    %v2452 = vpop.permute.xlu0 %2451
    %2454 = vset.pattern.permute.xlu0 11
    %2455 = vperm.xlu0 %2454, %v48
    %v2456 = vpop.permute.xlu0 %2455
    %2458 = vset.pattern.permute.xlu0 11
    %2459 = vperm.xlu0 %2458, %v49
    %v2460 = vpop.permute.xlu0 %2459
    %2462 = vset.pattern.permute.xlu0 11
    %2463 = vperm.xlu0 %2462, %v50
    %v2464 = vpop.permute.xlu0 %2463
    %2466 = vset.pattern.permute.xlu0 11
    %2467 = vperm.xlu0 %2466, %v51
    %v2468 = vpop.permute.xlu0 %2467
    %2470 = vset.pattern.permute.xlu0 11
    %2471 = vperm.xlu0 %2470, %v52
    %v2472 = vpop.permute.xlu0 %2471
    %2474 = vset.pattern.permute.xlu0 11
    %2475 = vperm.xlu0 %2474, %v53
    %v2476 = vpop.permute.xlu0 %2475
    %2478 = vset.pattern.permute.xlu0 11
    %2479 = vperm.xlu0 %2478, %v54
    %v2480 = vpop.permute.xlu0 %2479
    %2482 = vset.pattern.permute.xlu0 11
    %2483 = vperm.xlu0 %2482, %v55
    %v2484 = vpop.permute.xlu0 %2483
    %2486 = vset.pattern.permute.xlu0 11
    %2487 = vperm.xlu0 %2486, %v56
    %v2488 = vpop.permute.xlu0 %2487
    %2490 = vset.pattern.permute.xlu0 11
    %2491 = vperm.xlu0 %2490, %v57
    %v2492 = vpop.permute.xlu0 %2491
    %2494 = vset.pattern.permute.xlu0 11
    %2495 = vperm.xlu0 %2494, %v58
    %v2496 = vpop.permute.xlu0 %2495
    %2498 = vset.pattern.permute.xlu0 11
    %2499 = vperm.xlu0 %2498, %v59
    %v2500 = vpop.permute.xlu0 %2499
    %2502 = vset.pattern.permute.xlu0 11
    %2503 = vperm.xlu0 %2502, %v60
    %v2504 = vpop.permute.xlu0 %2503
    %2506 = vset.pattern.permute.xlu0 11
    %2507 = vperm.xlu0 %2506, %v61
    %v2508 = vpop.permute.xlu0 %2507
    %2510 = vset.pattern.permute.xlu0 11
    %2511 = vperm.xlu0 %2510, %v62
    %v2512 = vpop.permute.xlu0 %2511
    %v2514 = vsel %vm2418, %v2452, 0.0
    %v2515 = vsel %vm2419, %v2452, 0.0
    %v2516 = vsel %vm2420, %v2456, 0.0
    %v2517 = vsel %vm2421, %v2456, 0.0
    %v2518 = vsel %vm2422, %v2460, 0.0
    %v2519 = vsel %vm2423, %v2460, 0.0
    %v2520 = vsel %vm2424, %v2464, 0.0
    %v2521 = vsel %vm2425, %v2464, 0.0
    %v2522 = vsel %vm2426, %v2468, 0.0
    %v2523 = vsel %vm2427, %v2468, 0.0
    %v2524 = vsel %vm2428, %v2472, 0.0
    %v2525 = vsel %vm2429, %v2472, 0.0
    %v2526 = vsel %vm2430, %v2476, 0.0
    %v2527 = vsel %vm2431, %v2476, 0.0
    %v2528 = vsel %vm2432, %v2480, 0.0
    %v2529 = vsel %vm2433, %v2480, 0.0
    %v2530 = vsel %vm2434, %v2484, 0.0
    %v2531 = vsel %vm2435, %v2484, 0.0
    %v2532 = vsel %vm2436, %v2488, 0.0
    %v2533 = vsel %vm2437, %v2488, 0.0
    %v2534 = vsel %vm2438, %v2492, 0.0
    %v2535 = vsel %vm2439, %v2492, 0.0
    %v2536 = vsel %vm2440, %v2496, 0.0
    %v2537 = vsel %vm2441, %v2496, 0.0
    %v2538 = vsel %vm2442, %v2500, 0.0
    %v2539 = vsel %vm2443, %v2500, 0.0
    %v2540 = vsel %vm2444, %v2504, 0.0
    %v2541 = vsel %vm2445, %v2504, 0.0
    %v2542 = vsel %vm2446, %v2508, 0.0
    %v2543 = vsel %vm2447, %v2508, 0.0
    %v2544 = vsel %vm2448, %v2512, 0.0
    %v2545 = vsel %vm2449, %v2512, 0.0
    %v2546 = vadd.f32 %v2338, %v2514
    %v2547 = vadd.f32 %v2339, %v2515
    %v2548 = vadd.f32 %v2340, %v2516
    %v2549 = vadd.f32 %v2341, %v2517
    %v2550 = vadd.f32 %v2342, %v2518
    %v2551 = vadd.f32 %v2343, %v2519
    %v2552 = vadd.f32 %v2344, %v2520
    %v2553 = vadd.f32 %v2345, %v2521
    %v2554 = vadd.f32 %v2346, %v2522
    %v2555 = vadd.f32 %v2347, %v2523
    %v2556 = vadd.f32 %v2348, %v2524
    %v2557 = vadd.f32 %v2349, %v2525
    %v2558 = vadd.f32 %v2350, %v2526
    %v2559 = vadd.f32 %v2351, %v2527
    %v2560 = vadd.f32 %v2352, %v2528
    %v2561 = vadd.f32 %v2353, %v2529
    %v2562 = vadd.f32 %v2354, %v2530
    %v2563 = vadd.f32 %v2355, %v2531
    %v2564 = vadd.f32 %v2356, %v2532
    %v2565 = vadd.f32 %v2357, %v2533
    %v2566 = vadd.f32 %v2358, %v2534
    %v2567 = vadd.f32 %v2359, %v2535
    %v2568 = vadd.f32 %v2360, %v2536
    %v2569 = vadd.f32 %v2361, %v2537
    %v2570 = vadd.f32 %v2362, %v2538
    %v2571 = vadd.f32 %v2363, %v2539
    %v2572 = vadd.f32 %v2364, %v2540
    %v2573 = vadd.f32 %v2365, %v2541
    %v2574 = vadd.f32 %v2366, %v2542
    %v2575 = vadd.f32 %v2367, %v2543
    %v2576 = vadd.f32 %v2368, %v2544
    %v2577 = vadd.f32 %v2369, %v2545
    %2578 = vset.pattern.permute.xlu0 12
    %2579 = vperm.xlu0 %2578, %v31
    %v2580 = vpop.permute.xlu0 %2579
    %2581 = vset.pattern.permute.xlu0 12
    %2582 = vperm.xlu0 %2581, %v32
    %v2583 = vpop.permute.xlu0 %2582
    %2584 = vset.pattern.permute.xlu0 12
    %2585 = vperm.xlu0 %2584, %v33
    %v2586 = vpop.permute.xlu0 %2585
    %2587 = vset.pattern.permute.xlu0 12
    %2588 = vperm.xlu0 %2587, %v34
    %v2589 = vpop.permute.xlu0 %2588
    %2590 = vset.pattern.permute.xlu0 12
    %2591 = vperm.xlu0 %2590, %v35
    %v2592 = vpop.permute.xlu0 %2591
    %2593 = vset.pattern.permute.xlu0 12
    %2594 = vperm.xlu0 %2593, %v36
    %v2595 = vpop.permute.xlu0 %2594
    %2596 = vset.pattern.permute.xlu0 12
    %2597 = vperm.xlu0 %2596, %v37
    %v2598 = vpop.permute.xlu0 %2597
    %2599 = vset.pattern.permute.xlu0 12
    %2600 = vperm.xlu0 %2599, %v38
    %v2601 = vpop.permute.xlu0 %2600
    %2602 = vset.pattern.permute.xlu0 12
    %2603 = vperm.xlu0 %2602, %v39
    %v2604 = vpop.permute.xlu0 %2603
    %2605 = vset.pattern.permute.xlu0 12
    %2606 = vperm.xlu0 %2605, %v40
    %v2607 = vpop.permute.xlu0 %2606
    %2608 = vset.pattern.permute.xlu0 12
    %2609 = vperm.xlu0 %2608, %v41
    %v2610 = vpop.permute.xlu0 %2609
    %2611 = vset.pattern.permute.xlu0 12
    %2612 = vperm.xlu0 %2611, %v42
    %v2613 = vpop.permute.xlu0 %2612
    %2614 = vset.pattern.permute.xlu0 12
    %2615 = vperm.xlu0 %2614, %v43
    %v2616 = vpop.permute.xlu0 %2615
    %2617 = vset.pattern.permute.xlu0 12
    %2618 = vperm.xlu0 %2617, %v44
    %v2619 = vpop.permute.xlu0 %2618
    %2620 = vset.pattern.permute.xlu0 12
    %2621 = vperm.xlu0 %2620, %v45
    %v2622 = vpop.permute.xlu0 %2621
    %2623 = vset.pattern.permute.xlu0 12
    %2624 = vperm.xlu0 %2623, %v46
    %v2625 = vpop.permute.xlu0 %2624
    %vm2626 = vcmp.eq.s32.totalorder %v2580, %v64
    %vm2627 = vcmp.eq.s32.totalorder %v2580, %v65
    %vm2628 = vcmp.eq.s32.totalorder %v2583, %v64
    %vm2629 = vcmp.eq.s32.totalorder %v2583, %v65
    %vm2630 = vcmp.eq.s32.totalorder %v2586, %v64
    %vm2631 = vcmp.eq.s32.totalorder %v2586, %v65
    %vm2632 = vcmp.eq.s32.totalorder %v2589, %v64
    %vm2633 = vcmp.eq.s32.totalorder %v2589, %v65
    %vm2634 = vcmp.eq.s32.totalorder %v2592, %v64
    %vm2635 = vcmp.eq.s32.totalorder %v2592, %v65
    %vm2636 = vcmp.eq.s32.totalorder %v2595, %v64
    %vm2637 = vcmp.eq.s32.totalorder %v2595, %v65
    %vm2638 = vcmp.eq.s32.totalorder %v2598, %v64
    %vm2639 = vcmp.eq.s32.totalorder %v2598, %v65
    %vm2640 = vcmp.eq.s32.totalorder %v2601, %v64
    %vm2641 = vcmp.eq.s32.totalorder %v2601, %v65
    %vm2642 = vcmp.eq.s32.totalorder %v2604, %v64
    %vm2643 = vcmp.eq.s32.totalorder %v2604, %v65
    %vm2644 = vcmp.eq.s32.totalorder %v2607, %v64
    %vm2645 = vcmp.eq.s32.totalorder %v2607, %v65
    %vm2646 = vcmp.eq.s32.totalorder %v2610, %v64
    %vm2647 = vcmp.eq.s32.totalorder %v2610, %v65
    %vm2648 = vcmp.eq.s32.totalorder %v2613, %v64
    %vm2649 = vcmp.eq.s32.totalorder %v2613, %v65
    %vm2650 = vcmp.eq.s32.totalorder %v2616, %v64
    %vm2651 = vcmp.eq.s32.totalorder %v2616, %v65
    %vm2652 = vcmp.eq.s32.totalorder %v2619, %v64
    %vm2653 = vcmp.eq.s32.totalorder %v2619, %v65
    %vm2654 = vcmp.eq.s32.totalorder %v2622, %v64
    %vm2655 = vcmp.eq.s32.totalorder %v2622, %v65
    %vm2656 = vcmp.eq.s32.totalorder %v2625, %v64
    %vm2657 = vcmp.eq.s32.totalorder %v2625, %v65
    %2658 = vset.pattern.permute.xlu0 12
    %2659 = vperm.xlu0 %2658, %v47
    %v2660 = vpop.permute.xlu0 %2659
    %2662 = vset.pattern.permute.xlu0 12
    %2663 = vperm.xlu0 %2662, %v48
    %v2664 = vpop.permute.xlu0 %2663
    %2666 = vset.pattern.permute.xlu0 12
    %2667 = vperm.xlu0 %2666, %v49
    %v2668 = vpop.permute.xlu0 %2667
    %2670 = vset.pattern.permute.xlu0 12
    %2671 = vperm.xlu0 %2670, %v50
    %v2672 = vpop.permute.xlu0 %2671
    %2674 = vset.pattern.permute.xlu0 12
    %2675 = vperm.xlu0 %2674, %v51
    %v2676 = vpop.permute.xlu0 %2675
    %2678 = vset.pattern.permute.xlu0 12
    %2679 = vperm.xlu0 %2678, %v52
    %v2680 = vpop.permute.xlu0 %2679
    %2682 = vset.pattern.permute.xlu0 12
    %2683 = vperm.xlu0 %2682, %v53
    %v2684 = vpop.permute.xlu0 %2683
    %2686 = vset.pattern.permute.xlu0 12
    %2687 = vperm.xlu0 %2686, %v54
    %v2688 = vpop.permute.xlu0 %2687
    %2690 = vset.pattern.permute.xlu0 12
    %2691 = vperm.xlu0 %2690, %v55
    %v2692 = vpop.permute.xlu0 %2691
    %2694 = vset.pattern.permute.xlu0 12
    %2695 = vperm.xlu0 %2694, %v56
    %v2696 = vpop.permute.xlu0 %2695
    %2698 = vset.pattern.permute.xlu0 12
    %2699 = vperm.xlu0 %2698, %v57
    %v2700 = vpop.permute.xlu0 %2699
    %2702 = vset.pattern.permute.xlu0 12
    %2703 = vperm.xlu0 %2702, %v58
    %v2704 = vpop.permute.xlu0 %2703
    %2706 = vset.pattern.permute.xlu0 12
    %2707 = vperm.xlu0 %2706, %v59
    %v2708 = vpop.permute.xlu0 %2707
    %2710 = vset.pattern.permute.xlu0 12
    %2711 = vperm.xlu0 %2710, %v60
    %v2712 = vpop.permute.xlu0 %2711
    %2714 = vset.pattern.permute.xlu0 12
    %2715 = vperm.xlu0 %2714, %v61
    %v2716 = vpop.permute.xlu0 %2715
    %2718 = vset.pattern.permute.xlu0 12
    %2719 = vperm.xlu0 %2718, %v62
    %v2720 = vpop.permute.xlu0 %2719
    %v2722 = vsel %vm2626, %v2660, 0.0
    %v2723 = vsel %vm2627, %v2660, 0.0
    %v2724 = vsel %vm2628, %v2664, 0.0
    %v2725 = vsel %vm2629, %v2664, 0.0
    %v2726 = vsel %vm2630, %v2668, 0.0
    %v2727 = vsel %vm2631, %v2668, 0.0
    %v2728 = vsel %vm2632, %v2672, 0.0
    %v2729 = vsel %vm2633, %v2672, 0.0
    %v2730 = vsel %vm2634, %v2676, 0.0
    %v2731 = vsel %vm2635, %v2676, 0.0
    %v2732 = vsel %vm2636, %v2680, 0.0
    %v2733 = vsel %vm2637, %v2680, 0.0
    %v2734 = vsel %vm2638, %v2684, 0.0
    %v2735 = vsel %vm2639, %v2684, 0.0
    %v2736 = vsel %vm2640, %v2688, 0.0
    %v2737 = vsel %vm2641, %v2688, 0.0
    %v2738 = vsel %vm2642, %v2692, 0.0
    %v2739 = vsel %vm2643, %v2692, 0.0
    %v2740 = vsel %vm2644, %v2696, 0.0
    %v2741 = vsel %vm2645, %v2696, 0.0
    %v2742 = vsel %vm2646, %v2700, 0.0
    %v2743 = vsel %vm2647, %v2700, 0.0
    %v2744 = vsel %vm2648, %v2704, 0.0
    %v2745 = vsel %vm2649, %v2704, 0.0
    %v2746 = vsel %vm2650, %v2708, 0.0
    %v2747 = vsel %vm2651, %v2708, 0.0
    %v2748 = vsel %vm2652, %v2712, 0.0
    %v2749 = vsel %vm2653, %v2712, 0.0
    %v2750 = vsel %vm2654, %v2716, 0.0
    %v2751 = vsel %vm2655, %v2716, 0.0
    %v2752 = vsel %vm2656, %v2720, 0.0
    %v2753 = vsel %vm2657, %v2720, 0.0
    %v2754 = vadd.f32 %v2546, %v2722
    %v2755 = vadd.f32 %v2547, %v2723
    %v2756 = vadd.f32 %v2548, %v2724
    %v2757 = vadd.f32 %v2549, %v2725
    %v2758 = vadd.f32 %v2550, %v2726
    %v2759 = vadd.f32 %v2551, %v2727
    %v2760 = vadd.f32 %v2552, %v2728
    %v2761 = vadd.f32 %v2553, %v2729
    %v2762 = vadd.f32 %v2554, %v2730
    %v2763 = vadd.f32 %v2555, %v2731
    %v2764 = vadd.f32 %v2556, %v2732
    %v2765 = vadd.f32 %v2557, %v2733
    %v2766 = vadd.f32 %v2558, %v2734
    %v2767 = vadd.f32 %v2559, %v2735
    %v2768 = vadd.f32 %v2560, %v2736
    %v2769 = vadd.f32 %v2561, %v2737
    %v2770 = vadd.f32 %v2562, %v2738
    %v2771 = vadd.f32 %v2563, %v2739
    %v2772 = vadd.f32 %v2564, %v2740
    %v2773 = vadd.f32 %v2565, %v2741
    %v2774 = vadd.f32 %v2566, %v2742
    %v2775 = vadd.f32 %v2567, %v2743
    %v2776 = vadd.f32 %v2568, %v2744
    %v2777 = vadd.f32 %v2569, %v2745
    %v2778 = vadd.f32 %v2570, %v2746
    %v2779 = vadd.f32 %v2571, %v2747
    %v2780 = vadd.f32 %v2572, %v2748
    %v2781 = vadd.f32 %v2573, %v2749
    %v2782 = vadd.f32 %v2574, %v2750
    %v2783 = vadd.f32 %v2575, %v2751
    %v2784 = vadd.f32 %v2576, %v2752
    %v2785 = vadd.f32 %v2577, %v2753
    %2786 = vset.pattern.permute.xlu0 13
    %2787 = vperm.xlu0 %2786, %v31
    %v2788 = vpop.permute.xlu0 %2787
    %2789 = vset.pattern.permute.xlu0 13
    %2790 = vperm.xlu0 %2789, %v32
    %v2791 = vpop.permute.xlu0 %2790
    %2792 = vset.pattern.permute.xlu0 13
    %2793 = vperm.xlu0 %2792, %v33
    %v2794 = vpop.permute.xlu0 %2793
    %2795 = vset.pattern.permute.xlu0 13
    %2796 = vperm.xlu0 %2795, %v34
    %v2797 = vpop.permute.xlu0 %2796
    %2798 = vset.pattern.permute.xlu0 13
    %2799 = vperm.xlu0 %2798, %v35
    %v2800 = vpop.permute.xlu0 %2799
    %2801 = vset.pattern.permute.xlu0 13
    %2802 = vperm.xlu0 %2801, %v36
    %v2803 = vpop.permute.xlu0 %2802
    %2804 = vset.pattern.permute.xlu0 13
    %2805 = vperm.xlu0 %2804, %v37
    %v2806 = vpop.permute.xlu0 %2805
    %2807 = vset.pattern.permute.xlu0 13
    %2808 = vperm.xlu0 %2807, %v38
    %v2809 = vpop.permute.xlu0 %2808
    %2810 = vset.pattern.permute.xlu0 13
    %2811 = vperm.xlu0 %2810, %v39
    %v2812 = vpop.permute.xlu0 %2811
    %2813 = vset.pattern.permute.xlu0 13
    %2814 = vperm.xlu0 %2813, %v40
    %v2815 = vpop.permute.xlu0 %2814
    %2816 = vset.pattern.permute.xlu0 13
    %2817 = vperm.xlu0 %2816, %v41
    %v2818 = vpop.permute.xlu0 %2817
    %2819 = vset.pattern.permute.xlu0 13
    %2820 = vperm.xlu0 %2819, %v42
    %v2821 = vpop.permute.xlu0 %2820
    %2822 = vset.pattern.permute.xlu0 13
    %2823 = vperm.xlu0 %2822, %v43
    %v2824 = vpop.permute.xlu0 %2823
    %2825 = vset.pattern.permute.xlu0 13
    %2826 = vperm.xlu0 %2825, %v44
    %v2827 = vpop.permute.xlu0 %2826
    %2828 = vset.pattern.permute.xlu0 13
    %2829 = vperm.xlu0 %2828, %v45
    %v2830 = vpop.permute.xlu0 %2829
    %2831 = vset.pattern.permute.xlu0 13
    %2832 = vperm.xlu0 %2831, %v46
    %v2833 = vpop.permute.xlu0 %2832
    %vm2834 = vcmp.eq.s32.totalorder %v2788, %v64
    %vm2835 = vcmp.eq.s32.totalorder %v2788, %v65
    %vm2836 = vcmp.eq.s32.totalorder %v2791, %v64
    %vm2837 = vcmp.eq.s32.totalorder %v2791, %v65
    %vm2838 = vcmp.eq.s32.totalorder %v2794, %v64
    %vm2839 = vcmp.eq.s32.totalorder %v2794, %v65
    %vm2840 = vcmp.eq.s32.totalorder %v2797, %v64
    %vm2841 = vcmp.eq.s32.totalorder %v2797, %v65
    %vm2842 = vcmp.eq.s32.totalorder %v2800, %v64
    %vm2843 = vcmp.eq.s32.totalorder %v2800, %v65
    %vm2844 = vcmp.eq.s32.totalorder %v2803, %v64
    %vm2845 = vcmp.eq.s32.totalorder %v2803, %v65
    %vm2846 = vcmp.eq.s32.totalorder %v2806, %v64
    %vm2847 = vcmp.eq.s32.totalorder %v2806, %v65
    %vm2848 = vcmp.eq.s32.totalorder %v2809, %v64
    %vm2849 = vcmp.eq.s32.totalorder %v2809, %v65
    %vm2850 = vcmp.eq.s32.totalorder %v2812, %v64
    %vm2851 = vcmp.eq.s32.totalorder %v2812, %v65
    %vm2852 = vcmp.eq.s32.totalorder %v2815, %v64
    %vm2853 = vcmp.eq.s32.totalorder %v2815, %v65
    %vm2854 = vcmp.eq.s32.totalorder %v2818, %v64
    %vm2855 = vcmp.eq.s32.totalorder %v2818, %v65
    %vm2856 = vcmp.eq.s32.totalorder %v2821, %v64
    %vm2857 = vcmp.eq.s32.totalorder %v2821, %v65
    %vm2858 = vcmp.eq.s32.totalorder %v2824, %v64
    %vm2859 = vcmp.eq.s32.totalorder %v2824, %v65
    %vm2860 = vcmp.eq.s32.totalorder %v2827, %v64
    %vm2861 = vcmp.eq.s32.totalorder %v2827, %v65
    %vm2862 = vcmp.eq.s32.totalorder %v2830, %v64
    %vm2863 = vcmp.eq.s32.totalorder %v2830, %v65
    %vm2864 = vcmp.eq.s32.totalorder %v2833, %v64
    %vm2865 = vcmp.eq.s32.totalorder %v2833, %v65
    %2866 = vset.pattern.permute.xlu0 13
    %2867 = vperm.xlu0 %2866, %v47
    %v2868 = vpop.permute.xlu0 %2867
    %2870 = vset.pattern.permute.xlu0 13
    %2871 = vperm.xlu0 %2870, %v48
    %v2872 = vpop.permute.xlu0 %2871
    %2874 = vset.pattern.permute.xlu0 13
    %2875 = vperm.xlu0 %2874, %v49
    %v2876 = vpop.permute.xlu0 %2875
    %2878 = vset.pattern.permute.xlu0 13
    %2879 = vperm.xlu0 %2878, %v50
    %v2880 = vpop.permute.xlu0 %2879
    %2882 = vset.pattern.permute.xlu0 13
    %2883 = vperm.xlu0 %2882, %v51
    %v2884 = vpop.permute.xlu0 %2883
    %2886 = vset.pattern.permute.xlu0 13
    %2887 = vperm.xlu0 %2886, %v52
    %v2888 = vpop.permute.xlu0 %2887
    %2890 = vset.pattern.permute.xlu0 13
    %2891 = vperm.xlu0 %2890, %v53
    %v2892 = vpop.permute.xlu0 %2891
    %2894 = vset.pattern.permute.xlu0 13
    %2895 = vperm.xlu0 %2894, %v54
    %v2896 = vpop.permute.xlu0 %2895
    %2898 = vset.pattern.permute.xlu0 13
    %2899 = vperm.xlu0 %2898, %v55
    %v2900 = vpop.permute.xlu0 %2899
    %2902 = vset.pattern.permute.xlu0 13
    %2903 = vperm.xlu0 %2902, %v56
    %v2904 = vpop.permute.xlu0 %2903
    %2906 = vset.pattern.permute.xlu0 13
    %2907 = vperm.xlu0 %2906, %v57
    %v2908 = vpop.permute.xlu0 %2907
    %2910 = vset.pattern.permute.xlu0 13
    %2911 = vperm.xlu0 %2910, %v58
    %v2912 = vpop.permute.xlu0 %2911
    %2914 = vset.pattern.permute.xlu0 13
    %2915 = vperm.xlu0 %2914, %v59
    %v2916 = vpop.permute.xlu0 %2915
    %2918 = vset.pattern.permute.xlu0 13
    %2919 = vperm.xlu0 %2918, %v60
    %v2920 = vpop.permute.xlu0 %2919
    %2922 = vset.pattern.permute.xlu0 13
    %2923 = vperm.xlu0 %2922, %v61
    %v2924 = vpop.permute.xlu0 %2923
    %2926 = vset.pattern.permute.xlu0 13
    %2927 = vperm.xlu0 %2926, %v62
    %v2928 = vpop.permute.xlu0 %2927
    %v2930 = vsel %vm2834, %v2868, 0.0
    %v2931 = vsel %vm2835, %v2868, 0.0
    %v2932 = vsel %vm2836, %v2872, 0.0
    %v2933 = vsel %vm2837, %v2872, 0.0
    %v2934 = vsel %vm2838, %v2876, 0.0
    %v2935 = vsel %vm2839, %v2876, 0.0
    %v2936 = vsel %vm2840, %v2880, 0.0
    %v2937 = vsel %vm2841, %v2880, 0.0
    %v2938 = vsel %vm2842, %v2884, 0.0
    %v2939 = vsel %vm2843, %v2884, 0.0
    %v2940 = vsel %vm2844, %v2888, 0.0
    %v2941 = vsel %vm2845, %v2888, 0.0
    %v2942 = vsel %vm2846, %v2892, 0.0
    %v2943 = vsel %vm2847, %v2892, 0.0
    %v2944 = vsel %vm2848, %v2896, 0.0
    %v2945 = vsel %vm2849, %v2896, 0.0
    %v2946 = vsel %vm2850, %v2900, 0.0
    %v2947 = vsel %vm2851, %v2900, 0.0
    %v2948 = vsel %vm2852, %v2904, 0.0
    %v2949 = vsel %vm2853, %v2904, 0.0
    %v2950 = vsel %vm2854, %v2908, 0.0
    %v2951 = vsel %vm2855, %v2908, 0.0
    %v2952 = vsel %vm2856, %v2912, 0.0
    %v2953 = vsel %vm2857, %v2912, 0.0
    %v2954 = vsel %vm2858, %v2916, 0.0
    %v2955 = vsel %vm2859, %v2916, 0.0
    %v2956 = vsel %vm2860, %v2920, 0.0
    %v2957 = vsel %vm2861, %v2920, 0.0
    %v2958 = vsel %vm2862, %v2924, 0.0
    %v2959 = vsel %vm2863, %v2924, 0.0
    %v2960 = vsel %vm2864, %v2928, 0.0
    %v2961 = vsel %vm2865, %v2928, 0.0
    %v2962 = vadd.f32 %v2754, %v2930
    %v2963 = vadd.f32 %v2755, %v2931
    %v2964 = vadd.f32 %v2756, %v2932
    %v2965 = vadd.f32 %v2757, %v2933
    %v2966 = vadd.f32 %v2758, %v2934
    %v2967 = vadd.f32 %v2759, %v2935
    %v2968 = vadd.f32 %v2760, %v2936
    %v2969 = vadd.f32 %v2761, %v2937
    %v2970 = vadd.f32 %v2762, %v2938
    %v2971 = vadd.f32 %v2763, %v2939
    %v2972 = vadd.f32 %v2764, %v2940
    %v2973 = vadd.f32 %v2765, %v2941
    %v2974 = vadd.f32 %v2766, %v2942
    %v2975 = vadd.f32 %v2767, %v2943
    %v2976 = vadd.f32 %v2768, %v2944
    %v2977 = vadd.f32 %v2769, %v2945
    %v2978 = vadd.f32 %v2770, %v2946
    %v2979 = vadd.f32 %v2771, %v2947
    %v2980 = vadd.f32 %v2772, %v2948
    %v2981 = vadd.f32 %v2773, %v2949
    %v2982 = vadd.f32 %v2774, %v2950
    %v2983 = vadd.f32 %v2775, %v2951
    %v2984 = vadd.f32 %v2776, %v2952
    %v2985 = vadd.f32 %v2777, %v2953
    %v2986 = vadd.f32 %v2778, %v2954
    %v2987 = vadd.f32 %v2779, %v2955
    %v2988 = vadd.f32 %v2780, %v2956
    %v2989 = vadd.f32 %v2781, %v2957
    %v2990 = vadd.f32 %v2782, %v2958
    %v2991 = vadd.f32 %v2783, %v2959
    %v2992 = vadd.f32 %v2784, %v2960
    %v2993 = vadd.f32 %v2785, %v2961
    %2994 = vset.pattern.permute.xlu0 14
    %2995 = vperm.xlu0 %2994, %v31
    %v2996 = vpop.permute.xlu0 %2995
    %2997 = vset.pattern.permute.xlu0 14
    %2998 = vperm.xlu0 %2997, %v32
    %v2999 = vpop.permute.xlu0 %2998
    %3000 = vset.pattern.permute.xlu0 14
    %3001 = vperm.xlu0 %3000, %v33
    %v3002 = vpop.permute.xlu0 %3001
    %3003 = vset.pattern.permute.xlu0 14
    %3004 = vperm.xlu0 %3003, %v34
    %v3005 = vpop.permute.xlu0 %3004
    %3006 = vset.pattern.permute.xlu0 14
    %3007 = vperm.xlu0 %3006, %v35
    %v3008 = vpop.permute.xlu0 %3007
    %3009 = vset.pattern.permute.xlu0 14
    %3010 = vperm.xlu0 %3009, %v36
    %v3011 = vpop.permute.xlu0 %3010
    %3012 = vset.pattern.permute.xlu0 14
    %3013 = vperm.xlu0 %3012, %v37
    %v3014 = vpop.permute.xlu0 %3013
    %3015 = vset.pattern.permute.xlu0 14
    %3016 = vperm.xlu0 %3015, %v38
    %v3017 = vpop.permute.xlu0 %3016
    %3018 = vset.pattern.permute.xlu0 14
    %3019 = vperm.xlu0 %3018, %v39
    %v3020 = vpop.permute.xlu0 %3019
    %3021 = vset.pattern.permute.xlu0 14
    %3022 = vperm.xlu0 %3021, %v40
    %v3023 = vpop.permute.xlu0 %3022
    %3024 = vset.pattern.permute.xlu0 14
    %3025 = vperm.xlu0 %3024, %v41
    %v3026 = vpop.permute.xlu0 %3025
    %3027 = vset.pattern.permute.xlu0 14
    %3028 = vperm.xlu0 %3027, %v42
    %v3029 = vpop.permute.xlu0 %3028
    %3030 = vset.pattern.permute.xlu0 14
    %3031 = vperm.xlu0 %3030, %v43
    %v3032 = vpop.permute.xlu0 %3031
    %3033 = vset.pattern.permute.xlu0 14
    %3034 = vperm.xlu0 %3033, %v44
    %v3035 = vpop.permute.xlu0 %3034
    %3036 = vset.pattern.permute.xlu0 14
    %3037 = vperm.xlu0 %3036, %v45
    %v3038 = vpop.permute.xlu0 %3037
    %3039 = vset.pattern.permute.xlu0 14
    %3040 = vperm.xlu0 %3039, %v46
    %v3041 = vpop.permute.xlu0 %3040
    %vm3042 = vcmp.eq.s32.totalorder %v2996, %v64
    %vm3043 = vcmp.eq.s32.totalorder %v2996, %v65
    %vm3044 = vcmp.eq.s32.totalorder %v2999, %v64
    %vm3045 = vcmp.eq.s32.totalorder %v2999, %v65
    %vm3046 = vcmp.eq.s32.totalorder %v3002, %v64
    %vm3047 = vcmp.eq.s32.totalorder %v3002, %v65
    %vm3048 = vcmp.eq.s32.totalorder %v3005, %v64
    %vm3049 = vcmp.eq.s32.totalorder %v3005, %v65
    %vm3050 = vcmp.eq.s32.totalorder %v3008, %v64
    %vm3051 = vcmp.eq.s32.totalorder %v3008, %v65
    %vm3052 = vcmp.eq.s32.totalorder %v3011, %v64
    %vm3053 = vcmp.eq.s32.totalorder %v3011, %v65
    %vm3054 = vcmp.eq.s32.totalorder %v3014, %v64
    %vm3055 = vcmp.eq.s32.totalorder %v3014, %v65
    %vm3056 = vcmp.eq.s32.totalorder %v3017, %v64
    %vm3057 = vcmp.eq.s32.totalorder %v3017, %v65
    %vm3058 = vcmp.eq.s32.totalorder %v3020, %v64
    %vm3059 = vcmp.eq.s32.totalorder %v3020, %v65
    %vm3060 = vcmp.eq.s32.totalorder %v3023, %v64
    %vm3061 = vcmp.eq.s32.totalorder %v3023, %v65
    %vm3062 = vcmp.eq.s32.totalorder %v3026, %v64
    %vm3063 = vcmp.eq.s32.totalorder %v3026, %v65
    %vm3064 = vcmp.eq.s32.totalorder %v3029, %v64
    %vm3065 = vcmp.eq.s32.totalorder %v3029, %v65
    %vm3066 = vcmp.eq.s32.totalorder %v3032, %v64
    %vm3067 = vcmp.eq.s32.totalorder %v3032, %v65
    %vm3068 = vcmp.eq.s32.totalorder %v3035, %v64
    %vm3069 = vcmp.eq.s32.totalorder %v3035, %v65
    %vm3070 = vcmp.eq.s32.totalorder %v3038, %v64
    %vm3071 = vcmp.eq.s32.totalorder %v3038, %v65
    %vm3072 = vcmp.eq.s32.totalorder %v3041, %v64
    %vm3073 = vcmp.eq.s32.totalorder %v3041, %v65
    %3074 = vset.pattern.permute.xlu0 14
    %3075 = vperm.xlu0 %3074, %v47
    %v3076 = vpop.permute.xlu0 %3075
    %3078 = vset.pattern.permute.xlu0 14
    %3079 = vperm.xlu0 %3078, %v48
    %v3080 = vpop.permute.xlu0 %3079
    %3082 = vset.pattern.permute.xlu0 14
    %3083 = vperm.xlu0 %3082, %v49
    %v3084 = vpop.permute.xlu0 %3083
    %3086 = vset.pattern.permute.xlu0 14
    %3087 = vperm.xlu0 %3086, %v50
    %v3088 = vpop.permute.xlu0 %3087
    %3090 = vset.pattern.permute.xlu0 14
    %3091 = vperm.xlu0 %3090, %v51
    %v3092 = vpop.permute.xlu0 %3091
    %3094 = vset.pattern.permute.xlu0 14
    %3095 = vperm.xlu0 %3094, %v52
    %v3096 = vpop.permute.xlu0 %3095
    %3098 = vset.pattern.permute.xlu0 14
    %3099 = vperm.xlu0 %3098, %v53
    %v3100 = vpop.permute.xlu0 %3099
    %3102 = vset.pattern.permute.xlu0 14
    %3103 = vperm.xlu0 %3102, %v54
    %v3104 = vpop.permute.xlu0 %3103
    %3106 = vset.pattern.permute.xlu0 14
    %3107 = vperm.xlu0 %3106, %v55
    %v3108 = vpop.permute.xlu0 %3107
    %3110 = vset.pattern.permute.xlu0 14
    %3111 = vperm.xlu0 %3110, %v56
    %v3112 = vpop.permute.xlu0 %3111
    %3114 = vset.pattern.permute.xlu0 14
    %3115 = vperm.xlu0 %3114, %v57
    %v3116 = vpop.permute.xlu0 %3115
    %3118 = vset.pattern.permute.xlu0 14
    %3119 = vperm.xlu0 %3118, %v58
    %v3120 = vpop.permute.xlu0 %3119
    %3122 = vset.pattern.permute.xlu0 14
    %3123 = vperm.xlu0 %3122, %v59
    %v3124 = vpop.permute.xlu0 %3123
    %3126 = vset.pattern.permute.xlu0 14
    %3127 = vperm.xlu0 %3126, %v60
    %v3128 = vpop.permute.xlu0 %3127
    %3130 = vset.pattern.permute.xlu0 14
    %3131 = vperm.xlu0 %3130, %v61
    %v3132 = vpop.permute.xlu0 %3131
    %3134 = vset.pattern.permute.xlu0 14
    %3135 = vperm.xlu0 %3134, %v62
    %v3136 = vpop.permute.xlu0 %3135
    %v3138 = vsel %vm3042, %v3076, 0.0
    %v3139 = vsel %vm3043, %v3076, 0.0
    %v3140 = vsel %vm3044, %v3080, 0.0
    %v3141 = vsel %vm3045, %v3080, 0.0
    %v3142 = vsel %vm3046, %v3084, 0.0
    %v3143 = vsel %vm3047, %v3084, 0.0
    %v3144 = vsel %vm3048, %v3088, 0.0
    %v3145 = vsel %vm3049, %v3088, 0.0
    %v3146 = vsel %vm3050, %v3092, 0.0
    %v3147 = vsel %vm3051, %v3092, 0.0
    %v3148 = vsel %vm3052, %v3096, 0.0
    %v3149 = vsel %vm3053, %v3096, 0.0
    %v3150 = vsel %vm3054, %v3100, 0.0
    %v3151 = vsel %vm3055, %v3100, 0.0
    %v3152 = vsel %vm3056, %v3104, 0.0
    %v3153 = vsel %vm3057, %v3104, 0.0
    %v3154 = vsel %vm3058, %v3108, 0.0
    %v3155 = vsel %vm3059, %v3108, 0.0
    %v3156 = vsel %vm3060, %v3112, 0.0
    %v3157 = vsel %vm3061, %v3112, 0.0
    %v3158 = vsel %vm3062, %v3116, 0.0
    %v3159 = vsel %vm3063, %v3116, 0.0
    %v3160 = vsel %vm3064, %v3120, 0.0
    %v3161 = vsel %vm3065, %v3120, 0.0
    %v3162 = vsel %vm3066, %v3124, 0.0
    %v3163 = vsel %vm3067, %v3124, 0.0
    %v3164 = vsel %vm3068, %v3128, 0.0
    %v3165 = vsel %vm3069, %v3128, 0.0
    %v3166 = vsel %vm3070, %v3132, 0.0
    %v3167 = vsel %vm3071, %v3132, 0.0
    %v3168 = vsel %vm3072, %v3136, 0.0
    %v3169 = vsel %vm3073, %v3136, 0.0
    %v3170 = vadd.f32 %v2962, %v3138
    %v3171 = vadd.f32 %v2963, %v3139
    %v3172 = vadd.f32 %v2964, %v3140
    %v3173 = vadd.f32 %v2965, %v3141
    %v3174 = vadd.f32 %v2966, %v3142
    %v3175 = vadd.f32 %v2967, %v3143
    %v3176 = vadd.f32 %v2968, %v3144
    %v3177 = vadd.f32 %v2969, %v3145
    %v3178 = vadd.f32 %v2970, %v3146
    %v3179 = vadd.f32 %v2971, %v3147
    %v3180 = vadd.f32 %v2972, %v3148
    %v3181 = vadd.f32 %v2973, %v3149
    %v3182 = vadd.f32 %v2974, %v3150
    %v3183 = vadd.f32 %v2975, %v3151
    %v3184 = vadd.f32 %v2976, %v3152
    %v3185 = vadd.f32 %v2977, %v3153
    %v3186 = vadd.f32 %v2978, %v3154
    %v3187 = vadd.f32 %v2979, %v3155
    %v3188 = vadd.f32 %v2980, %v3156
    %v3189 = vadd.f32 %v2981, %v3157
    %v3190 = vadd.f32 %v2982, %v3158
    %v3191 = vadd.f32 %v2983, %v3159
    %v3192 = vadd.f32 %v2984, %v3160
    %v3193 = vadd.f32 %v2985, %v3161
    %v3194 = vadd.f32 %v2986, %v3162
    %v3195 = vadd.f32 %v2987, %v3163
    %v3196 = vadd.f32 %v2988, %v3164
    %v3197 = vadd.f32 %v2989, %v3165
    %v3198 = vadd.f32 %v2990, %v3166
    %v3199 = vadd.f32 %v2991, %v3167
    %v3200 = vadd.f32 %v2992, %v3168
    %v3201 = vadd.f32 %v2993, %v3169
    %3202 = vset.pattern.permute.xlu0 15
    %3203 = vperm.xlu0 %3202, %v31
    %v3204 = vpop.permute.xlu0 %3203
    %3205 = vset.pattern.permute.xlu0 15
    %3206 = vperm.xlu0 %3205, %v32
    %v3207 = vpop.permute.xlu0 %3206
    %3208 = vset.pattern.permute.xlu0 15
    %3209 = vperm.xlu0 %3208, %v33
    %v3210 = vpop.permute.xlu0 %3209
    %3211 = vset.pattern.permute.xlu0 15
    %3212 = vperm.xlu0 %3211, %v34
    %v3213 = vpop.permute.xlu0 %3212
    %3214 = vset.pattern.permute.xlu0 15
    %3215 = vperm.xlu0 %3214, %v35
    %v3216 = vpop.permute.xlu0 %3215
    %3217 = vset.pattern.permute.xlu0 15
    %3218 = vperm.xlu0 %3217, %v36
    %v3219 = vpop.permute.xlu0 %3218
    %3220 = vset.pattern.permute.xlu0 15
    %3221 = vperm.xlu0 %3220, %v37
    %v3222 = vpop.permute.xlu0 %3221
    %3223 = vset.pattern.permute.xlu0 15
    %3224 = vperm.xlu0 %3223, %v38
    %v3225 = vpop.permute.xlu0 %3224
    %3226 = vset.pattern.permute.xlu0 15
    %3227 = vperm.xlu0 %3226, %v39
    %v3228 = vpop.permute.xlu0 %3227
    %3229 = vset.pattern.permute.xlu0 15
    %3230 = vperm.xlu0 %3229, %v40
    %v3231 = vpop.permute.xlu0 %3230
    %3232 = vset.pattern.permute.xlu0 15
    %3233 = vperm.xlu0 %3232, %v41
    %v3234 = vpop.permute.xlu0 %3233
    %3235 = vset.pattern.permute.xlu0 15
    %3236 = vperm.xlu0 %3235, %v42
    %v3237 = vpop.permute.xlu0 %3236
    %3238 = vset.pattern.permute.xlu0 15
    %3239 = vperm.xlu0 %3238, %v43
    %v3240 = vpop.permute.xlu0 %3239
    %3241 = vset.pattern.permute.xlu0 15
    %3242 = vperm.xlu0 %3241, %v44
    %v3243 = vpop.permute.xlu0 %3242
    %3244 = vset.pattern.permute.xlu0 15
    %3245 = vperm.xlu0 %3244, %v45
    %v3246 = vpop.permute.xlu0 %3245
    %3247 = vset.pattern.permute.xlu0 15
    %3248 = vperm.xlu0 %3247, %v46
    %v3249 = vpop.permute.xlu0 %3248
    %vm3250 = vcmp.eq.s32.totalorder %v3204, %v64
    %vm3251 = vcmp.eq.s32.totalorder %v3204, %v65
    %vm3252 = vcmp.eq.s32.totalorder %v3207, %v64
    %vm3253 = vcmp.eq.s32.totalorder %v3207, %v65
    %vm3254 = vcmp.eq.s32.totalorder %v3210, %v64
    %vm3255 = vcmp.eq.s32.totalorder %v3210, %v65
    %vm3256 = vcmp.eq.s32.totalorder %v3213, %v64
    %vm3257 = vcmp.eq.s32.totalorder %v3213, %v65
    %vm3258 = vcmp.eq.s32.totalorder %v3216, %v64
    %vm3259 = vcmp.eq.s32.totalorder %v3216, %v65
    %vm3260 = vcmp.eq.s32.totalorder %v3219, %v64
    %vm3261 = vcmp.eq.s32.totalorder %v3219, %v65
    %vm3262 = vcmp.eq.s32.totalorder %v3222, %v64
    %vm3263 = vcmp.eq.s32.totalorder %v3222, %v65
    %vm3264 = vcmp.eq.s32.totalorder %v3225, %v64
    %vm3265 = vcmp.eq.s32.totalorder %v3225, %v65
    %vm3266 = vcmp.eq.s32.totalorder %v3228, %v64
    %vm3267 = vcmp.eq.s32.totalorder %v3228, %v65
    %vm3268 = vcmp.eq.s32.totalorder %v3231, %v64
    %vm3269 = vcmp.eq.s32.totalorder %v3231, %v65
    %vm3270 = vcmp.eq.s32.totalorder %v3234, %v64
    %vm3271 = vcmp.eq.s32.totalorder %v3234, %v65
    %vm3272 = vcmp.eq.s32.totalorder %v3237, %v64
    %vm3273 = vcmp.eq.s32.totalorder %v3237, %v65
    %vm3274 = vcmp.eq.s32.totalorder %v3240, %v64
    %vm3275 = vcmp.eq.s32.totalorder %v3240, %v65
    %vm3276 = vcmp.eq.s32.totalorder %v3243, %v64
    %vm3277 = vcmp.eq.s32.totalorder %v3243, %v65
    %vm3278 = vcmp.eq.s32.totalorder %v3246, %v64
    %vm3279 = vcmp.eq.s32.totalorder %v3246, %v65
    %vm3280 = vcmp.eq.s32.totalorder %v3249, %v64
    %vm3281 = vcmp.eq.s32.totalorder %v3249, %v65
    %3282 = vset.pattern.permute.xlu0 15
    %3283 = vperm.xlu0 %3282, %v47
    %v3284 = vpop.permute.xlu0 %3283
    %3286 = vset.pattern.permute.xlu0 15
    %3287 = vperm.xlu0 %3286, %v48
    %v3288 = vpop.permute.xlu0 %3287
    %3290 = vset.pattern.permute.xlu0 15
    %3291 = vperm.xlu0 %3290, %v49
    %v3292 = vpop.permute.xlu0 %3291
    %3294 = vset.pattern.permute.xlu0 15
    %3295 = vperm.xlu0 %3294, %v50
    %v3296 = vpop.permute.xlu0 %3295
    %3298 = vset.pattern.permute.xlu0 15
    %3299 = vperm.xlu0 %3298, %v51
    %v3300 = vpop.permute.xlu0 %3299
    %3302 = vset.pattern.permute.xlu0 15
    %3303 = vperm.xlu0 %3302, %v52
    %v3304 = vpop.permute.xlu0 %3303
    %3306 = vset.pattern.permute.xlu0 15
    %3307 = vperm.xlu0 %3306, %v53
    %v3308 = vpop.permute.xlu0 %3307
    %3310 = vset.pattern.permute.xlu0 15
    %3311 = vperm.xlu0 %3310, %v54
    %v3312 = vpop.permute.xlu0 %3311
    %3314 = vset.pattern.permute.xlu0 15
    %3315 = vperm.xlu0 %3314, %v55
    %v3316 = vpop.permute.xlu0 %3315
    %3318 = vset.pattern.permute.xlu0 15
    %3319 = vperm.xlu0 %3318, %v56
    %v3320 = vpop.permute.xlu0 %3319
    %3322 = vset.pattern.permute.xlu0 15
    %3323 = vperm.xlu0 %3322, %v57
    %v3324 = vpop.permute.xlu0 %3323
    %3326 = vset.pattern.permute.xlu0 15
    %3327 = vperm.xlu0 %3326, %v58
    %v3328 = vpop.permute.xlu0 %3327
    %3330 = vset.pattern.permute.xlu0 15
    %3331 = vperm.xlu0 %3330, %v59
    %v3332 = vpop.permute.xlu0 %3331
    %3334 = vset.pattern.permute.xlu0 15
    %3335 = vperm.xlu0 %3334, %v60
    %v3336 = vpop.permute.xlu0 %3335
    %3338 = vset.pattern.permute.xlu0 15
    %3339 = vperm.xlu0 %3338, %v61
    %v3340 = vpop.permute.xlu0 %3339
    %3342 = vset.pattern.permute.xlu0 15
    %3343 = vperm.xlu0 %3342, %v62
    %v3344 = vpop.permute.xlu0 %3343
    %v3346 = vsel %vm3250, %v3284, 0.0
    %v3347 = vsel %vm3251, %v3284, 0.0
    %v3348 = vsel %vm3252, %v3288, 0.0
    %v3349 = vsel %vm3253, %v3288, 0.0
    %v3350 = vsel %vm3254, %v3292, 0.0
    %v3351 = vsel %vm3255, %v3292, 0.0
    %v3352 = vsel %vm3256, %v3296, 0.0
    %v3353 = vsel %vm3257, %v3296, 0.0
    %v3354 = vsel %vm3258, %v3300, 0.0
    %v3355 = vsel %vm3259, %v3300, 0.0
    %v3356 = vsel %vm3260, %v3304, 0.0
    %v3357 = vsel %vm3261, %v3304, 0.0
    %v3358 = vsel %vm3262, %v3308, 0.0
    %v3359 = vsel %vm3263, %v3308, 0.0
    %v3360 = vsel %vm3264, %v3312, 0.0
    %v3361 = vsel %vm3265, %v3312, 0.0
    %v3362 = vsel %vm3266, %v3316, 0.0
    %v3363 = vsel %vm3267, %v3316, 0.0
    %v3364 = vsel %vm3268, %v3320, 0.0
    %v3365 = vsel %vm3269, %v3320, 0.0
    %v3366 = vsel %vm3270, %v3324, 0.0
    %v3367 = vsel %vm3271, %v3324, 0.0
    %v3368 = vsel %vm3272, %v3328, 0.0
    %v3369 = vsel %vm3273, %v3328, 0.0
    %v3370 = vsel %vm3274, %v3332, 0.0
    %v3371 = vsel %vm3275, %v3332, 0.0
    %v3372 = vsel %vm3276, %v3336, 0.0
    %v3373 = vsel %vm3277, %v3336, 0.0
    %v3374 = vsel %vm3278, %v3340, 0.0
    %v3375 = vsel %vm3279, %v3340, 0.0
    %v3376 = vsel %vm3280, %v3344, 0.0
    %v3377 = vsel %vm3281, %v3344, 0.0
    %v3378 = vadd.f32 %v3170, %v3346
    %v3379 = vadd.f32 %v3171, %v3347
    %v3380 = vadd.f32 %v3172, %v3348
    %v3381 = vadd.f32 %v3173, %v3349
    %v3382 = vadd.f32 %v3174, %v3350
    %v3383 = vadd.f32 %v3175, %v3351
    %v3384 = vadd.f32 %v3176, %v3352
    %v3385 = vadd.f32 %v3177, %v3353
    %v3386 = vadd.f32 %v3178, %v3354
    %v3387 = vadd.f32 %v3179, %v3355
    %v3388 = vadd.f32 %v3180, %v3356
    %v3389 = vadd.f32 %v3181, %v3357
    %v3390 = vadd.f32 %v3182, %v3358
    %v3391 = vadd.f32 %v3183, %v3359
    %v3392 = vadd.f32 %v3184, %v3360
    %v3393 = vadd.f32 %v3185, %v3361
    %v3394 = vadd.f32 %v3186, %v3362
    %v3395 = vadd.f32 %v3187, %v3363
    %v3396 = vadd.f32 %v3188, %v3364
    %v3397 = vadd.f32 %v3189, %v3365
    %v3398 = vadd.f32 %v3190, %v3366
    %v3399 = vadd.f32 %v3191, %v3367
    %v3400 = vadd.f32 %v3192, %v3368
    %v3401 = vadd.f32 %v3193, %v3369
    %v3402 = vadd.f32 %v3194, %v3370
    %v3403 = vadd.f32 %v3195, %v3371
    %v3404 = vadd.f32 %v3196, %v3372
    %v3405 = vadd.f32 %v3197, %v3373
    %v3406 = vadd.f32 %v3198, %v3374
    %v3407 = vadd.f32 %v3199, %v3375
    %v3408 = vadd.f32 %v3200, %v3376
    %v3409 = vadd.f32 %v3201, %v3377
    %v3410 = vld [vmem:[#allocation3] sm:$0xff]
    %v3411 = vld [vmem:[#allocation3 + $0x8] sm:$0xff]
    %v3412 = vld [vmem:[#allocation3 + $0x10] sm:$0xff]
    %v3413 = vld [vmem:[#allocation3 + $0x18] sm:$0xff]
    %v3414 = vld [vmem:[#allocation3 + $0x20] sm:$0xff]
    %v3415 = vld [vmem:[#allocation3 + $0x28] sm:$0xff]
    %v3416 = vld [vmem:[#allocation3 + $0x30] sm:$0xff]
    %v3417 = vld [vmem:[#allocation3 + $0x38] sm:$0xff]
    %v3418 = vld [vmem:[#allocation3 + $0x40] sm:$0xff]
    %v3419 = vld [vmem:[#allocation3 + $0x48] sm:$0xff]
    %v3420 = vld [vmem:[#allocation3 + $0x50] sm:$0xff]
    %v3421 = vld [vmem:[#allocation3 + $0x58] sm:$0xff]
    %v3422 = vld [vmem:[#allocation3 + $0x60] sm:$0xff]
    %v3423 = vld [vmem:[#allocation3 + $0x68] sm:$0xff]
    %v3424 = vld [vmem:[#allocation3 + $0x70] sm:$0xff]
    %v3425 = vld [vmem:[#allocation3 + $0x78] sm:$0xff]
    %v3426 = vld [vmem:[#allocation3 + $0x80] sm:$0xff]
    %v3427 = vld [vmem:[#allocation3 + $0x88] sm:$0xff]
    %v3428 = vld [vmem:[#allocation3 + $0x90] sm:$0xff]
    %v3429 = vld [vmem:[#allocation3 + $0x98] sm:$0xff]
    %v3430 = vld [vmem:[#allocation3 + $0xa0] sm:$0xff]
    %v3431 = vld [vmem:[#allocation3 + $0xa8] sm:$0xff]
    %v3432 = vld [vmem:[#allocation3 + $0xb0] sm:$0xff]
    %v3433 = vld [vmem:[#allocation3 + $0xb8] sm:$0xff]
    %v3434 = vld [vmem:[#allocation3 + $0xc0] sm:$0xff]
    %v3435 = vld [vmem:[#allocation3 + $0xc8] sm:$0xff]
    %v3436 = vld [vmem:[#allocation3 + $0xd0] sm:$0xff]
    %v3437 = vld [vmem:[#allocation3 + $0xd8] sm:$0xff]
    %v3438 = vld [vmem:[#allocation3 + $0xe0] sm:$0xff]
    %v3439 = vld [vmem:[#allocation3 + $0xe8] sm:$0xff]
    %v3440 = vld [vmem:[#allocation3 + $0xf0] sm:$0xff]
    %v3441 = vld [vmem:[#allocation3 + $0xf8] sm:$0xff]
    %v3442 = vld [vmem:[#allocation3 + $0x100] sm:$0xff]
    %v3443 = vld [vmem:[#allocation3 + $0x108] sm:$0xff]
    %v3444 = vld [vmem:[#allocation3 + $0x110] sm:$0xff]
    %v3445 = vld [vmem:[#allocation3 + $0x118] sm:$0xff]
    %v3446 = vld [vmem:[#allocation3 + $0x120] sm:$0xff]
    %v3447 = vld [vmem:[#allocation3 + $0x128] sm:$0xff]
    %v3448 = vld [vmem:[#allocation3 + $0x130] sm:$0xff]
    %v3449 = vld [vmem:[#allocation3 + $0x138] sm:$0xff]
    %v3450 = vld [vmem:[#allocation3 + $0x140] sm:$0xff]
    %v3451 = vld [vmem:[#allocation3 + $0x148] sm:$0xff]
    %v3452 = vld [vmem:[#allocation3 + $0x150] sm:$0xff]
    %v3453 = vld [vmem:[#allocation3 + $0x158] sm:$0xff]
    %v3454 = vld [vmem:[#allocation3 + $0x160] sm:$0xff]
    %v3455 = vld [vmem:[#allocation3 + $0x168] sm:$0xff]
    %v3456 = vld [vmem:[#allocation3 + $0x170] sm:$0xff]
    %v3457 = vld [vmem:[#allocation3 + $0x178] sm:$0xff]
    %v3458 = vld [vmem:[#allocation3 + $0x180] sm:$0xff]
    %v3459 = vld [vmem:[#allocation3 + $0x188] sm:$0xff]
    %v3460 = vld [vmem:[#allocation3 + $0x190] sm:$0xff]
    %v3461 = vld [vmem:[#allocation3 + $0x198] sm:$0xff]
    %v3462 = vld [vmem:[#allocation3 + $0x1a0] sm:$0xff]
    %v3463 = vld [vmem:[#allocation3 + $0x1a8] sm:$0xff]
    %v3464 = vld [vmem:[#allocation3 + $0x1b0] sm:$0xff]
    %v3465 = vld [vmem:[#allocation3 + $0x1b8] sm:$0xff]
    %v3466 = vld [vmem:[#allocation3 + $0x1c0] sm:$0xff]
    %v3467 = vld [vmem:[#allocation3 + $0x1c8] sm:$0xff]
    %v3468 = vld [vmem:[#allocation3 + $0x1d0] sm:$0xff]
    %v3469 = vld [vmem:[#allocation3 + $0x1d8] sm:$0xff]
    %v3470 = vld [vmem:[#allocation3 + $0x1e0] sm:$0xff]
    %v3471 = vld [vmem:[#allocation3 + $0x1e8] sm:$0xff]
    %v3472 = vld [vmem:[#allocation3 + $0x1f0] sm:$0xff]
    %v3473 = vld [vmem:[#allocation3 + $0x1f8] sm:$0xff]
    %3474 = vmatpush.msra.mxu0 %v3440
    %3475 = vmatpush.msra.mxu0 %v3438
    %3476 = vmatpush.msra.mxu0 %v3436
    %3477 = vmatpush.msra.mxu0 %v3434
    %3478 = vmatpush.msra.mxu0 %v3432
    %3479 = vmatpush.msra.mxu0 %v3430
    %3480 = vmatpush.msra.mxu0 %v3428
    %3481 = vmatpush.msra.mxu0 %v3426
    %3482 = vmatpush.msra.mxu0 %v3424
    %3483 = vmatpush.msra.mxu0 %v3422
    %3484 = vmatpush.msra.mxu0 %v3420
    %3485 = vmatpush.msra.mxu0 %v3418
    %3486 = vmatpush.msra.mxu0 %v3416
    %3487 = vmatpush.msra.mxu0 %v3414
    %3488 = vmatpush.msra.mxu0 %v3412
    %3489 = vmatpush.msra.mxu0 %v3410
    %3490 = vmatmul.f32.gmra.mxu0 %v3378
    %v3491 = vpop.f32.mrf.mxu0
    %v3492 = vadd.f32 0.0, %v3491
    %3493 = vmatmul.f32.gmra.mxu0 %v3380
    %v3494 = vpop.f32.mrf.mxu0
    %v3495 = vadd.f32 0.0, %v3494
    %3496 = vmatmul.f32.gmra.mxu0 %v3382
    %v3497 = vpop.f32.mrf.mxu0
    %v3498 = vadd.f32 0.0, %v3497
    %3499 = vmatmul.f32.gmra.mxu0 %v3384
    %v3500 = vpop.f32.mrf.mxu0
    %v3501 = vadd.f32 0.0, %v3500
    %3502 = vmatmul.f32.gmra.mxu0 %v3386
    %v3503 = vpop.f32.mrf.mxu0
    %v3504 = vadd.f32 0.0, %v3503
    %3505 = vmatmul.f32.gmra.mxu0 %v3388
    %v3506 = vpop.f32.mrf.mxu0
    %v3507 = vadd.f32 0.0, %v3506
    %3508 = vmatmul.f32.gmra.mxu0 %v3390
    %v3509 = vpop.f32.mrf.mxu0
    %v3510 = vadd.f32 0.0, %v3509
    %3511 = vmatmul.f32.gmra.mxu0 %v3392
    %v3512 = vpop.f32.mrf.mxu0
    %v3513 = vadd.f32 0.0, %v3512
    %3514 = vmatmul.f32.gmra.mxu0 %v3394
    %v3515 = vpop.f32.mrf.mxu0
    %v3516 = vadd.f32 0.0, %v3515
    %3517 = vmatmul.f32.gmra.mxu0 %v3396
    %v3518 = vpop.f32.mrf.mxu0
    %v3519 = vadd.f32 0.0, %v3518
    %3520 = vmatmul.f32.gmra.mxu0 %v3398
    %v3521 = vpop.f32.mrf.mxu0
    %v3522 = vadd.f32 0.0, %v3521
    %3523 = vmatmul.f32.gmra.mxu0 %v3400
    %v3524 = vpop.f32.mrf.mxu0
    %v3525 = vadd.f32 0.0, %v3524
    %3526 = vmatmul.f32.gmra.mxu0 %v3402
    %v3527 = vpop.f32.mrf.mxu0
    %v3528 = vadd.f32 0.0, %v3527
    %3529 = vmatmul.f32.gmra.mxu0 %v3404
    %v3530 = vpop.f32.mrf.mxu0
    %v3531 = vadd.f32 0.0, %v3530
    %3532 = vmatmul.f32.gmra.mxu0 %v3406
    %v3533 = vpop.f32.mrf.mxu0
    %v3534 = vadd.f32 0.0, %v3533
    %3535 = vmatmul.f32.gmra.mxu0 %v3408
    %v3536 = vpop.f32.mrf.mxu0
    %v3537 = vadd.f32 0.0, %v3536
    %3538 = vdwg.mxu0
    %3539 = vmatpush.msra.mxu0 %v3472
    %3540 = vmatpush.msra.mxu0 %v3470
    %3541 = vmatpush.msra.mxu0 %v3468
    %3542 = vmatpush.msra.mxu0 %v3466
    %3543 = vmatpush.msra.mxu0 %v3464
    %3544 = vmatpush.msra.mxu0 %v3462
    %3545 = vmatpush.msra.mxu0 %v3460
    %3546 = vmatpush.msra.mxu0 %v3458
    %3547 = vmatpush.msra.mxu0 %v3456
    %3548 = vmatpush.msra.mxu0 %v3454
    %3549 = vmatpush.msra.mxu0 %v3452
    %3550 = vmatpush.msra.mxu0 %v3450
    %3551 = vmatpush.msra.mxu0 %v3448
    %3552 = vmatpush.msra.mxu0 %v3446
    %3553 = vmatpush.msra.mxu0 %v3444
    %3554 = vmatpush.msra.mxu0 %v3442
    %3555 = vmatmul.f32.gmra.mxu0 %v3379
    %v3556 = vpop.f32.mrf.mxu0
    %v3557 = vadd.f32 %v3492, %v3556
    %3558 = vmatmul.f32.gmra.mxu0 %v3381
    %v3559 = vpop.f32.mrf.mxu0
    %v3560 = vadd.f32 %v3495, %v3559
    %3561 = vmatmul.f32.gmra.mxu0 %v3383
    %v3562 = vpop.f32.mrf.mxu0
    %v3563 = vadd.f32 %v3498, %v3562
    %3564 = vmatmul.f32.gmra.mxu0 %v3385
    %v3565 = vpop.f32.mrf.mxu0
    %v3566 = vadd.f32 %v3501, %v3565
    %3567 = vmatmul.f32.gmra.mxu0 %v3387
    %v3568 = vpop.f32.mrf.mxu0
    %v3569 = vadd.f32 %v3504, %v3568
    %3570 = vmatmul.f32.gmra.mxu0 %v3389
    %v3571 = vpop.f32.mrf.mxu0
    %v3572 = vadd.f32 %v3507, %v3571
    %3573 = vmatmul.f32.gmra.mxu0 %v3391
    %v3574 = vpop.f32.mrf.mxu0
    %v3575 = vadd.f32 %v3510, %v3574
    %3576 = vmatmul.f32.gmra.mxu0 %v3393
    %v3577 = vpop.f32.mrf.mxu0
    %v3578 = vadd.f32 %v3513, %v3577
    %3579 = vmatmul.f32.gmra.mxu0 %v3395
    %v3580 = vpop.f32.mrf.mxu0
    %v3581 = vadd.f32 %v3516, %v3580
    %3582 = vmatmul.f32.gmra.mxu0 %v3397
    %v3583 = vpop.f32.mrf.mxu0
    %v3584 = vadd.f32 %v3519, %v3583
    %3585 = vmatmul.f32.gmra.mxu0 %v3399
    %v3586 = vpop.f32.mrf.mxu0
    %v3587 = vadd.f32 %v3522, %v3586
    %3588 = vmatmul.f32.gmra.mxu0 %v3401
    %v3589 = vpop.f32.mrf.mxu0
    %v3590 = vadd.f32 %v3525, %v3589
    %3591 = vmatmul.f32.gmra.mxu0 %v3403
    %v3592 = vpop.f32.mrf.mxu0
    %v3593 = vadd.f32 %v3528, %v3592
    %3594 = vmatmul.f32.gmra.mxu0 %v3405
    %v3595 = vpop.f32.mrf.mxu0
    %v3596 = vadd.f32 %v3531, %v3595
    %3597 = vmatmul.f32.gmra.mxu0 %v3407
    %v3598 = vpop.f32.mrf.mxu0
    %v3599 = vadd.f32 %v3534, %v3598
    %3600 = vmatmul.f32.gmra.mxu0 %v3409
    %v3601 = vpop.f32.mrf.mxu0
    %v3602 = vadd.f32 %v3537, %v3601
    %3603 = vdwg.mxu0
    %3604 = vmatpush.msra.mxu0 %v3441
    %3605 = vmatpush.msra.mxu0 %v3439
    %3606 = vmatpush.msra.mxu0 %v3437
    %3607 = vmatpush.msra.mxu0 %v3435
    %3608 = vmatpush.msra.mxu0 %v3433
    %3609 = vmatpush.msra.mxu0 %v3431
    %3610 = vmatpush.msra.mxu0 %v3429
    %3611 = vmatpush.msra.mxu0 %v3427
    %3612 = vmatpush.msra.mxu0 %v3425
    %3613 = vmatpush.msra.mxu0 %v3423
    %3614 = vmatpush.msra.mxu0 %v3421
    %3615 = vmatpush.msra.mxu0 %v3419
    %3616 = vmatpush.msra.mxu0 %v3417
    %3617 = vmatpush.msra.mxu0 %v3415
    %3618 = vmatpush.msra.mxu0 %v3413
    %3619 = vmatpush.msra.mxu0 %v3411
    %3620 = vmatmul.f32.gmra.mxu0 %v3378
    %v3621 = vpop.f32.mrf.mxu0
    %v3622 = vadd.f32 0.0, %v3621
    %3623 = vmatmul.f32.gmra.mxu0 %v3380
    %v3624 = vpop.f32.mrf.mxu0
    %v3625 = vadd.f32 0.0, %v3624
    %3626 = vmatmul.f32.gmra.mxu0 %v3382
    %v3627 = vpop.f32.mrf.mxu0
    %v3628 = vadd.f32 0.0, %v3627
    %3629 = vmatmul.f32.gmra.mxu0 %v3384
    %v3630 = vpop.f32.mrf.mxu0
    %v3631 = vadd.f32 0.0, %v3630
    %3632 = vmatmul.f32.gmra.mxu0 %v3386
    %v3633 = vpop.f32.mrf.mxu0
    %v3634 = vadd.f32 0.0, %v3633
    %3635 = vmatmul.f32.gmra.mxu0 %v3388
    %v3636 = vpop.f32.mrf.mxu0
    %v3637 = vadd.f32 0.0, %v3636
    %3638 = vmatmul.f32.gmra.mxu0 %v3390
    %v3639 = vpop.f32.mrf.mxu0
    %v3640 = vadd.f32 0.0, %v3639
    %3641 = vmatmul.f32.gmra.mxu0 %v3392
    %v3642 = vpop.f32.mrf.mxu0
    %v3643 = vadd.f32 0.0, %v3642
    %3644 = vmatmul.f32.gmra.mxu0 %v3394
    %v3645 = vpop.f32.mrf.mxu0
    %v3646 = vadd.f32 0.0, %v3645
    %3647 = vmatmul.f32.gmra.mxu0 %v3396
    %v3648 = vpop.f32.mrf.mxu0
    %v3649 = vadd.f32 0.0, %v3648
    %3650 = vmatmul.f32.gmra.mxu0 %v3398
    %v3651 = vpop.f32.mrf.mxu0
    %v3652 = vadd.f32 0.0, %v3651
    %3653 = vmatmul.f32.gmra.mxu0 %v3400
    %v3654 = vpop.f32.mrf.mxu0
    %v3655 = vadd.f32 0.0, %v3654
    %3656 = vmatmul.f32.gmra.mxu0 %v3402
    %v3657 = vpop.f32.mrf.mxu0
    %v3658 = vadd.f32 0.0, %v3657
    %3659 = vmatmul.f32.gmra.mxu0 %v3404
    %v3660 = vpop.f32.mrf.mxu0
    %v3661 = vadd.f32 0.0, %v3660
    %3662 = vmatmul.f32.gmra.mxu0 %v3406
    %v3663 = vpop.f32.mrf.mxu0
    %v3664 = vadd.f32 0.0, %v3663
    %3665 = vmatmul.f32.gmra.mxu0 %v3408
    %v3666 = vpop.f32.mrf.mxu0
    %v3667 = vadd.f32 0.0, %v3666
    %3668 = vdwg.mxu0
    %3669 = vmatpush.msra.mxu0 %v3473
    %3670 = vmatpush.msra.mxu0 %v3471
    %3671 = vmatpush.msra.mxu0 %v3469
    %3672 = vmatpush.msra.mxu0 %v3467
    %3673 = vmatpush.msra.mxu0 %v3465
    %3674 = vmatpush.msra.mxu0 %v3463
    %3675 = vmatpush.msra.mxu0 %v3461
    %3676 = vmatpush.msra.mxu0 %v3459
    %3677 = vmatpush.msra.mxu0 %v3457
    %3678 = vmatpush.msra.mxu0 %v3455
    %3679 = vmatpush.msra.mxu0 %v3453
    %3680 = vmatpush.msra.mxu0 %v3451
    %3681 = vmatpush.msra.mxu0 %v3449
    %3682 = vmatpush.msra.mxu0 %v3447
    %3683 = vmatpush.msra.mxu0 %v3445
    %3684 = vmatpush.msra.mxu0 %v3443
    %3685 = vmatmul.f32.gmra.mxu0 %v3379
    %v3686 = vpop.f32.mrf.mxu0
    %v3687 = vadd.f32 %v3622, %v3686
    %3688 = vmatmul.f32.gmra.mxu0 %v3381
    %v3689 = vpop.f32.mrf.mxu0
    %v3690 = vadd.f32 %v3625, %v3689
    %3691 = vmatmul.f32.gmra.mxu0 %v3383
    %v3692 = vpop.f32.mrf.mxu0
    %v3693 = vadd.f32 %v3628, %v3692
    %3694 = vmatmul.f32.gmra.mxu0 %v3385
    %v3695 = vpop.f32.mrf.mxu0
    %v3696 = vadd.f32 %v3631, %v3695
    %3697 = vmatmul.f32.gmra.mxu0 %v3387
    %v3698 = vpop.f32.mrf.mxu0
    %v3699 = vadd.f32 %v3634, %v3698
    %3700 = vmatmul.f32.gmra.mxu0 %v3389
    %v3701 = vpop.f32.mrf.mxu0
    %v3702 = vadd.f32 %v3637, %v3701
    %3703 = vmatmul.f32.gmra.mxu0 %v3391
    %v3704 = vpop.f32.mrf.mxu0
    %v3705 = vadd.f32 %v3640, %v3704
    %3706 = vmatmul.f32.gmra.mxu0 %v3393
    %v3707 = vpop.f32.mrf.mxu0
    %v3708 = vadd.f32 %v3643, %v3707
    %3709 = vmatmul.f32.gmra.mxu0 %v3395
    %v3710 = vpop.f32.mrf.mxu0
    %v3711 = vadd.f32 %v3646, %v3710
    %3712 = vmatmul.f32.gmra.mxu0 %v3397
    %v3713 = vpop.f32.mrf.mxu0
    %v3714 = vadd.f32 %v3649, %v3713
    %3715 = vmatmul.f32.gmra.mxu0 %v3399
    %v3716 = vpop.f32.mrf.mxu0
    %v3717 = vadd.f32 %v3652, %v3716
    %3718 = vmatmul.f32.gmra.mxu0 %v3401
    %v3719 = vpop.f32.mrf.mxu0
    %v3720 = vadd.f32 %v3655, %v3719
    %3721 = vmatmul.f32.gmra.mxu0 %v3403
    %v3722 = vpop.f32.mrf.mxu0
    %v3723 = vadd.f32 %v3658, %v3722
    %3724 = vmatmul.f32.gmra.mxu0 %v3405
    %v3725 = vpop.f32.mrf.mxu0
    %v3726 = vadd.f32 %v3661, %v3725
    %3727 = vmatmul.f32.gmra.mxu0 %v3407
    %v3728 = vpop.f32.mrf.mxu0
    %v3729 = vadd.f32 %v3664, %v3728
    %3730 = vmatmul.f32.gmra.mxu0 %v3409
    %v3731 = vpop.f32.mrf.mxu0
    %v3732 = vadd.f32 %v3667, %v3731
    %3733 = vdwg.mxu0
    %3734 = vst [vmem:[#allocation2] sm:$0xff] %v3557
    %3735 = vst [vmem:[#allocation2 + $0x8] sm:$0xff] %v3687
    %3736 = vst [vmem:[#allocation2 + $0x10] sm:$0xff] %v3560
    %3737 = vst [vmem:[#allocation2 + $0x18] sm:$0xff] %v3690
    %3738 = vst [vmem:[#allocation2 + $0x20] sm:$0xff] %v3563
    %3739 = vst [vmem:[#allocation2 + $0x28] sm:$0xff] %v3693
    %3740 = vst [vmem:[#allocation2 + $0x30] sm:$0xff] %v3566
    %3741 = vst [vmem:[#allocation2 + $0x38] sm:$0xff] %v3696
    %3742 = vst [vmem:[#allocation2 + $0x40] sm:$0xff] %v3569
    %3743 = vst [vmem:[#allocation2 + $0x48] sm:$0xff] %v3699
    %3744 = vst [vmem:[#allocation2 + $0x50] sm:$0xff] %v3572
    %3745 = vst [vmem:[#allocation2 + $0x58] sm:$0xff] %v3702
    %3746 = vst [vmem:[#allocation2 + $0x60] sm:$0xff] %v3575
    %3747 = vst [vmem:[#allocation2 + $0x68] sm:$0xff] %v3705
    %3748 = vst [vmem:[#allocation2 + $0x70] sm:$0xff] %v3578
    %3749 = vst [vmem:[#allocation2 + $0x78] sm:$0xff] %v3708
    %3750 = vst [vmem:[#allocation2 + $0x80] sm:$0xff] %v3581
    %3751 = vst [vmem:[#allocation2 + $0x88] sm:$0xff] %v3711
    %3752 = vst [vmem:[#allocation2 + $0x90] sm:$0xff] %v3584
    %3753 = vst [vmem:[#allocation2 + $0x98] sm:$0xff] %v3714
    %3754 = vst [vmem:[#allocation2 + $0xa0] sm:$0xff] %v3587
    %3755 = vst [vmem:[#allocation2 + $0xa8] sm:$0xff] %v3717
    %3756 = vst [vmem:[#allocation2 + $0xb0] sm:$0xff] %v3590
    %3757 = vst [vmem:[#allocation2 + $0xb8] sm:$0xff] %v3720
    %3758 = vst [vmem:[#allocation2 + $0xc0] sm:$0xff] %v3593
    %3759 = vst [vmem:[#allocation2 + $0xc8] sm:$0xff] %v3723
    %3760 = vst [vmem:[#allocation2 + $0xd0] sm:$0xff] %v3596
    %3761 = vst [vmem:[#allocation2 + $0xd8] sm:$0xff] %v3726
    %3762 = vst [vmem:[#allocation2 + $0xe0] sm:$0xff] %v3599
    %3763 = vst [vmem:[#allocation2 + $0xe8] sm:$0xff] %v3729
    %3764 = vst [vmem:[#allocation2 + $0xf0] sm:$0xff] %v3602
    %3765 = vst [vmem:[#allocation2 + $0xf8] sm:$0xff] %v3732
    %v3766 = vld [vmem:[#allocation2] sm:$0xff]
    %v3767 = vld [vmem:[#allocation2 + $0x8] sm:$0xff]
    %v3768 = vld [vmem:[#allocation2 + $0x10] sm:$0xff]
    %v3769 = vld [vmem:[#allocation2 + $0x18] sm:$0xff]
    %v3770 = vld [vmem:[#allocation2 + $0x20] sm:$0xff]
    %v3771 = vld [vmem:[#allocation2 + $0x28] sm:$0xff]
    %v3772 = vld [vmem:[#allocation2 + $0x30] sm:$0xff]
    %v3773 = vld [vmem:[#allocation2 + $0x38] sm:$0xff]
    %v3774 = vld [vmem:[#allocation2 + $0x40] sm:$0xff]
    %v3775 = vld [vmem:[#allocation2 + $0x48] sm:$0xff]
    %v3776 = vld [vmem:[#allocation2 + $0x50] sm:$0xff]
    %v3777 = vld [vmem:[#allocation2 + $0x58] sm:$0xff]
    %v3778 = vld [vmem:[#allocation2 + $0x60] sm:$0xff]
    %v3779 = vld [vmem:[#allocation2 + $0x68] sm:$0xff]
    %v3780 = vld [vmem:[#allocation2 + $0x70] sm:$0xff]
    %v3781 = vld [vmem:[#allocation2 + $0x78] sm:$0xff]
    %v3782 = vld [vmem:[#allocation2 + $0x80] sm:$0xff]
    %v3783 = vld [vmem:[#allocation2 + $0x88] sm:$0xff]
    %v3784 = vld [vmem:[#allocation2 + $0x90] sm:$0xff]
    %v3785 = vld [vmem:[#allocation2 + $0x98] sm:$0xff]
    %v3786 = vld [vmem:[#allocation2 + $0xa0] sm:$0xff]
    %v3787 = vld [vmem:[#allocation2 + $0xa8] sm:$0xff]
    %v3788 = vld [vmem:[#allocation2 + $0xb0] sm:$0xff]
    %v3789 = vld [vmem:[#allocation2 + $0xb8] sm:$0xff]
    %v3790 = vld [vmem:[#allocation2 + $0xc0] sm:$0xff]
    %v3791 = vld [vmem:[#allocation2 + $0xc8] sm:$0xff]
    %v3792 = vld [vmem:[#allocation2 + $0xd0] sm:$0xff]
    %v3793 = vld [vmem:[#allocation2 + $0xd8] sm:$0xff]
    %v3794 = vld [vmem:[#allocation2 + $0xe0] sm:$0xff]
    %v3795 = vld [vmem:[#allocation2 + $0xe8] sm:$0xff]
    %v3796 = vld [vmem:[#allocation2 + $0xf0] sm:$0xff]
    %v3797 = vld [vmem:[#allocation2 + $0xf8] sm:$0xff]
    %v3798 = vlaneseq
    %v3799 = vshrl.u32 %v3798, 7
    %v3800 = vadd.s32 %v3799, 8
    %v3801 = vadd.s32 %v3799, 16
    %v3802 = vadd.s32 %v3799, 24
    %v3803 = vadd.s32 %v3799, 32
    %v3804 = vadd.s32 %v3799, 40
    %v3805 = vadd.s32 %v3799, 48
    %v3806 = vadd.s32 %v3799, 56
    %v3807 = vadd.s32 %v3799, 64
    %v3808 = vadd.s32 %v3799, 72
    %v3809 = vadd.s32 %v3799, 80
    %v3810 = vadd.s32 %v3799, 88
    %v3811 = vadd.s32 %v3799, 96
    %v3812 = vadd.s32 %v3799, 104
    %v3813 = vadd.s32 %v3799, 112
    %v3814 = vadd.s32 %v3799, 120
    %vm3815 = vcmp.eq.s32.totalorder %v3799, %v64
    %vm3816 = vcmp.eq.s32.totalorder %v3800, %v64
    %vm3817 = vcmp.eq.s32.totalorder %v3801, %v64
    %vm3818 = vcmp.eq.s32.totalorder %v3802, %v64
    %vm3819 = vcmp.eq.s32.totalorder %v3803, %v64
    %vm3820 = vcmp.eq.s32.totalorder %v3804, %v64
    %vm3821 = vcmp.eq.s32.totalorder %v3805, %v64
    %vm3822 = vcmp.eq.s32.totalorder %v3806, %v64
    %vm3823 = vcmp.eq.s32.totalorder %v3807, %v64
    %vm3824 = vcmp.eq.s32.totalorder %v3808, %v64
    %vm3825 = vcmp.eq.s32.totalorder %v3809, %v64
    %vm3826 = vcmp.eq.s32.totalorder %v3810, %v64
    %vm3827 = vcmp.eq.s32.totalorder %v3811, %v64
    %vm3828 = vcmp.eq.s32.totalorder %v3812, %v64
    %vm3829 = vcmp.eq.s32.totalorder %v3813, %v64
    %vm3830 = vcmp.eq.s32.totalorder %v3814, %v64
    %v3831 = vsel %vm3815, 0.001, 0.0
    %v3832 = vsel %vm3816, 0.001, 0.0
    %v3833 = vsel %vm3817, 0.001, 0.0
    %v3834 = vsel %vm3818, 0.001, 0.0
    %v3835 = vsel %vm3819, 0.001, 0.0
    %v3836 = vsel %vm3820, 0.001, 0.0
    %v3837 = vsel %vm3821, 0.001, 0.0
    %v3838 = vsel %vm3822, 0.001, 0.0
    %v3839 = vsel %vm3823, 0.001, 0.0
    %v3840 = vsel %vm3824, 0.001, 0.0
    %v3841 = vsel %vm3825, 0.001, 0.0
    %v3842 = vsel %vm3826, 0.001, 0.0
    %v3843 = vsel %vm3827, 0.001, 0.0
    %v3844 = vsel %vm3828, 0.001, 0.0
    %v3845 = vsel %vm3829, 0.001, 0.0
    %v3846 = vsel %vm3830, 0.001, 0.0
    %3847 = vmatpush.xpose.msra.mxu0 %v3796
    %3848 = vmatpush.xpose.msra.mxu0 %v3794
    %3849 = vmatpush.xpose.msra.mxu0 %v3792
    %3850 = vmatpush.xpose.msra.mxu0 %v3790
    %3851 = vmatpush.xpose.msra.mxu0 %v3788
    %3852 = vmatpush.xpose.msra.mxu0 %v3786
    %3853 = vmatpush.xpose.msra.mxu0 %v3784
    %3854 = vmatpush.xpose.msra.mxu0 %v3782
    %3855 = vmatpush.xpose.msra.mxu0 %v3780
    %3856 = vmatpush.xpose.msra.mxu0 %v3778
    %3857 = vmatpush.xpose.msra.mxu0 %v3776
    %3858 = vmatpush.xpose.msra.mxu0 %v3774
    %3859 = vmatpush.xpose.msra.mxu0 %v3772
    %3860 = vmatpush.xpose.msra.mxu0 %v3770
    %3861 = vmatpush.xpose.msra.mxu0 %v3768
    %3862 = vmatpush.xpose.msra.mxu0 %v3766
    %3863 = vmatmul.f32.gmra.mxu0 %v3766
    %v3864 = vpop.f32.mrf.mxu0
    %v3865 = vadd.f32 %v3831, %v3864
    %3866 = vmatmul.f32.gmra.mxu0 %v3768
    %v3867 = vpop.f32.mrf.mxu0
    %v3868 = vadd.f32 %v3832, %v3867
    %3869 = vmatmul.f32.gmra.mxu0 %v3770
    %v3870 = vpop.f32.mrf.mxu0
    %v3871 = vadd.f32 %v3833, %v3870
    %3872 = vmatmul.f32.gmra.mxu0 %v3772
    %v3873 = vpop.f32.mrf.mxu0
    %v3874 = vadd.f32 %v3834, %v3873
    %3875 = vmatmul.f32.gmra.mxu0 %v3774
    %v3876 = vpop.f32.mrf.mxu0
    %v3877 = vadd.f32 %v3835, %v3876
    %3878 = vmatmul.f32.gmra.mxu0 %v3776
    %v3879 = vpop.f32.mrf.mxu0
    %v3880 = vadd.f32 %v3836, %v3879
    %3881 = vmatmul.f32.gmra.mxu0 %v3778
    %v3882 = vpop.f32.mrf.mxu0
    %v3883 = vadd.f32 %v3837, %v3882
    %3884 = vmatmul.f32.gmra.mxu0 %v3780
    %v3885 = vpop.f32.mrf.mxu0
    %v3886 = vadd.f32 %v3838, %v3885
    %3887 = vmatmul.f32.gmra.mxu0 %v3782
    %v3888 = vpop.f32.mrf.mxu0
    %v3889 = vadd.f32 %v3839, %v3888
    %3890 = vmatmul.f32.gmra.mxu0 %v3784
    %v3891 = vpop.f32.mrf.mxu0
    %v3892 = vadd.f32 %v3840, %v3891
    %3893 = vmatmul.f32.gmra.mxu0 %v3786
    %v3894 = vpop.f32.mrf.mxu0
    %v3895 = vadd.f32 %v3841, %v3894
    %3896 = vmatmul.f32.gmra.mxu0 %v3788
    %v3897 = vpop.f32.mrf.mxu0
    %v3898 = vadd.f32 %v3842, %v3897
    %3899 = vmatmul.f32.gmra.mxu0 %v3790
    %v3900 = vpop.f32.mrf.mxu0
    %v3901 = vadd.f32 %v3843, %v3900
    %3902 = vmatmul.f32.gmra.mxu0 %v3792
    %v3903 = vpop.f32.mrf.mxu0
    %v3904 = vadd.f32 %v3844, %v3903
    %3905 = vmatmul.f32.gmra.mxu0 %v3794
    %v3906 = vpop.f32.mrf.mxu0
    %v3907 = vadd.f32 %v3845, %v3906
    %3908 = vmatmul.f32.gmra.mxu0 %v3796
    %v3909 = vpop.f32.mrf.mxu0
    %v3910 = vadd.f32 %v3846, %v3909
    %3911 = vdwg.mxu0
    %3912 = vmatpush.xpose.msra.mxu0 %v3797
    %3913 = vmatpush.xpose.msra.mxu0 %v3795
    %3914 = vmatpush.xpose.msra.mxu0 %v3793
    %3915 = vmatpush.xpose.msra.mxu0 %v3791
    %3916 = vmatpush.xpose.msra.mxu0 %v3789
    %3917 = vmatpush.xpose.msra.mxu0 %v3787
    %3918 = vmatpush.xpose.msra.mxu0 %v3785
    %3919 = vmatpush.xpose.msra.mxu0 %v3783
    %3920 = vmatpush.xpose.msra.mxu0 %v3781
    %3921 = vmatpush.xpose.msra.mxu0 %v3779
    %3922 = vmatpush.xpose.msra.mxu0 %v3777
    %3923 = vmatpush.xpose.msra.mxu0 %v3775
    %3924 = vmatpush.xpose.msra.mxu0 %v3773
    %3925 = vmatpush.xpose.msra.mxu0 %v3771
    %3926 = vmatpush.xpose.msra.mxu0 %v3769
    %3927 = vmatpush.xpose.msra.mxu0 %v3767
    %3928 = vmatmul.f32.gmra.mxu0 %v3767
    %v3929 = vpop.f32.mrf.mxu0
    %v3930 = vadd.f32 %v3865, %v3929
    %3931 = vmatmul.f32.gmra.mxu0 %v3769
    %v3932 = vpop.f32.mrf.mxu0
    %v3933 = vadd.f32 %v3868, %v3932
    %3934 = vmatmul.f32.gmra.mxu0 %v3771
    %v3935 = vpop.f32.mrf.mxu0
    %v3936 = vadd.f32 %v3871, %v3935
    %3937 = vmatmul.f32.gmra.mxu0 %v3773
    %v3938 = vpop.f32.mrf.mxu0
    %v3939 = vadd.f32 %v3874, %v3938
    %3940 = vmatmul.f32.gmra.mxu0 %v3775
    %v3941 = vpop.f32.mrf.mxu0
    %v3942 = vadd.f32 %v3877, %v3941
    %3943 = vmatmul.f32.gmra.mxu0 %v3777
    %v3944 = vpop.f32.mrf.mxu0
    %v3945 = vadd.f32 %v3880, %v3944
    %3946 = vmatmul.f32.gmra.mxu0 %v3779
    %v3947 = vpop.f32.mrf.mxu0
    %v3948 = vadd.f32 %v3883, %v3947
    %3949 = vmatmul.f32.gmra.mxu0 %v3781
    %v3950 = vpop.f32.mrf.mxu0
    %v3951 = vadd.f32 %v3886, %v3950
    %3952 = vmatmul.f32.gmra.mxu0 %v3783
    %v3953 = vpop.f32.mrf.mxu0
    %v3954 = vadd.f32 %v3889, %v3953
    %3955 = vmatmul.f32.gmra.mxu0 %v3785
    %v3956 = vpop.f32.mrf.mxu0
    %v3957 = vadd.f32 %v3892, %v3956
    %3958 = vmatmul.f32.gmra.mxu0 %v3787
    %v3959 = vpop.f32.mrf.mxu0
    %v3960 = vadd.f32 %v3895, %v3959
    %3961 = vmatmul.f32.gmra.mxu0 %v3789
    %v3962 = vpop.f32.mrf.mxu0
    %v3963 = vadd.f32 %v3898, %v3962
    %3964 = vmatmul.f32.gmra.mxu0 %v3791
    %v3965 = vpop.f32.mrf.mxu0
    %v3966 = vadd.f32 %v3901, %v3965
    %3967 = vmatmul.f32.gmra.mxu0 %v3793
    %v3968 = vpop.f32.mrf.mxu0
    %v3969 = vadd.f32 %v3904, %v3968
    %3970 = vmatmul.f32.gmra.mxu0 %v3795
    %v3971 = vpop.f32.mrf.mxu0
    %v3972 = vadd.f32 %v3907, %v3971
    %3973 = vmatmul.f32.gmra.mxu0 %v3797
    %v3974 = vpop.f32.mrf.mxu0
    %v3975 = vadd.f32 %v3910, %v3974
    %3976 = vdwg.mxu0
    %3977 = vst [vmem:[#allocation6] sm:$0xff] %v3930
    %3978 = vst [vmem:[#allocation6 + $0x8] sm:$0xff] %v3933
    %3979 = vst [vmem:[#allocation6 + $0x10] sm:$0xff] %v3936
    %3980 = vst [vmem:[#allocation6 + $0x18] sm:$0xff] %v3939
    %3981 = vst [vmem:[#allocation6 + $0x20] sm:$0xff] %v3942
    %3982 = vst [vmem:[#allocation6 + $0x28] sm:$0xff] %v3945
    %3983 = vst [vmem:[#allocation6 + $0x30] sm:$0xff] %v3948
    %3984 = vst [vmem:[#allocation6 + $0x38] sm:$0xff] %v3951
    %3985 = vst [vmem:[#allocation6 + $0x40] sm:$0xff] %v3954
    %3986 = vst [vmem:[#allocation6 + $0x48] sm:$0xff] %v3957
    %3987 = vst [vmem:[#allocation6 + $0x50] sm:$0xff] %v3960
    %3988 = vst [vmem:[#allocation6 + $0x58] sm:$0xff] %v3963
    %3989 = vst [vmem:[#allocation6 + $0x60] sm:$0xff] %v3966
    %3990 = vst [vmem:[#allocation6 + $0x68] sm:$0xff] %v3969
    %3991 = vst [vmem:[#allocation6 + $0x70] sm:$0xff] %v3972
    %3992 = vst [vmem:[#allocation6 + $0x78] sm:$0xff] %v3975
    // Predicated region
    $region18: #{tpu_custom_call.1} parent=1 // pred_check
      _
    $region19: #{tpu_custom_call.1} parent=1 // pred_check_branch
      %3994 = sbr.rel (0) target = $region21
    $region20: #{tpu_custom_call.1} parent=1 // pred_region
      %3996 = vsyncadd [#allocation5], 0
      %s3997 = sshll.u32 [#allocation6], 4
      %s3998 = int_to_ptr.vmem [resolvable:$true] %s3997
      %s3999 = sshll.u32 %s3, 4
      %s4000 = int_to_ptr.hbm [resolvable:$true] %s3999
      %4005 = dma.vmem_to_hbm [thread:$0]  %s3998, 2048, %s4000, [#allocation5], 128, 128, 8
    $region21: #{tpu_custom_call.1} parent=1 // pred_fallthru
      _
    // Predicated region
    $region22: #{tpu_custom_call.1} parent=1 // pred_check
      _
    $region23: #{tpu_custom_call.1} parent=1 // pred_check_branch
      %4007 = sbr.rel (0) target = $region25
    $region24: #{tpu_custom_call.1} parent=1 // pred_region
      %4009 = dma.done [#allocation5], 2048
    $region25: #{tpu_custom_call.1} parent=1 // pred_fallthru
      _
    %4010 = vsyncpa [#allocation4], 1
    %4011 = vsyncpa [#allocation5], 1

</llo_original>
